<compile_context>
chip_gen: v6e
topology: v6e:2x2x1
jax: 0.10.0
libtpu: 0.0.40
codegen_flags: <defaults>
</compile_context>

<pallas_src>
import functools

import jax
import jax.numpy as jnp
from jax import lax
from jax.experimental import pallas as pl
from jax.experimental.pallas import tpu as pltpu

# Module hyper-parameters (from the PyTorch source / a typical small config).
CTX_LENGTH = 32
N_EMBD = 384
NUM_HEADS = 3
HEAD_SIZE = 128          # NUM_HEADS * HEAD_SIZE == N_EMBD


# --------------------------------------------------------------------------- #
# One-time parameter prep (hoisted out of the per-call hot path).
# --------------------------------------------------------------------------- #
def fuse_qkv_weights(wq, wk, wv, *, compute_dtype=jnp.bfloat16):
    """Fuse per-head Q/K/V weights into a single (C, 3*H*Hs) matrix.

    wq/wk/wv: (H, C, Hs) per-head projection matrices (x @ w convention).
    The attention scale 1/sqrt(Hs) is folded into the query columns (linear,
    mathematically identical), and the fold happens in f32 BEFORE the cast to
    `compute_dtype`.  Call this once at parameter-init time.
    """
    H, C, Hs = wq.shape
    hh = H * Hs

    def stack(w):  # (H, C, Hs) -> (C, H*Hs); head h at columns [h*Hs, (h+1)*Hs)
        return jnp.swapaxes(w, 0, 1).reshape(C, hh).astype(jnp.float32)

    scale = jnp.float32(Hs) ** -0.5
    fused = jnp.concatenate([stack(wq) * scale, stack(wk), stack(wv)], axis=-1)
    return fused.astype(compute_dtype)                       # (C, 3*H*Hs)


def _num_tensorcores():
    """Best-effort TensorCores-per-chip guess (v7x has 2, v5e/v6e have 1)."""
    try:
        kind = jax.devices()[0].device_kind.lower()
    except Exception:
        return 1
    return 2 if "v7" in kind else 1


# --------------------------------------------------------------------------- #
# Kernel
# --------------------------------------------------------------------------- #
def _mha_fused_kernel(x_ref, wqkv_ref, o_ref, *, num_heads, head_size):
    """One grid step: all heads for the Bt batch elements in this block.

    x_ref    : (Bt, T, C)        input embeddings (any float dtype)
    wqkv_ref : (C, 3*H*Hs)       fused [Wq*scale | Wk | Wv] in compute dtype
    o_ref    : (Bt, T, H*Hs)     concatenated head outputs
    """
    cdt = wqkv_ref.dtype                     # matmul-operand (compute) dtype
    Bt, T, C = x_ref.shape
    hh = num_heads * head_size

    # Fused QKV projection for all heads and all Bt batch elements:
    # (Bt*T, C) @ (C, 3*H*Hs), f32 accumulation on the MXU.
    x = x_ref[...].reshape(Bt * T, C).astype(cdt)
    qkv = jnp.dot(x, wqkv_ref[...], preferred_element_type=jnp.float32)

    # Back to compute dtype so the attention matmuls also run at full MXU rate.
    q = qkv[:, 0 * hh:1 * hh].astype(cdt).reshape(Bt, T, hh)
    k = qkv[:, 1 * hh:2 * hh].astype(cdt).reshape(Bt, T, hh)
    v = qkv[:, 2 * hh:3 * hh].astype(cdt).reshape(Bt, T, hh)

    # Causal mask, built once and shared by all heads / batch elements.
    rows = lax.broadcasted_iota(jnp.int32, (T, T), 0)
    cols = lax.broadcasted_iota(jnp.int32, (T, T), 1)
    causal = (cols <= rows)[None]            # (1, T, T)
    neg_big = jnp.float32(-1e30)             # finite => NaN-safe masking

    for h in range(num_heads):               # static, unrolled (H is small)
        sl = slice(h * head_size, (h + 1) * head_size)    # 128-lane aligned
        qh, kh, vh = q[:, :, sl], k[:, :, sl], v[:, :, sl]

        # q @ k^T (scale already folded into Wq), batched over Bt, contracting
        # the head dim of both operands (no explicit transpose).
        wei = lax.dot_general(
            qh, kh, (((2,), (2,)), ((0,), (0,))),
            preferred_element_type=jnp.float32)           # (Bt, T, T) f32
        wei = jnp.where(causal, wei, neg_big)

        # Numerically-stable softmax in f32 (exact divide).
        wei = wei - jnp.max(wei, axis=-1, keepdims=True)
        p = jnp.exp(wei)
        p = p / jnp.sum(p, axis=-1, keepdims=True)

        # TODO(synk): training-mode dropout(p=0.2) on `p` goes here.

        out_h = lax.dot_general(
            p.astype(cdt), vh, (((2,), (1,)), ((0,), (0,))),
            preferred_element_type=jnp.float32)           # (Bt, T, Hs) f32

        # Direct, 128-lane-aligned store into this head's output slice.
        o_ref[:, :, sl] = out_h.astype(o_ref.dtype)


# --------------------------------------------------------------------------- #
# Wrapper
# --------------------------------------------------------------------------- #
def multi_head_attention(x, wqkv, *, num_heads, head_size,
                         batch_per_step=None, out_dtype=jnp.float32):
    """x: (B, T, C); wqkv: pre-fused (C, 3*H*Hs) from fuse_qkv_weights.

    Returns (B, T, H*Hs) — each 128-wide slice is one `Head.forward` output.
    The matmul operand dtype is wqkv.dtype (bf16 recommended); accumulation and
    softmax are f32.
    """
    B, T, C = x.shape
    hh = num_heads * head_size
    assert wqkv.shape == (C, 3 * hh), (wqkv.shape, (C, 3 * hh))

    if batch_per_step is None:
        # One grid step per TensorCore: v7x (2 TCs) -> one batch element per
        # "parallel" step; v5e/v6e (1 TC) -> whole batch in a single step
        # (better MXU fill, no second grid-step overhead).
        batch_per_step = max(1, B // _num_tensorcores())
    batch_per_step = max(1, min(batch_per_step, B))
    while B % batch_per_step:                # keep block tiling exact
        batch_per_step -= 1
    grid = (B // batch_per_step,)

    kernel = functools.partial(_mha_fused_kernel,
                               num_heads=num_heads, head_size=head_size)

    return pl.pallas_call(
        kernel,
        out_shape=jax.ShapeDtypeStruct((B, T, hh), out_dtype),
        grid_spec=pltpu.PrefetchScalarGridSpec(
            num_scalar_prefetch=0,
            grid=grid,
            in_specs=[
                # x: one batch block per step.
                pl.BlockSpec((batch_per_step, T, C), lambda b: (b, 0, 0)),
                # fused weights: constant block index -> stays VMEM-resident.
                pl.BlockSpec((C, 3 * hh), lambda b: (0, 0)),
            ],
            out_specs=pl.BlockSpec((batch_per_step, T, hh), lambda b: (b, 0, 0)),
        ),
        compiler_params=pltpu.CompilerParams(
            dimension_semantics=("parallel",),
        ),
    )(x, wqkv)


# --------------------------------------------------------------------------- #
# Pure-JAX reference (mirrors the PyTorch Head.forward, eval mode)
# --------------------------------------------------------------------------- #
def _reference(x, wq, wk, wv):
    H, _, Hs = wq.shape
    T = x.shape[1]
    tril = jnp.tril(jnp.ones((T, T), dtype=bool))
    outs = []
    for h in range(H):
        q = x @ wq[h]
        k = x @ wk[h]
        v = x @ wv[h]
        wei = (q @ jnp.swapaxes(k, -2, -1)) * (Hs ** -0.5)
        wei = jnp.where(tril, wei, -jnp.inf)
        wei = jax.nn.softmax(wei, axis=-1)
        outs.append(wei @ v)
    return jnp.concatenate(outs, axis=-1)


if __name__ == "__main__":
    key = jax.random.PRNGKey(0)
    k_x, k_q, k_k, k_v = jax.random.split(key, 4)

    B, T = 2, CTX_LENGTH
    x = jax.random.normal(k_x, (B, T, N_EMBD), dtype=jnp.float32)

    # nn.Linear(n_embd, head_size, bias=False): we store the (n_embd, head_size)
    # transpose per head, stacked over heads.
    scale = N_EMBD ** (-0.5)
    wq = jax.random.uniform(k_q, (NUM_HEADS, N_EMBD, HEAD_SIZE),
                            minval=-scale, maxval=scale, dtype=jnp.float32)
    wk = jax.random.uniform(k_k, (NUM_HEADS, N_EMBD, HEAD_SIZE),
                            minval=-scale, maxval=scale, dtype=jnp.float32)
    wv = jax.random.uniform(k_v, (NUM_HEADS, N_EMBD, HEAD_SIZE),
                            minval=-scale, maxval=scale, dtype=jnp.float32)

    ref = _reference(x, wq, wk, wv)

    # One-time weight fusion (hoisted out of the per-call hot path).
    wqkv_f32 = fuse_qkv_weights(wq, wk, wv, compute_dtype=jnp.float32)
    wqkv_bf16 = fuse_qkv_weights(wq, wk, wv, compute_dtype=jnp.bfloat16)

    # f32 compute path: tight check.
    out_f32 = jax.block_until_ready(
        multi_head_attention(x, wqkv_f32,
                             num_heads=NUM_HEADS, head_size=HEAD_SIZE))
    assert out_f32.shape == (B, T, NUM_HEADS * HEAD_SIZE)
    assert jnp.allclose(out_f32, ref, atol=1e-3, rtol=1e-3)

    # bf16 compute path (default/fast path on v5e/v6e/v7x): looser check.
    out_bf16 = jax.block_until_ready(
        multi_head_attention(x, wqkv_bf16,
                             num_heads=NUM_HEADS, head_size=HEAD_SIZE))
    assert out_bf16.shape == (B, T, NUM_HEADS * HEAD_SIZE)
    assert jnp.allclose(out_bf16, ref, atol=5e-2, rtol=5e-2)

    print("KERNEL_OK")
</pallas_src>

<mosaic_0001>
module attributes {stable_mosaic.version = 11 : i64} {
  func.func @_mha_fused_kernel(%arg0: i32, %arg1: memref<2x32x384xf32, #tpu.memory_space<vmem>>, %arg2: memref<384x1152xf32, #tpu.memory_space<vmem>>, %arg3: memref<2x32x384xf32, #tpu.memory_space<vmem>>) attributes {dimension_semantics = [#tpu.dimension_semantics<parallel>], iteration_bounds = array<i64: 1>, scalar_prefetch = 0 : i64, scratch_operands = 0 : i64, tpu.core_type = #tpu.core_type<tc>, window_params = [{transform_indices = @transform_0, window_bounds = array<i64: 2, 32, 384>}, {pipeline_mode = #tpu.pipeline_mode<synchronous>, transform_indices = @transform_1, window_bounds = array<i64: 384, 1152>}, {transform_indices = @transform_2, window_bounds = array<i64: 2, 32, 384>}]} {
    %c0 = arith.constant 0 : index
    %c0_0 = arith.constant 0 : index
    %c0_1 = arith.constant 0 : index
    %0 = vector.load %arg1[%c0, %c0_0, %c0_1] : memref<2x32x384xf32, #tpu.memory_space<vmem>>, vector<2x32x384xf32>
    %1 = vector.shape_cast %0 : vector<2x32x384xf32> to vector<64x384xf32>
    %c0_2 = arith.constant 0 : index
    %c0_3 = arith.constant 0 : index
    %2 = vector.load %arg2[%c0_2, %c0_3] : memref<384x1152xf32, #tpu.memory_space<vmem>>, vector<384x1152xf32>
    %cst = arith.constant dense<0.000000e+00> : vector<64x1152xf32>
    %3 = tpu.matmul %1, %2, %cst {dimension_numbers = #tpu.dot_dimension_numbers<[1], [0], [0], [1], [0, 0, 1, 1], [], []>} : vector<64x384xf32>, vector<384x1152xf32>, vector<64x1152xf32> -> vector<64x1152xf32>
    %4 = vector.extract_strided_slice %3 {offsets = [0, 0], sizes = [64, 384], strides = [1, 1]} : vector<64x1152xf32> to vector<64x384xf32>
    %5 = vector.shape_cast %4 : vector<64x384xf32> to vector<2x32x384xf32>
    %6 = vector.extract_strided_slice %3 {offsets = [0, 384], sizes = [64, 384], strides = [1, 1]} : vector<64x1152xf32> to vector<64x384xf32>
    %7 = vector.shape_cast %6 : vector<64x384xf32> to vector<2x32x384xf32>
    %8 = vector.extract_strided_slice %3 {offsets = [0, 768], sizes = [64, 384], strides = [1, 1]} : vector<64x1152xf32> to vector<64x384xf32>
    %9 = vector.shape_cast %8 : vector<64x384xf32> to vector<2x32x384xf32>
    %10 = tpu.iota {dimensions = array<i32: 0>} : vector<32x32xi32>
    %11 = tpu.iota {dimensions = array<i32: 1>} : vector<32x32xi32>
    %12 = arith.cmpi sle, %11, %10 : vector<32x32xi32>
    %13 = vector.shape_cast %12 : vector<32x32xi1> to vector<1x32x32xi1>
    %14 = vector.extract_strided_slice %5 {offsets = [0, 0, 0], sizes = [2, 32, 128], strides = [1, 1, 1]} : vector<2x32x384xf32> to vector<2x32x128xf32>
    %15 = vector.extract_strided_slice %7 {offsets = [0, 0, 0], sizes = [2, 32, 128], strides = [1, 1, 1]} : vector<2x32x384xf32> to vector<2x32x128xf32>
    %16 = vector.extract_strided_slice %9 {offsets = [0, 0, 0], sizes = [2, 32, 128], strides = [1, 1, 1]} : vector<2x32x384xf32> to vector<2x32x128xf32>
    %cst_4 = arith.constant dense<0.000000e+00> : vector<2x32x32xf32>
    %17 = tpu.matmul %14, %15, %cst_4 {dimension_numbers = #tpu.dot_dimension_numbers<[2], [2], [1], [1], [0, 0, 0, 1, 1, 1], [0], [0]>} : vector<2x32x128xf32>, vector<2x32x128xf32>, vector<2x32x32xf32> -> vector<2x32x32xf32>
    %cst_5 = arith.constant -1.000000e+30 : f32
    %18 = vector.shape_cast %13 : vector<1x32x32xi1> to vector<1x32x32xi1>
    %19 = vector.broadcast %18 : vector<1x32x32xi1> to vector<2x32x32xi1>
    %20 = vector.broadcast %cst_5 : f32 to vector<2x32x32xf32>
    %21 = arith.select %19, %17, %20 : vector<2x32x32xi1>, vector<2x32x32xf32>
    %cst_6 = arith.constant dense<0xFF800000> : vector<2x32xf32>
    %22 = vector.multi_reduction <maximumf>, %21, %cst_6 [2] : vector<2x32x32xf32> to vector<2x32xf32>
    %23 = vector.shape_cast %22 : vector<2x32xf32> to vector<2x32x1xf32>
    %24 = vector.broadcast %23 : vector<2x32x1xf32> to vector<2x32x32xf32>
    %25 = arith.subf %21, %24 : vector<2x32x32xf32>
    %26 = math.exp %25 : vector<2x32x32xf32>
    %cst_7 = arith.constant dense<0.000000e+00> : vector<2x32xf32>
    %27 = vector.multi_reduction <add>, %26, %cst_7 [2] : vector<2x32x32xf32> to vector<2x32xf32>
    %28 = vector.shape_cast %27 : vector<2x32xf32> to vector<2x32x1xf32>
    %29 = vector.broadcast %28 : vector<2x32x1xf32> to vector<2x32x32xf32>
    %30 = arith.divf %26, %29 : vector<2x32x32xf32>
    %cst_8 = arith.constant dense<0.000000e+00> : vector<2x32x128xf32>
    %31 = tpu.matmul %30, %16, %cst_8 {dimension_numbers = #tpu.dot_dimension_numbers<[2], [1], [1], [2], [0, 0, 0, 1, 1, 2], [0], [0]>} : vector<2x32x32xf32>, vector<2x32x128xf32>, vector<2x32x128xf32> -> vector<2x32x128xf32>
    %c0_9 = arith.constant 0 : index
    %c0_10 = arith.constant 0 : index
    %c0_11 = arith.constant 0 : index
    %32 = vector.load %arg3[%c0_9, %c0_10, %c0_11] : memref<2x32x384xf32, #tpu.memory_space<vmem>>, vector<2x32x128xf32>
    tpu.vector_store %arg3[%c0_9, %c0_10, %c0_11], %31 {strides = array<i32>} : memref<2x32x384xf32, #tpu.memory_space<vmem>>, vector<2x32x128xf32>,
    %33 = vector.extract_strided_slice %5 {offsets = [0, 0, 128], sizes = [2, 32, 128], strides = [1, 1, 1]} : vector<2x32x384xf32> to vector<2x32x128xf32>
    %34 = vector.extract_strided_slice %7 {offsets = [0, 0, 128], sizes = [2, 32, 128], strides = [1, 1, 1]} : vector<2x32x384xf32> to vector<2x32x128xf32>
    %35 = vector.extract_strided_slice %9 {offsets = [0, 0, 128], sizes = [2, 32, 128], strides = [1, 1, 1]} : vector<2x32x384xf32> to vector<2x32x128xf32>
    %cst_12 = arith.constant dense<0.000000e+00> : vector<2x32x32xf32>
    %36 = tpu.matmul %33, %34, %cst_12 {dimension_numbers = #tpu.dot_dimension_numbers<[2], [2], [1], [1], [0, 0, 0, 1, 1, 1], [0], [0]>} : vector<2x32x128xf32>, vector<2x32x128xf32>, vector<2x32x32xf32> -> vector<2x32x32xf32>
    %cst_13 = arith.constant -1.000000e+30 : f32
    %37 = vector.shape_cast %13 : vector<1x32x32xi1> to vector<1x32x32xi1>
    %38 = vector.broadcast %37 : vector<1x32x32xi1> to vector<2x32x32xi1>
    %39 = vector.broadcast %cst_13 : f32 to vector<2x32x32xf32>
    %40 = arith.select %38, %36, %39 : vector<2x32x32xi1>, vector<2x32x32xf32>
    %cst_14 = arith.constant dense<0xFF800000> : vector<2x32xf32>
    %41 = vector.multi_reduction <maximumf>, %40, %cst_14 [2] : vector<2x32x32xf32> to vector<2x32xf32>
    %42 = vector.shape_cast %41 : vector<2x32xf32> to vector<2x32x1xf32>
    %43 = vector.broadcast %42 : vector<2x32x1xf32> to vector<2x32x32xf32>
    %44 = arith.subf %40, %43 : vector<2x32x32xf32>
    %45 = math.exp %44 : vector<2x32x32xf32>
    %cst_15 = arith.constant dense<0.000000e+00> : vector<2x32xf32>
    %46 = vector.multi_reduction <add>, %45, %cst_15 [2] : vector<2x32x32xf32> to vector<2x32xf32>
    %47 = vector.shape_cast %46 : vector<2x32xf32> to vector<2x32x1xf32>
    %48 = vector.broadcast %47 : vector<2x32x1xf32> to vector<2x32x32xf32>
    %49 = arith.divf %45, %48 : vector<2x32x32xf32>
    %cst_16 = arith.constant dense<0.000000e+00> : vector<2x32x128xf32>
    %50 = tpu.matmul %49, %35, %cst_16 {dimension_numbers = #tpu.dot_dimension_numbers<[2], [1], [1], [2], [0, 0, 0, 1, 1, 2], [0], [0]>} : vector<2x32x32xf32>, vector<2x32x128xf32>, vector<2x32x128xf32> -> vector<2x32x128xf32>
    %c0_17 = arith.constant 0 : index
    %c0_18 = arith.constant 0 : index
    %c128 = arith.constant 128 : index
    %51 = vector.load %arg3[%c0_17, %c0_18, %c128] : memref<2x32x384xf32, #tpu.memory_space<vmem>>, vector<2x32x128xf32>
    tpu.vector_store %arg3[%c0_17, %c0_18, %c128], %50 {strides = array<i32>} : memref<2x32x384xf32, #tpu.memory_space<vmem>>, vector<2x32x128xf32>,
    %52 = vector.extract_strided_slice %5 {offsets = [0, 0, 256], sizes = [2, 32, 128], strides = [1, 1, 1]} : vector<2x32x384xf32> to vector<2x32x128xf32>
    %53 = vector.extract_strided_slice %7 {offsets = [0, 0, 256], sizes = [2, 32, 128], strides = [1, 1, 1]} : vector<2x32x384xf32> to vector<2x32x128xf32>
    %54 = vector.extract_strided_slice %9 {offsets = [0, 0, 256], sizes = [2, 32, 128], strides = [1, 1, 1]} : vector<2x32x384xf32> to vector<2x32x128xf32>
    %cst_19 = arith.constant dense<0.000000e+00> : vector<2x32x32xf32>
    %55 = tpu.matmul %52, %53, %cst_19 {dimension_numbers = #tpu.dot_dimension_numbers<[2], [2], [1], [1], [0, 0, 0, 1, 1, 1], [0], [0]>} : vector<2x32x128xf32>, vector<2x32x128xf32>, vector<2x32x32xf32> -> vector<2x32x32xf32>
    %cst_20 = arith.constant -1.000000e+30 : f32
    %56 = vector.shape_cast %13 : vector<1x32x32xi1> to vector<1x32x32xi1>
    %57 = vector.broadcast %56 : vector<1x32x32xi1> to vector<2x32x32xi1>
    %58 = vector.broadcast %cst_20 : f32 to vector<2x32x32xf32>
    %59 = arith.select %57, %55, %58 : vector<2x32x32xi1>, vector<2x32x32xf32>
    %cst_21 = arith.constant dense<0xFF800000> : vector<2x32xf32>
    %60 = vector.multi_reduction <maximumf>, %59, %cst_21 [2] : vector<2x32x32xf32> to vector<2x32xf32>
    %61 = vector.shape_cast %60 : vector<2x32xf32> to vector<2x32x1xf32>
    %62 = vector.broadcast %61 : vector<2x32x1xf32> to vector<2x32x32xf32>
    %63 = arith.subf %59, %62 : vector<2x32x32xf32>
    %64 = math.exp %63 : vector<2x32x32xf32>
    %cst_22 = arith.constant dense<0.000000e+00> : vector<2x32xf32>
    %65 = vector.multi_reduction <add>, %64, %cst_22 [2] : vector<2x32x32xf32> to vector<2x32xf32>
    %66 = vector.shape_cast %65 : vector<2x32xf32> to vector<2x32x1xf32>
    %67 = vector.broadcast %66 : vector<2x32x1xf32> to vector<2x32x32xf32>
    %68 = arith.divf %64, %67 : vector<2x32x32xf32>
    %cst_23 = arith.constant dense<0.000000e+00> : vector<2x32x128xf32>
    %69 = tpu.matmul %68, %54, %cst_23 {dimension_numbers = #tpu.dot_dimension_numbers<[2], [1], [1], [2], [0, 0, 0, 1, 1, 2], [0], [0]>} : vector<2x32x32xf32>, vector<2x32x128xf32>, vector<2x32x128xf32> -> vector<2x32x128xf32>
    %c0_24 = arith.constant 0 : index
    %c0_25 = arith.constant 0 : index
    %c256 = arith.constant 256 : index
    %70 = vector.load %arg3[%c0_24, %c0_25, %c256] : memref<2x32x384xf32, #tpu.memory_space<vmem>>, vector<2x32x128xf32>
    tpu.vector_store %arg3[%c0_24, %c0_25, %c256], %69 {strides = array<i32>} : memref<2x32x384xf32, #tpu.memory_space<vmem>>, vector<2x32x128xf32>,
    return
  }
  func.func @transform_0(%arg0: i32) -> (i32, i32, i32) {
    %c0_i32 = arith.constant 0 : i32
    %c0_i32_0 = arith.constant 0 : i32
    %c0_i32_1 = arith.constant 0 : i32
    return %arg0, %c0_i32, %c0_i32_0 : i32, i32, i32
  }
  func.func @transform_1(%arg0: i32) -> (i32, i32) {
    %c0_i32 = arith.constant 0 : i32
    %c0_i32_0 = arith.constant 0 : i32
    %c0_i32_1 = arith.constant 0 : i32
    return %c0_i32, %c0_i32_0 : i32, i32
  }
  func.func @transform_2(%arg0: i32) -> (i32, i32, i32) {
    %c0_i32 = arith.constant 0 : i32
    %c0_i32_0 = arith.constant 0 : i32
    %c0_i32_1 = arith.constant 0 : i32
    return %arg0, %c0_i32, %c0_i32_0 : i32, i32, i32
  }
}

</mosaic_0001>

<llo_original>
// kernel: tpu_custom_call.1
$region0: #{tpu_custom_call.1}
  #allocation0 [shape = 'u32[]', space=smem, size = 0x4, offset = 0x4, fixed_abs, tag = 'smem constant byte address 0x4 - core index']
  #allocation1 [shape = 'u32[144,128]{1,0:T(1,128)}', space=vmem, size = 0x12000, scoped, tag = 'internal scratch']
  %s0 = inlined_call_operand.hbm [shape: f32[2,32,384], index: 0, kind: input, shape index: {}]
  %s1 = inlined_call_operand.hbm [shape: f32[384,1152], index: 1, kind: input, shape index: {}]
  %s2 = inlined_call_operand.hbm [shape: f32[2,32,384], index: 2, kind: output, shape index: {}]
  %s3 = sld [smem:[#allocation0]]
  $region26: #{tpu_custom_call.1} parent=0
    _
  %s5 = ssub.s32 1, %s3
  %s6 = scalar_select 0, %s5, %s3
  $region1: #{tpu_custom_call.1} parent=0
    #allocation2 [shape = 'u8[98304]{0}', space=vmem, size = 0x18000, scoped, tag = 'input window, operand 0, single buffered']
    #allocation3 [shape = 's32[1]{0}', space=sflag, size = 0x4, scoped, tag = 'scoped memory for tpu_custom_call.1']
    #allocation4 [shape = 's32[1]{0}', space=sflag, size = 0x4, scoped, tag = 'scoped memory for tpu_custom_call.1']
    #allocation5 [shape = 'u8[1769472]{0}', space=vmem, size = 0x1b0000, scoped, tag = 'input window, operand 1, single buffered']
    #allocation6 [shape = 's32[1]{0}', space=sflag, size = 0x4, scoped, tag = 'scoped memory for tpu_custom_call.1']
    #allocation7 [shape = 'u8[98304]{0}', space=vmem, size = 0x18000, scoped, tag = 'output window, operand 0, single buffered']
    %7 = vsyncpa [#allocation3], 0
    %8 = vsyncpa [#allocation6], 0
    %9 = vsyncpa [#allocation4], 0
    // Predicated region
    $region2: #{tpu_custom_call.1} parent=1 // pred_check
      _
    $region3: #{tpu_custom_call.1} parent=1 // pred_check_branch
      %11 = sbr.rel (0) target = $region5
    $region4: #{tpu_custom_call.1} parent=1 // pred_region
      %s13 = ssub.s32 3072, 3072
      %14 = vsyncadd [#allocation3], %s13
      %s15 = sshll.u32 [#allocation2], 4
      %s16 = int_to_ptr.vmem [resolvable:$true] %s15
      %21 = dma.hbm_to_vmem [thread:$0]  %s0, 3072, %s16, [#allocation3], 384, 384, 24
    $region5: #{tpu_custom_call.1} parent=1 // pred_fallthru
      _
    // Predicated region
    $region6: #{tpu_custom_call.1} parent=1 // pred_check
      _
    $region7: #{tpu_custom_call.1} parent=1 // pred_check_branch
      %23 = sbr.rel (0) target = $region9
    $region8: #{tpu_custom_call.1} parent=1 // pred_region
      %s25 = ssub.s32 55296, 55296
      %26 = vsyncadd [#allocation6], %s25
      %s27 = sshll.u32 [#allocation5], 4
      %s28 = int_to_ptr.vmem [resolvable:$true] %s27
      %33 = dma.hbm_to_vmem [thread:$0]  %s1, 55296, %s28, [#allocation6], 1152, 1152, 72
    $region9: #{tpu_custom_call.1} parent=1 // pred_fallthru
      _
    // Predicated region
    $region10: #{tpu_custom_call.1} parent=1 // pred_check
      _
    $region11: #{tpu_custom_call.1} parent=1 // pred_check_branch
      %35 = sbr.rel (0) target = $region13
    $region12: #{tpu_custom_call.1} parent=1 // pred_region
      %36 = dma.done [#allocation3], 3072
    $region13: #{tpu_custom_call.1} parent=1 // pred_fallthru
      _
    // Predicated region
    $region14: #{tpu_custom_call.1} parent=1 // pred_check
      _
    $region15: #{tpu_custom_call.1} parent=1 // pred_check_branch
      %38 = sbr.rel (0) target = $region17
    $region16: #{tpu_custom_call.1} parent=1 // pred_region
      %39 = dma.done [#allocation6], 55296
    $region17: #{tpu_custom_call.1} parent=1 // pred_fallthru
      _
    %v40 = vld [vmem:[#allocation2] sm:$0xff]
    %v41 = vld [vmem:[#allocation2 + $0x8] sm:$0xff]
    %v42 = vld [vmem:[#allocation2 + $0x10] sm:$0xff]
    %v43 = vld [vmem:[#allocation2 + $0x18] sm:$0xff]
    %v44 = vld [vmem:[#allocation2 + $0x20] sm:$0xff]
    %v45 = vld [vmem:[#allocation2 + $0x28] sm:$0xff]
    %v46 = vld [vmem:[#allocation2 + $0x30] sm:$0xff]
    %v47 = vld [vmem:[#allocation2 + $0x38] sm:$0xff]
    %v48 = vld [vmem:[#allocation2 + $0x40] sm:$0xff]
    %v49 = vld [vmem:[#allocation2 + $0x48] sm:$0xff]
    %v50 = vld [vmem:[#allocation2 + $0x50] sm:$0xff]
    %v51 = vld [vmem:[#allocation2 + $0x58] sm:$0xff]
    %v52 = vld [vmem:[#allocation2 + $0x60] sm:$0xff]
    %v53 = vld [vmem:[#allocation2 + $0x68] sm:$0xff]
    %v54 = vld [vmem:[#allocation2 + $0x70] sm:$0xff]
    %v55 = vld [vmem:[#allocation2 + $0x78] sm:$0xff]
    %v56 = vld [vmem:[#allocation2 + $0x80] sm:$0xff]
    %v57 = vld [vmem:[#allocation2 + $0x88] sm:$0xff]
    %v58 = vld [vmem:[#allocation2 + $0x90] sm:$0xff]
    %v59 = vld [vmem:[#allocation2 + $0x98] sm:$0xff]
    %v60 = vld [vmem:[#allocation2 + $0xa0] sm:$0xff]
    %v61 = vld [vmem:[#allocation2 + $0xa8] sm:$0xff]
    %v62 = vld [vmem:[#allocation2 + $0xb0] sm:$0xff]
    %v63 = vld [vmem:[#allocation2 + $0xb8] sm:$0xff]
    %v64 = vld [vmem:[#allocation5] sm:$0xff]
    %v65 = vld [vmem:[#allocation5 + $0x8] sm:$0xff]
    %v66 = vld [vmem:[#allocation5 + $0x10] sm:$0xff]
    %v67 = vld [vmem:[#allocation5 + $0x18] sm:$0xff]
    %v68 = vld [vmem:[#allocation5 + $0x20] sm:$0xff]
    %v69 = vld [vmem:[#allocation5 + $0x28] sm:$0xff]
    %v70 = vld [vmem:[#allocation5 + $0x30] sm:$0xff]
    %v71 = vld [vmem:[#allocation5 + $0x38] sm:$0xff]
    %v72 = vld [vmem:[#allocation5 + $0x40] sm:$0xff]
    %v73 = vld [vmem:[#allocation5 + $0x48] sm:$0xff]
    %v74 = vld [vmem:[#allocation5 + $0x50] sm:$0xff]
    %v75 = vld [vmem:[#allocation5 + $0x58] sm:$0xff]
    %v76 = vld [vmem:[#allocation5 + $0x60] sm:$0xff]
    %v77 = vld [vmem:[#allocation5 + $0x68] sm:$0xff]
    %v78 = vld [vmem:[#allocation5 + $0x70] sm:$0xff]
    %v79 = vld [vmem:[#allocation5 + $0x78] sm:$0xff]
    %v80 = vld [vmem:[#allocation5 + $0x80] sm:$0xff]
    %v81 = vld [vmem:[#allocation5 + $0x88] sm:$0xff]
    %v82 = vld [vmem:[#allocation5 + $0x90] sm:$0xff]
    %v83 = vld [vmem:[#allocation5 + $0x98] sm:$0xff]
    %v84 = vld [vmem:[#allocation5 + $0xa0] sm:$0xff]
    %v85 = vld [vmem:[#allocation5 + $0xa8] sm:$0xff]
    %v86 = vld [vmem:[#allocation5 + $0xb0] sm:$0xff]
    %v87 = vld [vmem:[#allocation5 + $0xb8] sm:$0xff]
    %v88 = vld [vmem:[#allocation5 + $0xc0] sm:$0xff]
    %v89 = vld [vmem:[#allocation5 + $0xc8] sm:$0xff]
    %v90 = vld [vmem:[#allocation5 + $0xd0] sm:$0xff]
    %v91 = vld [vmem:[#allocation5 + $0xd8] sm:$0xff]
    %v92 = vld [vmem:[#allocation5 + $0xe0] sm:$0xff]
    %v93 = vld [vmem:[#allocation5 + $0xe8] sm:$0xff]
    %v94 = vld [vmem:[#allocation5 + $0xf0] sm:$0xff]
    %v95 = vld [vmem:[#allocation5 + $0xf8] sm:$0xff]
    %v96 = vld [vmem:[#allocation5 + $0x100] sm:$0xff]
    %v97 = vld [vmem:[#allocation5 + $0x108] sm:$0xff]
    %v98 = vld [vmem:[#allocation5 + $0x110] sm:$0xff]
    %v99 = vld [vmem:[#allocation5 + $0x118] sm:$0xff]
    %v100 = vld [vmem:[#allocation5 + $0x120] sm:$0xff]
    %v101 = vld [vmem:[#allocation5 + $0x128] sm:$0xff]
    %v102 = vld [vmem:[#allocation5 + $0x130] sm:$0xff]
    %v103 = vld [vmem:[#allocation5 + $0x138] sm:$0xff]
    %v104 = vld [vmem:[#allocation5 + $0x140] sm:$0xff]
    %v105 = vld [vmem:[#allocation5 + $0x148] sm:$0xff]
    %v106 = vld [vmem:[#allocation5 + $0x150] sm:$0xff]
    %v107 = vld [vmem:[#allocation5 + $0x158] sm:$0xff]
    %v108 = vld [vmem:[#allocation5 + $0x160] sm:$0xff]
    %v109 = vld [vmem:[#allocation5 + $0x168] sm:$0xff]
    %v110 = vld [vmem:[#allocation5 + $0x170] sm:$0xff]
    %v111 = vld [vmem:[#allocation5 + $0x178] sm:$0xff]
    %v112 = vld [vmem:[#allocation5 + $0x180] sm:$0xff]
    %v113 = vld [vmem:[#allocation5 + $0x188] sm:$0xff]
    %v114 = vld [vmem:[#allocation5 + $0x190] sm:$0xff]
    %v115 = vld [vmem:[#allocation5 + $0x198] sm:$0xff]
    %v116 = vld [vmem:[#allocation5 + $0x1a0] sm:$0xff]
    %v117 = vld [vmem:[#allocation5 + $0x1a8] sm:$0xff]
    %v118 = vld [vmem:[#allocation5 + $0x1b0] sm:$0xff]
    %v119 = vld [vmem:[#allocation5 + $0x1b8] sm:$0xff]
    %v120 = vld [vmem:[#allocation5 + $0x1c0] sm:$0xff]
    %v121 = vld [vmem:[#allocation5 + $0x1c8] sm:$0xff]
    %v122 = vld [vmem:[#allocation5 + $0x1d0] sm:$0xff]
    %v123 = vld [vmem:[#allocation5 + $0x1d8] sm:$0xff]
    %v124 = vld [vmem:[#allocation5 + $0x1e0] sm:$0xff]
    %v125 = vld [vmem:[#allocation5 + $0x1e8] sm:$0xff]
    %v126 = vld [vmem:[#allocation5 + $0x1f0] sm:$0xff]
    %v127 = vld [vmem:[#allocation5 + $0x1f8] sm:$0xff]
    %v128 = vld [vmem:[#allocation5 + $0x200] sm:$0xff]
    %v129 = vld [vmem:[#allocation5 + $0x208] sm:$0xff]
    %v130 = vld [vmem:[#allocation5 + $0x210] sm:$0xff]
    %v131 = vld [vmem:[#allocation5 + $0x218] sm:$0xff]
    %v132 = vld [vmem:[#allocation5 + $0x220] sm:$0xff]
    %v133 = vld [vmem:[#allocation5 + $0x228] sm:$0xff]
    %v134 = vld [vmem:[#allocation5 + $0x230] sm:$0xff]
    %v135 = vld [vmem:[#allocation5 + $0x238] sm:$0xff]
    %v136 = vld [vmem:[#allocation5 + $0x240] sm:$0xff]
    %v137 = vld [vmem:[#allocation5 + $0x248] sm:$0xff]
    %v138 = vld [vmem:[#allocation5 + $0x250] sm:$0xff]
    %v139 = vld [vmem:[#allocation5 + $0x258] sm:$0xff]
    %v140 = vld [vmem:[#allocation5 + $0x260] sm:$0xff]
    %v141 = vld [vmem:[#allocation5 + $0x268] sm:$0xff]
    %v142 = vld [vmem:[#allocation5 + $0x270] sm:$0xff]
    %v143 = vld [vmem:[#allocation5 + $0x278] sm:$0xff]
    %v144 = vld [vmem:[#allocation5 + $0x280] sm:$0xff]
    %v145 = vld [vmem:[#allocation5 + $0x288] sm:$0xff]
    %v146 = vld [vmem:[#allocation5 + $0x290] sm:$0xff]
    %v147 = vld [vmem:[#allocation5 + $0x298] sm:$0xff]
    %v148 = vld [vmem:[#allocation5 + $0x2a0] sm:$0xff]
    %v149 = vld [vmem:[#allocation5 + $0x2a8] sm:$0xff]
    %v150 = vld [vmem:[#allocation5 + $0x2b0] sm:$0xff]
    %v151 = vld [vmem:[#allocation5 + $0x2b8] sm:$0xff]
    %v152 = vld [vmem:[#allocation5 + $0x2c0] sm:$0xff]
    %v153 = vld [vmem:[#allocation5 + $0x2c8] sm:$0xff]
    %v154 = vld [vmem:[#allocation5 + $0x2d0] sm:$0xff]
    %v155 = vld [vmem:[#allocation5 + $0x2d8] sm:$0xff]
    %v156 = vld [vmem:[#allocation5 + $0x2e0] sm:$0xff]
    %v157 = vld [vmem:[#allocation5 + $0x2e8] sm:$0xff]
    %v158 = vld [vmem:[#allocation5 + $0x2f0] sm:$0xff]
    %v159 = vld [vmem:[#allocation5 + $0x2f8] sm:$0xff]
    %v160 = vld [vmem:[#allocation5 + $0x300] sm:$0xff]
    %v161 = vld [vmem:[#allocation5 + $0x308] sm:$0xff]
    %v162 = vld [vmem:[#allocation5 + $0x310] sm:$0xff]
    %v163 = vld [vmem:[#allocation5 + $0x318] sm:$0xff]
    %v164 = vld [vmem:[#allocation5 + $0x320] sm:$0xff]
    %v165 = vld [vmem:[#allocation5 + $0x328] sm:$0xff]
    %v166 = vld [vmem:[#allocation5 + $0x330] sm:$0xff]
    %v167 = vld [vmem:[#allocation5 + $0x338] sm:$0xff]
    %v168 = vld [vmem:[#allocation5 + $0x340] sm:$0xff]
    %v169 = vld [vmem:[#allocation5 + $0x348] sm:$0xff]
    %v170 = vld [vmem:[#allocation5 + $0x350] sm:$0xff]
    %v171 = vld [vmem:[#allocation5 + $0x358] sm:$0xff]
    %v172 = vld [vmem:[#allocation5 + $0x360] sm:$0xff]
    %v173 = vld [vmem:[#allocation5 + $0x368] sm:$0xff]
    %v174 = vld [vmem:[#allocation5 + $0x370] sm:$0xff]
    %v175 = vld [vmem:[#allocation5 + $0x378] sm:$0xff]
    %v176 = vld [vmem:[#allocation5 + $0x380] sm:$0xff]
    %v177 = vld [vmem:[#allocation5 + $0x388] sm:$0xff]
    %v178 = vld [vmem:[#allocation5 + $0x390] sm:$0xff]
    %v179 = vld [vmem:[#allocation5 + $0x398] sm:$0xff]
    %v180 = vld [vmem:[#allocation5 + $0x3a0] sm:$0xff]
    %v181 = vld [vmem:[#allocation5 + $0x3a8] sm:$0xff]
    %v182 = vld [vmem:[#allocation5 + $0x3b0] sm:$0xff]
    %v183 = vld [vmem:[#allocation5 + $0x3b8] sm:$0xff]
    %v184 = vld [vmem:[#allocation5 + $0x3c0] sm:$0xff]
    %v185 = vld [vmem:[#allocation5 + $0x3c8] sm:$0xff]
    %v186 = vld [vmem:[#allocation5 + $0x3d0] sm:$0xff]
    %v187 = vld [vmem:[#allocation5 + $0x3d8] sm:$0xff]
    %v188 = vld [vmem:[#allocation5 + $0x3e0] sm:$0xff]
    %v189 = vld [vmem:[#allocation5 + $0x3e8] sm:$0xff]
    %v190 = vld [vmem:[#allocation5 + $0x3f0] sm:$0xff]
    %v191 = vld [vmem:[#allocation5 + $0x3f8] sm:$0xff]
    %v192 = vld [vmem:[#allocation5 + $0x400] sm:$0xff]
    %v193 = vld [vmem:[#allocation5 + $0x408] sm:$0xff]
    %v194 = vld [vmem:[#allocation5 + $0x410] sm:$0xff]
    %v195 = vld [vmem:[#allocation5 + $0x418] sm:$0xff]
    %v196 = vld [vmem:[#allocation5 + $0x420] sm:$0xff]
    %v197 = vld [vmem:[#allocation5 + $0x428] sm:$0xff]
    %v198 = vld [vmem:[#allocation5 + $0x430] sm:$0xff]
    %v199 = vld [vmem:[#allocation5 + $0x438] sm:$0xff]
    %v200 = vld [vmem:[#allocation5 + $0x440] sm:$0xff]
    %v201 = vld [vmem:[#allocation5 + $0x448] sm:$0xff]
    %v202 = vld [vmem:[#allocation5 + $0x450] sm:$0xff]
    %v203 = vld [vmem:[#allocation5 + $0x458] sm:$0xff]
    %v204 = vld [vmem:[#allocation5 + $0x460] sm:$0xff]
    %v205 = vld [vmem:[#allocation5 + $0x468] sm:$0xff]
    %v206 = vld [vmem:[#allocation5 + $0x470] sm:$0xff]
    %v207 = vld [vmem:[#allocation5 + $0x478] sm:$0xff]
    %v208 = vld [vmem:[#allocation5 + $0x480] sm:$0xff]
    %v209 = vld [vmem:[#allocation5 + $0x488] sm:$0xff]
    %v210 = vld [vmem:[#allocation5 + $0x490] sm:$0xff]
    %v211 = vld [vmem:[#allocation5 + $0x498] sm:$0xff]
    %v212 = vld [vmem:[#allocation5 + $0x4a0] sm:$0xff]
    %v213 = vld [vmem:[#allocation5 + $0x4a8] sm:$0xff]
    %v214 = vld [vmem:[#allocation5 + $0x4b0] sm:$0xff]
    %v215 = vld [vmem:[#allocation5 + $0x4b8] sm:$0xff]
    %v216 = vld [vmem:[#allocation5 + $0x4c0] sm:$0xff]
    %v217 = vld [vmem:[#allocation5 + $0x4c8] sm:$0xff]
    %v218 = vld [vmem:[#allocation5 + $0x4d0] sm:$0xff]
    %v219 = vld [vmem:[#allocation5 + $0x4d8] sm:$0xff]
    %v220 = vld [vmem:[#allocation5 + $0x4e0] sm:$0xff]
    %v221 = vld [vmem:[#allocation5 + $0x4e8] sm:$0xff]
    %v222 = vld [vmem:[#allocation5 + $0x4f0] sm:$0xff]
    %v223 = vld [vmem:[#allocation5 + $0x4f8] sm:$0xff]
    %v224 = vld [vmem:[#allocation5 + $0x500] sm:$0xff]
    %v225 = vld [vmem:[#allocation5 + $0x508] sm:$0xff]
    %v226 = vld [vmem:[#allocation5 + $0x510] sm:$0xff]
    %v227 = vld [vmem:[#allocation5 + $0x518] sm:$0xff]
    %v228 = vld [vmem:[#allocation5 + $0x520] sm:$0xff]
    %v229 = vld [vmem:[#allocation5 + $0x528] sm:$0xff]
    %v230 = vld [vmem:[#allocation5 + $0x530] sm:$0xff]
    %v231 = vld [vmem:[#allocation5 + $0x538] sm:$0xff]
    %v232 = vld [vmem:[#allocation5 + $0x540] sm:$0xff]
    %v233 = vld [vmem:[#allocation5 + $0x548] sm:$0xff]
    %v234 = vld [vmem:[#allocation5 + $0x550] sm:$0xff]
    %v235 = vld [vmem:[#allocation5 + $0x558] sm:$0xff]
    %v236 = vld [vmem:[#allocation5 + $0x560] sm:$0xff]
    %v237 = vld [vmem:[#allocation5 + $0x568] sm:$0xff]
    %v238 = vld [vmem:[#allocation5 + $0x570] sm:$0xff]
    %v239 = vld [vmem:[#allocation5 + $0x578] sm:$0xff]
    %v240 = vld [vmem:[#allocation5 + $0x580] sm:$0xff]
    %v241 = vld [vmem:[#allocation5 + $0x588] sm:$0xff]
    %v242 = vld [vmem:[#allocation5 + $0x590] sm:$0xff]
    %v243 = vld [vmem:[#allocation5 + $0x598] sm:$0xff]
    %v244 = vld [vmem:[#allocation5 + $0x5a0] sm:$0xff]
    %v245 = vld [vmem:[#allocation5 + $0x5a8] sm:$0xff]
    %v246 = vld [vmem:[#allocation5 + $0x5b0] sm:$0xff]
    %v247 = vld [vmem:[#allocation5 + $0x5b8] sm:$0xff]
    %v248 = vld [vmem:[#allocation5 + $0x5c0] sm:$0xff]
    %v249 = vld [vmem:[#allocation5 + $0x5c8] sm:$0xff]
    %v250 = vld [vmem:[#allocation5 + $0x5d0] sm:$0xff]
    %v251 = vld [vmem:[#allocation5 + $0x5d8] sm:$0xff]
    %v252 = vld [vmem:[#allocation5 + $0x5e0] sm:$0xff]
    %v253 = vld [vmem:[#allocation5 + $0x5e8] sm:$0xff]
    %v254 = vld [vmem:[#allocation5 + $0x5f0] sm:$0xff]
    %v255 = vld [vmem:[#allocation5 + $0x5f8] sm:$0xff]
    %v256 = vld [vmem:[#allocation5 + $0x600] sm:$0xff]
    %v257 = vld [vmem:[#allocation5 + $0x608] sm:$0xff]
    %v258 = vld [vmem:[#allocation5 + $0x610] sm:$0xff]
    %v259 = vld [vmem:[#allocation5 + $0x618] sm:$0xff]
    %v260 = vld [vmem:[#allocation5 + $0x620] sm:$0xff]
    %v261 = vld [vmem:[#allocation5 + $0x628] sm:$0xff]
    %v262 = vld [vmem:[#allocation5 + $0x630] sm:$0xff]
    %v263 = vld [vmem:[#allocation5 + $0x638] sm:$0xff]
    %v264 = vld [vmem:[#allocation5 + $0x640] sm:$0xff]
    %v265 = vld [vmem:[#allocation5 + $0x648] sm:$0xff]
    %v266 = vld [vmem:[#allocation5 + $0x650] sm:$0xff]
    %v267 = vld [vmem:[#allocation5 + $0x658] sm:$0xff]
    %v268 = vld [vmem:[#allocation5 + $0x660] sm:$0xff]
    %v269 = vld [vmem:[#allocation5 + $0x668] sm:$0xff]
    %v270 = vld [vmem:[#allocation5 + $0x670] sm:$0xff]
    %v271 = vld [vmem:[#allocation5 + $0x678] sm:$0xff]
    %v272 = vld [vmem:[#allocation5 + $0x680] sm:$0xff]
    %v273 = vld [vmem:[#allocation5 + $0x688] sm:$0xff]
    %v274 = vld [vmem:[#allocation5 + $0x690] sm:$0xff]
    %v275 = vld [vmem:[#allocation5 + $0x698] sm:$0xff]
    %v276 = vld [vmem:[#allocation5 + $0x6a0] sm:$0xff]
    %v277 = vld [vmem:[#allocation5 + $0x6a8] sm:$0xff]
    %v278 = vld [vmem:[#allocation5 + $0x6b0] sm:$0xff]
    %v279 = vld [vmem:[#allocation5 + $0x6b8] sm:$0xff]
    %v280 = vld [vmem:[#allocation5 + $0x6c0] sm:$0xff]
    %v281 = vld [vmem:[#allocation5 + $0x6c8] sm:$0xff]
    %v282 = vld [vmem:[#allocation5 + $0x6d0] sm:$0xff]
    %v283 = vld [vmem:[#allocation5 + $0x6d8] sm:$0xff]
    %v284 = vld [vmem:[#allocation5 + $0x6e0] sm:$0xff]
    %v285 = vld [vmem:[#allocation5 + $0x6e8] sm:$0xff]
    %v286 = vld [vmem:[#allocation5 + $0x6f0] sm:$0xff]
    %v287 = vld [vmem:[#allocation5 + $0x6f8] sm:$0xff]
    %v288 = vld [vmem:[#allocation5 + $0x700] sm:$0xff]
    %v289 = vld [vmem:[#allocation5 + $0x708] sm:$0xff]
    %v290 = vld [vmem:[#allocation5 + $0x710] sm:$0xff]
    %v291 = vld [vmem:[#allocation5 + $0x718] sm:$0xff]
    %v292 = vld [vmem:[#allocation5 + $0x720] sm:$0xff]
    %v293 = vld [vmem:[#allocation5 + $0x728] sm:$0xff]
    %v294 = vld [vmem:[#allocation5 + $0x730] sm:$0xff]
    %v295 = vld [vmem:[#allocation5 + $0x738] sm:$0xff]
    %v296 = vld [vmem:[#allocation5 + $0x740] sm:$0xff]
    %v297 = vld [vmem:[#allocation5 + $0x748] sm:$0xff]
    %v298 = vld [vmem:[#allocation5 + $0x750] sm:$0xff]
    %v299 = vld [vmem:[#allocation5 + $0x758] sm:$0xff]
    %v300 = vld [vmem:[#allocation5 + $0x760] sm:$0xff]
    %v301 = vld [vmem:[#allocation5 + $0x768] sm:$0xff]
    %v302 = vld [vmem:[#allocation5 + $0x770] sm:$0xff]
    %v303 = vld [vmem:[#allocation5 + $0x778] sm:$0xff]
    %v304 = vld [vmem:[#allocation5 + $0x780] sm:$0xff]
    %v305 = vld [vmem:[#allocation5 + $0x788] sm:$0xff]
    %v306 = vld [vmem:[#allocation5 + $0x790] sm:$0xff]
    %v307 = vld [vmem:[#allocation5 + $0x798] sm:$0xff]
    %v308 = vld [vmem:[#allocation5 + $0x7a0] sm:$0xff]
    %v309 = vld [vmem:[#allocation5 + $0x7a8] sm:$0xff]
    %v310 = vld [vmem:[#allocation5 + $0x7b0] sm:$0xff]
    %v311 = vld [vmem:[#allocation5 + $0x7b8] sm:$0xff]
    %v312 = vld [vmem:[#allocation5 + $0x7c0] sm:$0xff]
    %v313 = vld [vmem:[#allocation5 + $0x7c8] sm:$0xff]
    %v314 = vld [vmem:[#allocation5 + $0x7d0] sm:$0xff]
    %v315 = vld [vmem:[#allocation5 + $0x7d8] sm:$0xff]
    %v316 = vld [vmem:[#allocation5 + $0x7e0] sm:$0xff]
    %v317 = vld [vmem:[#allocation5 + $0x7e8] sm:$0xff]
    %v318 = vld [vmem:[#allocation5 + $0x7f0] sm:$0xff]
    %v319 = vld [vmem:[#allocation5 + $0x7f8] sm:$0xff]
    %v320 = vld [vmem:[#allocation5 + $0x800] sm:$0xff]
    %v321 = vld [vmem:[#allocation5 + $0x808] sm:$0xff]
    %v322 = vld [vmem:[#allocation5 + $0x810] sm:$0xff]
    %v323 = vld [vmem:[#allocation5 + $0x818] sm:$0xff]
    %v324 = vld [vmem:[#allocation5 + $0x820] sm:$0xff]
    %v325 = vld [vmem:[#allocation5 + $0x828] sm:$0xff]
    %v326 = vld [vmem:[#allocation5 + $0x830] sm:$0xff]
    %v327 = vld [vmem:[#allocation5 + $0x838] sm:$0xff]
    %v328 = vld [vmem:[#allocation5 + $0x840] sm:$0xff]
    %v329 = vld [vmem:[#allocation5 + $0x848] sm:$0xff]
    %v330 = vld [vmem:[#allocation5 + $0x850] sm:$0xff]
    %v331 = vld [vmem:[#allocation5 + $0x858] sm:$0xff]
    %v332 = vld [vmem:[#allocation5 + $0x860] sm:$0xff]
    %v333 = vld [vmem:[#allocation5 + $0x868] sm:$0xff]
    %v334 = vld [vmem:[#allocation5 + $0x870] sm:$0xff]
    %v335 = vld [vmem:[#allocation5 + $0x878] sm:$0xff]
    %v336 = vld [vmem:[#allocation5 + $0x880] sm:$0xff]
    %v337 = vld [vmem:[#allocation5 + $0x888] sm:$0xff]
    %v338 = vld [vmem:[#allocation5 + $0x890] sm:$0xff]
    %v339 = vld [vmem:[#allocation5 + $0x898] sm:$0xff]
    %v340 = vld [vmem:[#allocation5 + $0x8a0] sm:$0xff]
    %v341 = vld [vmem:[#allocation5 + $0x8a8] sm:$0xff]
    %v342 = vld [vmem:[#allocation5 + $0x8b0] sm:$0xff]
    %v343 = vld [vmem:[#allocation5 + $0x8b8] sm:$0xff]
    %v344 = vld [vmem:[#allocation5 + $0x8c0] sm:$0xff]
    %v345 = vld [vmem:[#allocation5 + $0x8c8] sm:$0xff]
    %v346 = vld [vmem:[#allocation5 + $0x8d0] sm:$0xff]
    %v347 = vld [vmem:[#allocation5 + $0x8d8] sm:$0xff]
    %v348 = vld [vmem:[#allocation5 + $0x8e0] sm:$0xff]
    %v349 = vld [vmem:[#allocation5 + $0x8e8] sm:$0xff]
    %v350 = vld [vmem:[#allocation5 + $0x8f0] sm:$0xff]
    %v351 = vld [vmem:[#allocation5 + $0x8f8] sm:$0xff]
    %v352 = vld [vmem:[#allocation5 + $0x900] sm:$0xff]
    %v353 = vld [vmem:[#allocation5 + $0x908] sm:$0xff]
    %v354 = vld [vmem:[#allocation5 + $0x910] sm:$0xff]
    %v355 = vld [vmem:[#allocation5 + $0x918] sm:$0xff]
    %v356 = vld [vmem:[#allocation5 + $0x920] sm:$0xff]
    %v357 = vld [vmem:[#allocation5 + $0x928] sm:$0xff]
    %v358 = vld [vmem:[#allocation5 + $0x930] sm:$0xff]
    %v359 = vld [vmem:[#allocation5 + $0x938] sm:$0xff]
    %v360 = vld [vmem:[#allocation5 + $0x940] sm:$0xff]
    %v361 = vld [vmem:[#allocation5 + $0x948] sm:$0xff]
    %v362 = vld [vmem:[#allocation5 + $0x950] sm:$0xff]
    %v363 = vld [vmem:[#allocation5 + $0x958] sm:$0xff]
    %v364 = vld [vmem:[#allocation5 + $0x960] sm:$0xff]
    %v365 = vld [vmem:[#allocation5 + $0x968] sm:$0xff]
    %v366 = vld [vmem:[#allocation5 + $0x970] sm:$0xff]
    %v367 = vld [vmem:[#allocation5 + $0x978] sm:$0xff]
    %v368 = vld [vmem:[#allocation5 + $0x980] sm:$0xff]
    %v369 = vld [vmem:[#allocation5 + $0x988] sm:$0xff]
    %v370 = vld [vmem:[#allocation5 + $0x990] sm:$0xff]
    %v371 = vld [vmem:[#allocation5 + $0x998] sm:$0xff]
    %v372 = vld [vmem:[#allocation5 + $0x9a0] sm:$0xff]
    %v373 = vld [vmem:[#allocation5 + $0x9a8] sm:$0xff]
    %v374 = vld [vmem:[#allocation5 + $0x9b0] sm:$0xff]
    %v375 = vld [vmem:[#allocation5 + $0x9b8] sm:$0xff]
    %v376 = vld [vmem:[#allocation5 + $0x9c0] sm:$0xff]
    %v377 = vld [vmem:[#allocation5 + $0x9c8] sm:$0xff]
    %v378 = vld [vmem:[#allocation5 + $0x9d0] sm:$0xff]
    %v379 = vld [vmem:[#allocation5 + $0x9d8] sm:$0xff]
    %v380 = vld [vmem:[#allocation5 + $0x9e0] sm:$0xff]
    %v381 = vld [vmem:[#allocation5 + $0x9e8] sm:$0xff]
    %v382 = vld [vmem:[#allocation5 + $0x9f0] sm:$0xff]
    %v383 = vld [vmem:[#allocation5 + $0x9f8] sm:$0xff]
    %v384 = vld [vmem:[#allocation5 + $0xa00] sm:$0xff]
    %v385 = vld [vmem:[#allocation5 + $0xa08] sm:$0xff]
    %v386 = vld [vmem:[#allocation5 + $0xa10] sm:$0xff]
    %v387 = vld [vmem:[#allocation5 + $0xa18] sm:$0xff]
    %v388 = vld [vmem:[#allocation5 + $0xa20] sm:$0xff]
    %v389 = vld [vmem:[#allocation5 + $0xa28] sm:$0xff]
    %v390 = vld [vmem:[#allocation5 + $0xa30] sm:$0xff]
    %v391 = vld [vmem:[#allocation5 + $0xa38] sm:$0xff]
    %v392 = vld [vmem:[#allocation5 + $0xa40] sm:$0xff]
    %v393 = vld [vmem:[#allocation5 + $0xa48] sm:$0xff]
    %v394 = vld [vmem:[#allocation5 + $0xa50] sm:$0xff]
    %v395 = vld [vmem:[#allocation5 + $0xa58] sm:$0xff]
    %v396 = vld [vmem:[#allocation5 + $0xa60] sm:$0xff]
    %v397 = vld [vmem:[#allocation5 + $0xa68] sm:$0xff]
    %v398 = vld [vmem:[#allocation5 + $0xa70] sm:$0xff]
    %v399 = vld [vmem:[#allocation5 + $0xa78] sm:$0xff]
    %v400 = vld [vmem:[#allocation5 + $0xa80] sm:$0xff]
    %v401 = vld [vmem:[#allocation5 + $0xa88] sm:$0xff]
    %v402 = vld [vmem:[#allocation5 + $0xa90] sm:$0xff]
    %v403 = vld [vmem:[#allocation5 + $0xa98] sm:$0xff]
    %v404 = vld [vmem:[#allocation5 + $0xaa0] sm:$0xff]
    %v405 = vld [vmem:[#allocation5 + $0xaa8] sm:$0xff]
    %v406 = vld [vmem:[#allocation5 + $0xab0] sm:$0xff]
    %v407 = vld [vmem:[#allocation5 + $0xab8] sm:$0xff]
    %v408 = vld [vmem:[#allocation5 + $0xac0] sm:$0xff]
    %v409 = vld [vmem:[#allocation5 + $0xac8] sm:$0xff]
    %v410 = vld [vmem:[#allocation5 + $0xad0] sm:$0xff]
    %v411 = vld [vmem:[#allocation5 + $0xad8] sm:$0xff]
    %v412 = vld [vmem:[#allocation5 + $0xae0] sm:$0xff]
    %v413 = vld [vmem:[#allocation5 + $0xae8] sm:$0xff]
    %v414 = vld [vmem:[#allocation5 + $0xaf0] sm:$0xff]
    %v415 = vld [vmem:[#allocation5 + $0xaf8] sm:$0xff]
    %v416 = vld [vmem:[#allocation5 + $0xb00] sm:$0xff]
    %v417 = vld [vmem:[#allocation5 + $0xb08] sm:$0xff]
    %v418 = vld [vmem:[#allocation5 + $0xb10] sm:$0xff]
    %v419 = vld [vmem:[#allocation5 + $0xb18] sm:$0xff]
    %v420 = vld [vmem:[#allocation5 + $0xb20] sm:$0xff]
    %v421 = vld [vmem:[#allocation5 + $0xb28] sm:$0xff]
    %v422 = vld [vmem:[#allocation5 + $0xb30] sm:$0xff]
    %v423 = vld [vmem:[#allocation5 + $0xb38] sm:$0xff]
    %v424 = vld [vmem:[#allocation5 + $0xb40] sm:$0xff]
    %v425 = vld [vmem:[#allocation5 + $0xb48] sm:$0xff]
    %v426 = vld [vmem:[#allocation5 + $0xb50] sm:$0xff]
    %v427 = vld [vmem:[#allocation5 + $0xb58] sm:$0xff]
    %v428 = vld [vmem:[#allocation5 + $0xb60] sm:$0xff]
    %v429 = vld [vmem:[#allocation5 + $0xb68] sm:$0xff]
    %v430 = vld [vmem:[#allocation5 + $0xb70] sm:$0xff]
    %v431 = vld [vmem:[#allocation5 + $0xb78] sm:$0xff]
    %v432 = vld [vmem:[#allocation5 + $0xb80] sm:$0xff]
    %v433 = vld [vmem:[#allocation5 + $0xb88] sm:$0xff]
    %v434 = vld [vmem:[#allocation5 + $0xb90] sm:$0xff]
    %v435 = vld [vmem:[#allocation5 + $0xb98] sm:$0xff]
    %v436 = vld [vmem:[#allocation5 + $0xba0] sm:$0xff]
    %v437 = vld [vmem:[#allocation5 + $0xba8] sm:$0xff]
    %v438 = vld [vmem:[#allocation5 + $0xbb0] sm:$0xff]
    %v439 = vld [vmem:[#allocation5 + $0xbb8] sm:$0xff]
    %v440 = vld [vmem:[#allocation5 + $0xbc0] sm:$0xff]
    %v441 = vld [vmem:[#allocation5 + $0xbc8] sm:$0xff]
    %v442 = vld [vmem:[#allocation5 + $0xbd0] sm:$0xff]
    %v443 = vld [vmem:[#allocation5 + $0xbd8] sm:$0xff]
    %v444 = vld [vmem:[#allocation5 + $0xbe0] sm:$0xff]
    %v445 = vld [vmem:[#allocation5 + $0xbe8] sm:$0xff]
    %v446 = vld [vmem:[#allocation5 + $0xbf0] sm:$0xff]
    %v447 = vld [vmem:[#allocation5 + $0xbf8] sm:$0xff]
    %v448 = vld [vmem:[#allocation5 + $0xc00] sm:$0xff]
    %v449 = vld [vmem:[#allocation5 + $0xc08] sm:$0xff]
    %v450 = vld [vmem:[#allocation5 + $0xc10] sm:$0xff]
    %v451 = vld [vmem:[#allocation5 + $0xc18] sm:$0xff]
    %v452 = vld [vmem:[#allocation5 + $0xc20] sm:$0xff]
    %v453 = vld [vmem:[#allocation5 + $0xc28] sm:$0xff]
    %v454 = vld [vmem:[#allocation5 + $0xc30] sm:$0xff]
    %v455 = vld [vmem:[#allocation5 + $0xc38] sm:$0xff]
    %v456 = vld [vmem:[#allocation5 + $0xc40] sm:$0xff]
    %v457 = vld [vmem:[#allocation5 + $0xc48] sm:$0xff]
    %v458 = vld [vmem:[#allocation5 + $0xc50] sm:$0xff]
    %v459 = vld [vmem:[#allocation5 + $0xc58] sm:$0xff]
    %v460 = vld [vmem:[#allocation5 + $0xc60] sm:$0xff]
    %v461 = vld [vmem:[#allocation5 + $0xc68] sm:$0xff]
    %v462 = vld [vmem:[#allocation5 + $0xc70] sm:$0xff]
    %v463 = vld [vmem:[#allocation5 + $0xc78] sm:$0xff]
    %v464 = vld [vmem:[#allocation5 + $0xc80] sm:$0xff]
    %v465 = vld [vmem:[#allocation5 + $0xc88] sm:$0xff]
    %v466 = vld [vmem:[#allocation5 + $0xc90] sm:$0xff]
    %v467 = vld [vmem:[#allocation5 + $0xc98] sm:$0xff]
    %v468 = vld [vmem:[#allocation5 + $0xca0] sm:$0xff]
    %v469 = vld [vmem:[#allocation5 + $0xca8] sm:$0xff]
    %v470 = vld [vmem:[#allocation5 + $0xcb0] sm:$0xff]
    %v471 = vld [vmem:[#allocation5 + $0xcb8] sm:$0xff]
    %v472 = vld [vmem:[#allocation5 + $0xcc0] sm:$0xff]
    %v473 = vld [vmem:[#allocation5 + $0xcc8] sm:$0xff]
    %v474 = vld [vmem:[#allocation5 + $0xcd0] sm:$0xff]
    %v475 = vld [vmem:[#allocation5 + $0xcd8] sm:$0xff]
    %v476 = vld [vmem:[#allocation5 + $0xce0] sm:$0xff]
    %v477 = vld [vmem:[#allocation5 + $0xce8] sm:$0xff]
    %v478 = vld [vmem:[#allocation5 + $0xcf0] sm:$0xff]
    %v479 = vld [vmem:[#allocation5 + $0xcf8] sm:$0xff]
    %v480 = vld [vmem:[#allocation5 + $0xd00] sm:$0xff]
    %v481 = vld [vmem:[#allocation5 + $0xd08] sm:$0xff]
    %v482 = vld [vmem:[#allocation5 + $0xd10] sm:$0xff]
    %v483 = vld [vmem:[#allocation5 + $0xd18] sm:$0xff]
    %v484 = vld [vmem:[#allocation5 + $0xd20] sm:$0xff]
    %v485 = vld [vmem:[#allocation5 + $0xd28] sm:$0xff]
    %v486 = vld [vmem:[#allocation5 + $0xd30] sm:$0xff]
    %v487 = vld [vmem:[#allocation5 + $0xd38] sm:$0xff]
    %v488 = vld [vmem:[#allocation5 + $0xd40] sm:$0xff]
    %v489 = vld [vmem:[#allocation5 + $0xd48] sm:$0xff]
    %v490 = vld [vmem:[#allocation5 + $0xd50] sm:$0xff]
    %v491 = vld [vmem:[#allocation5 + $0xd58] sm:$0xff]
    %v492 = vld [vmem:[#allocation5 + $0xd60] sm:$0xff]
    %v493 = vld [vmem:[#allocation5 + $0xd68] sm:$0xff]
    %v494 = vld [vmem:[#allocation5 + $0xd70] sm:$0xff]
    %v495 = vld [vmem:[#allocation5 + $0xd78] sm:$0xff]
    %496 = vmatprep.subr.mxu0 %v200
    %497 = vmatpush1.msra.mxu0 %v199
    %498 = vmatprep.subr.mxu0 %v191
    %499 = vmatpush1.msra.mxu0 %v190
    %500 = vmatprep.subr.mxu0 %v182
    %501 = vmatpush1.msra.mxu0 %v181
    %502 = vmatprep.subr.mxu0 %v173
    %503 = vmatpush1.msra.mxu0 %v172
    %504 = vmatprep.subr.mxu0 %v164
    %505 = vmatpush1.msra.mxu0 %v163
    %506 = vmatprep.subr.mxu0 %v155
    %507 = vmatpush1.msra.mxu0 %v154
    %508 = vmatprep.subr.mxu0 %v146
    %509 = vmatpush1.msra.mxu0 %v145
    %510 = vmatprep.subr.mxu0 %v137
    %511 = vmatpush1.msra.mxu0 %v136
    %512 = vmatprep.subr.mxu0 %v128
    %513 = vmatpush1.msra.mxu0 %v127
    %514 = vmatprep.subr.mxu0 %v119
    %515 = vmatpush1.msra.mxu0 %v118
    %516 = vmatprep.subr.mxu0 %v110
    %517 = vmatpush1.msra.mxu0 %v109
    %518 = vmatprep.subr.mxu0 %v101
    %519 = vmatpush1.msra.mxu0 %v100
    %520 = vmatprep.subr.mxu0 %v92
    %521 = vmatpush1.msra.mxu0 %v91
    %522 = vmatprep.subr.mxu0 %v83
    %523 = vmatpush1.msra.mxu0 %v82
    %524 = vmatprep.subr.mxu0 %v74
    %525 = vmatpush1.msra.mxu0 %v73
    %526 = vmatprep.subr.mxu0 %v65
    %527 = vmatpush1.msra.mxu0 %v64
    %528 = vmatprep.subr.mxu0 %v344
    %529 = vmatpush2.msra.mxu0 %v343
    %530 = vmatprep.subr.mxu0 %v335
    %531 = vmatpush2.msra.mxu0 %v334
    %532 = vmatprep.subr.mxu0 %v326
    %533 = vmatpush2.msra.mxu0 %v325
    %534 = vmatprep.subr.mxu0 %v317
    %535 = vmatpush2.msra.mxu0 %v316
    %536 = vmatprep.subr.mxu0 %v308
    %537 = vmatpush2.msra.mxu0 %v307
    %538 = vmatprep.subr.mxu0 %v299
    %539 = vmatpush2.msra.mxu0 %v298
    %540 = vmatprep.subr.mxu0 %v290
    %541 = vmatpush2.msra.mxu0 %v289
    %542 = vmatprep.subr.mxu0 %v281
    %543 = vmatpush2.msra.mxu0 %v280
    %544 = vmatprep.subr.mxu0 %v272
    %545 = vmatpush2.msra.mxu0 %v271
    %546 = vmatprep.subr.mxu0 %v263
    %547 = vmatpush2.msra.mxu0 %v262
    %548 = vmatprep.subr.mxu0 %v254
    %549 = vmatpush2.msra.mxu0 %v253
    %550 = vmatprep.subr.mxu0 %v245
    %551 = vmatpush2.msra.mxu0 %v244
    %552 = vmatprep.subr.mxu0 %v236
    %553 = vmatpush2.msra.mxu0 %v235
    %554 = vmatprep.subr.mxu0 %v227
    %555 = vmatpush2.msra.mxu0 %v226
    %556 = vmatprep.subr.mxu0 %v218
    %557 = vmatpush2.msra.mxu0 %v217
    %558 = vmatprep.subr.mxu0 %v209
    %559 = vmatpush2.msra.mxu0 %v208
    %560 = vmatprep.mubr.f32.mxu0 %v41
    %561 = vmatmul.mubr.f32.gmra.mxu0 %v40
    %v562 = vpop.f32.mrf.mxu0
    %v563 = vadd.f32 0.0, %v562
    %v564 = vpop.f32.mrf.mxu0
    %v565 = vadd.f32 0.0, %v564
    %566 = vmatprep.mubr.f32.mxu0 %v44
    %567 = vmatmul.mubr.f32.gmra.mxu0 %v43
    %v568 = vpop.f32.mrf.mxu0
    %v569 = vadd.f32 0.0, %v568
    %v570 = vpop.f32.mrf.mxu0
    %v571 = vadd.f32 0.0, %v570
    %572 = vmatprep.mubr.f32.mxu0 %v47
    %573 = vmatmul.mubr.f32.gmra.mxu0 %v46
    %v574 = vpop.f32.mrf.mxu0
    %v575 = vadd.f32 0.0, %v574
    %v576 = vpop.f32.mrf.mxu0
    %v577 = vadd.f32 0.0, %v576
    %578 = vmatprep.mubr.f32.mxu0 %v50
    %579 = vmatmul.mubr.f32.gmra.mxu0 %v49
    %v580 = vpop.f32.mrf.mxu0
    %v581 = vadd.f32 0.0, %v580
    %v582 = vpop.f32.mrf.mxu0
    %v583 = vadd.f32 0.0, %v582
    %584 = vmatprep.mubr.f32.mxu0 %v53
    %585 = vmatmul.mubr.f32.gmra.mxu0 %v52
    %v586 = vpop.f32.mrf.mxu0
    %v587 = vadd.f32 0.0, %v586
    %v588 = vpop.f32.mrf.mxu0
    %v589 = vadd.f32 0.0, %v588
    %590 = vmatprep.mubr.f32.mxu0 %v56
    %591 = vmatmul.mubr.f32.gmra.mxu0 %v55
    %v592 = vpop.f32.mrf.mxu0
    %v593 = vadd.f32 0.0, %v592
    %v594 = vpop.f32.mrf.mxu0
    %v595 = vadd.f32 0.0, %v594
    %596 = vmatprep.mubr.f32.mxu0 %v59
    %597 = vmatmul.mubr.f32.gmra.mxu0 %v58
    %v598 = vpop.f32.mrf.mxu0
    %v599 = vadd.f32 0.0, %v598
    %v600 = vpop.f32.mrf.mxu0
    %v601 = vadd.f32 0.0, %v600
    %602 = vmatprep.mubr.f32.mxu0 %v62
    %603 = vmatmul.mubr.f32.gmra.mxu0 %v61
    %v604 = vpop.f32.mrf.mxu0
    %v605 = vadd.f32 0.0, %v604
    %v606 = vpop.f32.mrf.mxu0
    %v607 = vadd.f32 0.0, %v606
    %608 = vdwg.mxu0
    %609 = vmatprep.subr.mxu0 %v488
    %610 = vmatpush1.msra.mxu0 %v487
    %611 = vmatprep.subr.mxu0 %v479
    %612 = vmatpush1.msra.mxu0 %v478
    %613 = vmatprep.subr.mxu0 %v470
    %614 = vmatpush1.msra.mxu0 %v469
    %615 = vmatprep.subr.mxu0 %v461
    %616 = vmatpush1.msra.mxu0 %v460
    %617 = vmatprep.subr.mxu0 %v452
    %618 = vmatpush1.msra.mxu0 %v451
    %619 = vmatprep.subr.mxu0 %v443
    %620 = vmatpush1.msra.mxu0 %v442
    %621 = vmatprep.subr.mxu0 %v434
    %622 = vmatpush1.msra.mxu0 %v433
    %623 = vmatprep.subr.mxu0 %v425
    %624 = vmatpush1.msra.mxu0 %v424
    %625 = vmatprep.subr.mxu0 %v416
    %626 = vmatpush1.msra.mxu0 %v415
    %627 = vmatprep.subr.mxu0 %v407
    %628 = vmatpush1.msra.mxu0 %v406
    %629 = vmatprep.subr.mxu0 %v398
    %630 = vmatpush1.msra.mxu0 %v397
    %631 = vmatprep.subr.mxu0 %v389
    %632 = vmatpush1.msra.mxu0 %v388
    %633 = vmatprep.subr.mxu0 %v380
    %634 = vmatpush1.msra.mxu0 %v379
    %635 = vmatprep.subr.mxu0 %v371
    %636 = vmatpush1.msra.mxu0 %v370
    %637 = vmatprep.subr.mxu0 %v362
    %638 = vmatpush1.msra.mxu0 %v361
    %639 = vmatprep.subr.mxu0 %v353
    %640 = vmatpush1.msra.mxu0 %v352
    %641 = vmatprep.subr.mxu0 0.0
    %642 = vmatpush2.msra.mxu0 0.0
    %643 = vmatprep.subr.mxu0 0.0
    %644 = vmatpush2.msra.mxu0 0.0
    %645 = vmatprep.subr.mxu0 0.0
    %646 = vmatpush2.msra.mxu0 0.0
    %647 = vmatprep.subr.mxu0 0.0
    %648 = vmatpush2.msra.mxu0 0.0
    %649 = vmatprep.subr.mxu0 0.0
    %650 = vmatpush2.msra.mxu0 0.0
    %651 = vmatprep.subr.mxu0 0.0
    %652 = vmatpush2.msra.mxu0 0.0
    %653 = vmatprep.subr.mxu0 0.0
    %654 = vmatpush2.msra.mxu0 0.0
    %655 = vmatprep.subr.mxu0 0.0
    %656 = vmatpush2.msra.mxu0 0.0
    %657 = vmatprep.subr.mxu0 0.0
    %658 = vmatpush2.msra.mxu0 0.0
    %659 = vmatprep.subr.mxu0 0.0
    %660 = vmatpush2.msra.mxu0 0.0
    %661 = vmatprep.subr.mxu0 0.0
    %662 = vmatpush2.msra.mxu0 0.0
    %663 = vmatprep.subr.mxu0 0.0
    %664 = vmatpush2.msra.mxu0 0.0
    %665 = vmatprep.subr.mxu0 0.0
    %666 = vmatpush2.msra.mxu0 0.0
    %667 = vmatprep.subr.mxu0 0.0
    %668 = vmatpush2.msra.mxu0 0.0
    %669 = vmatprep.subr.mxu0 0.0
    %670 = vmatpush2.msra.mxu0 0.0
    %671 = vmatprep.subr.mxu0 0.0
    %672 = vmatpush2.msra.mxu0 0.0
    %673 = vmatprep.mubr.f32.mxu0 0.0
    %674 = vmatmul.mubr.f32.gmra.mxu0 %v42
    %v675 = vpop.f32.mrf.mxu0
    %v676 = vadd.f32 %v563, %v675
    %v677 = vpop.f32.mrf.mxu0
    %v678 = vadd.f32 %v565, %v677
    %679 = vmatprep.mubr.f32.mxu0 0.0
    %680 = vmatmul.mubr.f32.gmra.mxu0 %v45
    %v681 = vpop.f32.mrf.mxu0
    %v682 = vadd.f32 %v569, %v681
    %v683 = vpop.f32.mrf.mxu0
    %v684 = vadd.f32 %v571, %v683
    %685 = vmatprep.mubr.f32.mxu0 0.0
    %686 = vmatmul.mubr.f32.gmra.mxu0 %v48
    %v687 = vpop.f32.mrf.mxu0
    %v688 = vadd.f32 %v575, %v687
    %v689 = vpop.f32.mrf.mxu0
    %v690 = vadd.f32 %v577, %v689
    %691 = vmatprep.mubr.f32.mxu0 0.0
    %692 = vmatmul.mubr.f32.gmra.mxu0 %v51
    %v693 = vpop.f32.mrf.mxu0
    %v694 = vadd.f32 %v581, %v693
    %v695 = vpop.f32.mrf.mxu0
    %v696 = vadd.f32 %v583, %v695
    %697 = vmatprep.mubr.f32.mxu0 0.0
    %698 = vmatmul.mubr.f32.gmra.mxu0 %v54
    %v699 = vpop.f32.mrf.mxu0
    %v700 = vadd.f32 %v587, %v699
    %v701 = vpop.f32.mrf.mxu0
    %v702 = vadd.f32 %v589, %v701
    %703 = vmatprep.mubr.f32.mxu0 0.0
    %704 = vmatmul.mubr.f32.gmra.mxu0 %v57
    %v705 = vpop.f32.mrf.mxu0
    %v706 = vadd.f32 %v593, %v705
    %v707 = vpop.f32.mrf.mxu0
    %v708 = vadd.f32 %v595, %v707
    %709 = vmatprep.mubr.f32.mxu0 0.0
    %710 = vmatmul.mubr.f32.gmra.mxu0 %v60
    %v711 = vpop.f32.mrf.mxu0
    %v712 = vadd.f32 %v599, %v711
    %v713 = vpop.f32.mrf.mxu0
    %v714 = vadd.f32 %v601, %v713
    %715 = vmatprep.mubr.f32.mxu0 0.0
    %716 = vmatmul.mubr.f32.gmra.mxu0 %v63
    %v717 = vpop.f32.mrf.mxu0
    %v718 = vadd.f32 %v605, %v717
    %v719 = vpop.f32.mrf.mxu0
    %v720 = vadd.f32 %v607, %v719
    %721 = vdwg.mxu0
    %722 = vmatprep.subr.mxu0 %v202
    %723 = vmatpush1.msra.mxu0 %v201
    %724 = vmatprep.subr.mxu0 %v193
    %725 = vmatpush1.msra.mxu0 %v192
    %726 = vmatprep.subr.mxu0 %v184
    %727 = vmatpush1.msra.mxu0 %v183
    %728 = vmatprep.subr.mxu0 %v175
    %729 = vmatpush1.msra.mxu0 %v174
    %730 = vmatprep.subr.mxu0 %v166
    %731 = vmatpush1.msra.mxu0 %v165
    %732 = vmatprep.subr.mxu0 %v157
    %733 = vmatpush1.msra.mxu0 %v156
    %734 = vmatprep.subr.mxu0 %v148
    %735 = vmatpush1.msra.mxu0 %v147
    %736 = vmatprep.subr.mxu0 %v139
    %737 = vmatpush1.msra.mxu0 %v138
    %738 = vmatprep.subr.mxu0 %v130
    %739 = vmatpush1.msra.mxu0 %v129
    %740 = vmatprep.subr.mxu0 %v121
    %741 = vmatpush1.msra.mxu0 %v120
    %742 = vmatprep.subr.mxu0 %v112
    %743 = vmatpush1.msra.mxu0 %v111
    %744 = vmatprep.subr.mxu0 %v103
    %745 = vmatpush1.msra.mxu0 %v102
    %746 = vmatprep.subr.mxu0 %v94
    %747 = vmatpush1.msra.mxu0 %v93
    %748 = vmatprep.subr.mxu0 %v85
    %749 = vmatpush1.msra.mxu0 %v84
    %750 = vmatprep.subr.mxu0 %v76
    %751 = vmatpush1.msra.mxu0 %v75
    %752 = vmatprep.subr.mxu0 %v67
    %753 = vmatpush1.msra.mxu0 %v66
    %754 = vmatprep.subr.mxu0 %v346
    %755 = vmatpush2.msra.mxu0 %v345
    %756 = vmatprep.subr.mxu0 %v337
    %757 = vmatpush2.msra.mxu0 %v336
    %758 = vmatprep.subr.mxu0 %v328
    %759 = vmatpush2.msra.mxu0 %v327
    %760 = vmatprep.subr.mxu0 %v319
    %761 = vmatpush2.msra.mxu0 %v318
    %762 = vmatprep.subr.mxu0 %v310
    %763 = vmatpush2.msra.mxu0 %v309
    %764 = vmatprep.subr.mxu0 %v301
    %765 = vmatpush2.msra.mxu0 %v300
    %766 = vmatprep.subr.mxu0 %v292
    %767 = vmatpush2.msra.mxu0 %v291
    %768 = vmatprep.subr.mxu0 %v283
    %769 = vmatpush2.msra.mxu0 %v282
    %770 = vmatprep.subr.mxu0 %v274
    %771 = vmatpush2.msra.mxu0 %v273
    %772 = vmatprep.subr.mxu0 %v265
    %773 = vmatpush2.msra.mxu0 %v264
    %774 = vmatprep.subr.mxu0 %v256
    %775 = vmatpush2.msra.mxu0 %v255
    %776 = vmatprep.subr.mxu0 %v247
    %777 = vmatpush2.msra.mxu0 %v246
    %778 = vmatprep.subr.mxu0 %v238
    %779 = vmatpush2.msra.mxu0 %v237
    %780 = vmatprep.subr.mxu0 %v229
    %781 = vmatpush2.msra.mxu0 %v228
    %782 = vmatprep.subr.mxu0 %v220
    %783 = vmatpush2.msra.mxu0 %v219
    %784 = vmatprep.subr.mxu0 %v211
    %785 = vmatpush2.msra.mxu0 %v210
    %786 = vmatprep.mubr.f32.mxu0 %v41
    %787 = vmatmul.mubr.f32.gmra.mxu0 %v40
    %v788 = vpop.f32.mrf.mxu0
    %v789 = vadd.f32 0.0, %v788
    %v790 = vpop.f32.mrf.mxu0
    %v791 = vadd.f32 0.0, %v790
    %792 = vmatprep.mubr.f32.mxu0 %v44
    %793 = vmatmul.mubr.f32.gmra.mxu0 %v43
    %v794 = vpop.f32.mrf.mxu0
    %v795 = vadd.f32 0.0, %v794
    %v796 = vpop.f32.mrf.mxu0
    %v797 = vadd.f32 0.0, %v796
    %798 = vmatprep.mubr.f32.mxu0 %v47
    %799 = vmatmul.mubr.f32.gmra.mxu0 %v46
    %v800 = vpop.f32.mrf.mxu0
    %v801 = vadd.f32 0.0, %v800
    %v802 = vpop.f32.mrf.mxu0
    %v803 = vadd.f32 0.0, %v802
    %804 = vmatprep.mubr.f32.mxu0 %v50
    %805 = vmatmul.mubr.f32.gmra.mxu0 %v49
    %v806 = vpop.f32.mrf.mxu0
    %v807 = vadd.f32 0.0, %v806
    %v808 = vpop.f32.mrf.mxu0
    %v809 = vadd.f32 0.0, %v808
    %810 = vmatprep.mubr.f32.mxu0 %v53
    %811 = vmatmul.mubr.f32.gmra.mxu0 %v52
    %v812 = vpop.f32.mrf.mxu0
    %v813 = vadd.f32 0.0, %v812
    %v814 = vpop.f32.mrf.mxu0
    %v815 = vadd.f32 0.0, %v814
    %816 = vmatprep.mubr.f32.mxu0 %v56
    %817 = vmatmul.mubr.f32.gmra.mxu0 %v55
    %v818 = vpop.f32.mrf.mxu0
    %v819 = vadd.f32 0.0, %v818
    %v820 = vpop.f32.mrf.mxu0
    %v821 = vadd.f32 0.0, %v820
    %822 = vmatprep.mubr.f32.mxu0 %v59
    %823 = vmatmul.mubr.f32.gmra.mxu0 %v58
    %v824 = vpop.f32.mrf.mxu0
    %v825 = vadd.f32 0.0, %v824
    %v826 = vpop.f32.mrf.mxu0
    %v827 = vadd.f32 0.0, %v826
    %828 = vmatprep.mubr.f32.mxu0 %v62
    %829 = vmatmul.mubr.f32.gmra.mxu0 %v61
    %v830 = vpop.f32.mrf.mxu0
    %v831 = vadd.f32 0.0, %v830
    %v832 = vpop.f32.mrf.mxu0
    %v833 = vadd.f32 0.0, %v832
    %834 = vdwg.mxu0
    %835 = vmatprep.subr.mxu0 %v490
    %836 = vmatpush1.msra.mxu0 %v489
    %837 = vmatprep.subr.mxu0 %v481
    %838 = vmatpush1.msra.mxu0 %v480
    %839 = vmatprep.subr.mxu0 %v472
    %840 = vmatpush1.msra.mxu0 %v471
    %841 = vmatprep.subr.mxu0 %v463
    %842 = vmatpush1.msra.mxu0 %v462
    %843 = vmatprep.subr.mxu0 %v454
    %844 = vmatpush1.msra.mxu0 %v453
    %845 = vmatprep.subr.mxu0 %v445
    %846 = vmatpush1.msra.mxu0 %v444
    %847 = vmatprep.subr.mxu0 %v436
    %848 = vmatpush1.msra.mxu0 %v435
    %849 = vmatprep.subr.mxu0 %v427
    %850 = vmatpush1.msra.mxu0 %v426
    %851 = vmatprep.subr.mxu0 %v418
    %852 = vmatpush1.msra.mxu0 %v417
    %853 = vmatprep.subr.mxu0 %v409
    %854 = vmatpush1.msra.mxu0 %v408
    %855 = vmatprep.subr.mxu0 %v400
    %856 = vmatpush1.msra.mxu0 %v399
    %857 = vmatprep.subr.mxu0 %v391
    %858 = vmatpush1.msra.mxu0 %v390
    %859 = vmatprep.subr.mxu0 %v382
    %860 = vmatpush1.msra.mxu0 %v381
    %861 = vmatprep.subr.mxu0 %v373
    %862 = vmatpush1.msra.mxu0 %v372
    %863 = vmatprep.subr.mxu0 %v364
    %864 = vmatpush1.msra.mxu0 %v363
    %865 = vmatprep.subr.mxu0 %v355
    %866 = vmatpush1.msra.mxu0 %v354
    %867 = vmatprep.subr.mxu0 0.0
    %868 = vmatpush2.msra.mxu0 0.0
    %869 = vmatprep.subr.mxu0 0.0
    %870 = vmatpush2.msra.mxu0 0.0
    %871 = vmatprep.subr.mxu0 0.0
    %872 = vmatpush2.msra.mxu0 0.0
    %873 = vmatprep.subr.mxu0 0.0
    %874 = vmatpush2.msra.mxu0 0.0
    %875 = vmatprep.subr.mxu0 0.0
    %876 = vmatpush2.msra.mxu0 0.0
    %877 = vmatprep.subr.mxu0 0.0
    %878 = vmatpush2.msra.mxu0 0.0
    %879 = vmatprep.subr.mxu0 0.0
    %880 = vmatpush2.msra.mxu0 0.0
    %881 = vmatprep.subr.mxu0 0.0
    %882 = vmatpush2.msra.mxu0 0.0
    %883 = vmatprep.subr.mxu0 0.0
    %884 = vmatpush2.msra.mxu0 0.0
    %885 = vmatprep.subr.mxu0 0.0
    %886 = vmatpush2.msra.mxu0 0.0
    %887 = vmatprep.subr.mxu0 0.0
    %888 = vmatpush2.msra.mxu0 0.0
    %889 = vmatprep.subr.mxu0 0.0
    %890 = vmatpush2.msra.mxu0 0.0
    %891 = vmatprep.subr.mxu0 0.0
    %892 = vmatpush2.msra.mxu0 0.0
    %893 = vmatprep.subr.mxu0 0.0
    %894 = vmatpush2.msra.mxu0 0.0
    %895 = vmatprep.subr.mxu0 0.0
    %896 = vmatpush2.msra.mxu0 0.0
    %897 = vmatprep.subr.mxu0 0.0
    %898 = vmatpush2.msra.mxu0 0.0
    %899 = vmatprep.mubr.f32.mxu0 0.0
    %900 = vmatmul.mubr.f32.gmra.mxu0 %v42
    %v901 = vpop.f32.mrf.mxu0
    %v902 = vadd.f32 %v789, %v901
    %v903 = vpop.f32.mrf.mxu0
    %v904 = vadd.f32 %v791, %v903
    %905 = vmatprep.mubr.f32.mxu0 0.0
    %906 = vmatmul.mubr.f32.gmra.mxu0 %v45
    %v907 = vpop.f32.mrf.mxu0
    %v908 = vadd.f32 %v795, %v907
    %v909 = vpop.f32.mrf.mxu0
    %v910 = vadd.f32 %v797, %v909
    %911 = vmatprep.mubr.f32.mxu0 0.0
    %912 = vmatmul.mubr.f32.gmra.mxu0 %v48
    %v913 = vpop.f32.mrf.mxu0
    %v914 = vadd.f32 %v801, %v913
    %v915 = vpop.f32.mrf.mxu0
    %v916 = vadd.f32 %v803, %v915
    %917 = vmatprep.mubr.f32.mxu0 0.0
    %918 = vmatmul.mubr.f32.gmra.mxu0 %v51
    %v919 = vpop.f32.mrf.mxu0
    %v920 = vadd.f32 %v807, %v919
    %v921 = vpop.f32.mrf.mxu0
    %v922 = vadd.f32 %v809, %v921
    %923 = vmatprep.mubr.f32.mxu0 0.0
    %924 = vmatmul.mubr.f32.gmra.mxu0 %v54
    %v925 = vpop.f32.mrf.mxu0
    %v926 = vadd.f32 %v813, %v925
    %v927 = vpop.f32.mrf.mxu0
    %v928 = vadd.f32 %v815, %v927
    %929 = vmatprep.mubr.f32.mxu0 0.0
    %930 = vmatmul.mubr.f32.gmra.mxu0 %v57
    %v931 = vpop.f32.mrf.mxu0
    %v932 = vadd.f32 %v819, %v931
    %v933 = vpop.f32.mrf.mxu0
    %v934 = vadd.f32 %v821, %v933
    %935 = vmatprep.mubr.f32.mxu0 0.0
    %936 = vmatmul.mubr.f32.gmra.mxu0 %v60
    %v937 = vpop.f32.mrf.mxu0
    %v938 = vadd.f32 %v825, %v937
    %v939 = vpop.f32.mrf.mxu0
    %v940 = vadd.f32 %v827, %v939
    %941 = vmatprep.mubr.f32.mxu0 0.0
    %942 = vmatmul.mubr.f32.gmra.mxu0 %v63
    %v943 = vpop.f32.mrf.mxu0
    %v944 = vadd.f32 %v831, %v943
    %v945 = vpop.f32.mrf.mxu0
    %v946 = vadd.f32 %v833, %v945
    %947 = vdwg.mxu0
    %948 = vmatprep.subr.mxu0 %v204
    %949 = vmatpush1.msra.mxu0 %v203
    %950 = vmatprep.subr.mxu0 %v195
    %951 = vmatpush1.msra.mxu0 %v194
    %952 = vmatprep.subr.mxu0 %v186
    %953 = vmatpush1.msra.mxu0 %v185
    %954 = vmatprep.subr.mxu0 %v177
    %955 = vmatpush1.msra.mxu0 %v176
    %956 = vmatprep.subr.mxu0 %v168
    %957 = vmatpush1.msra.mxu0 %v167
    %958 = vmatprep.subr.mxu0 %v159
    %959 = vmatpush1.msra.mxu0 %v158
    %960 = vmatprep.subr.mxu0 %v150
    %961 = vmatpush1.msra.mxu0 %v149
    %962 = vmatprep.subr.mxu0 %v141
    %963 = vmatpush1.msra.mxu0 %v140
    %964 = vmatprep.subr.mxu0 %v132
    %965 = vmatpush1.msra.mxu0 %v131
    %966 = vmatprep.subr.mxu0 %v123
    %967 = vmatpush1.msra.mxu0 %v122
    %968 = vmatprep.subr.mxu0 %v114
    %969 = vmatpush1.msra.mxu0 %v113
    %970 = vmatprep.subr.mxu0 %v105
    %971 = vmatpush1.msra.mxu0 %v104
    %972 = vmatprep.subr.mxu0 %v96
    %973 = vmatpush1.msra.mxu0 %v95
    %974 = vmatprep.subr.mxu0 %v87
    %975 = vmatpush1.msra.mxu0 %v86
    %976 = vmatprep.subr.mxu0 %v78
    %977 = vmatpush1.msra.mxu0 %v77
    %978 = vmatprep.subr.mxu0 %v69
    %979 = vmatpush1.msra.mxu0 %v68
    %980 = vmatprep.subr.mxu0 %v348
    %981 = vmatpush2.msra.mxu0 %v347
    %982 = vmatprep.subr.mxu0 %v339
    %983 = vmatpush2.msra.mxu0 %v338
    %984 = vmatprep.subr.mxu0 %v330
    %985 = vmatpush2.msra.mxu0 %v329
    %986 = vmatprep.subr.mxu0 %v321
    %987 = vmatpush2.msra.mxu0 %v320
    %988 = vmatprep.subr.mxu0 %v312
    %989 = vmatpush2.msra.mxu0 %v311
    %990 = vmatprep.subr.mxu0 %v303
    %991 = vmatpush2.msra.mxu0 %v302
    %992 = vmatprep.subr.mxu0 %v294
    %993 = vmatpush2.msra.mxu0 %v293
    %994 = vmatprep.subr.mxu0 %v285
    %995 = vmatpush2.msra.mxu0 %v284
    %996 = vmatprep.subr.mxu0 %v276
    %997 = vmatpush2.msra.mxu0 %v275
    %998 = vmatprep.subr.mxu0 %v267
    %999 = vmatpush2.msra.mxu0 %v266
    %1000 = vmatprep.subr.mxu0 %v258
    %1001 = vmatpush2.msra.mxu0 %v257
    %1002 = vmatprep.subr.mxu0 %v249
    %1003 = vmatpush2.msra.mxu0 %v248
    %1004 = vmatprep.subr.mxu0 %v240
    %1005 = vmatpush2.msra.mxu0 %v239
    %1006 = vmatprep.subr.mxu0 %v231
    %1007 = vmatpush2.msra.mxu0 %v230
    %1008 = vmatprep.subr.mxu0 %v222
    %1009 = vmatpush2.msra.mxu0 %v221
    %1010 = vmatprep.subr.mxu0 %v213
    %1011 = vmatpush2.msra.mxu0 %v212
    %1012 = vmatprep.mubr.f32.mxu0 %v41
    %1013 = vmatmul.mubr.f32.gmra.mxu0 %v40
    %v1014 = vpop.f32.mrf.mxu0
    %v1015 = vadd.f32 0.0, %v1014
    %v1016 = vpop.f32.mrf.mxu0
    %v1017 = vadd.f32 0.0, %v1016
    %1018 = vmatprep.mubr.f32.mxu0 %v44
    %1019 = vmatmul.mubr.f32.gmra.mxu0 %v43
    %v1020 = vpop.f32.mrf.mxu0
    %v1021 = vadd.f32 0.0, %v1020
    %v1022 = vpop.f32.mrf.mxu0
    %v1023 = vadd.f32 0.0, %v1022
    %1024 = vmatprep.mubr.f32.mxu0 %v47
    %1025 = vmatmul.mubr.f32.gmra.mxu0 %v46
    %v1026 = vpop.f32.mrf.mxu0
    %v1027 = vadd.f32 0.0, %v1026
    %v1028 = vpop.f32.mrf.mxu0
    %v1029 = vadd.f32 0.0, %v1028
    %1030 = vmatprep.mubr.f32.mxu0 %v50
    %1031 = vmatmul.mubr.f32.gmra.mxu0 %v49
    %v1032 = vpop.f32.mrf.mxu0
    %v1033 = vadd.f32 0.0, %v1032
    %v1034 = vpop.f32.mrf.mxu0
    %v1035 = vadd.f32 0.0, %v1034
    %1036 = vmatprep.mubr.f32.mxu0 %v53
    %1037 = vmatmul.mubr.f32.gmra.mxu0 %v52
    %v1038 = vpop.f32.mrf.mxu0
    %v1039 = vadd.f32 0.0, %v1038
    %v1040 = vpop.f32.mrf.mxu0
    %v1041 = vadd.f32 0.0, %v1040
    %1042 = vmatprep.mubr.f32.mxu0 %v56
    %1043 = vmatmul.mubr.f32.gmra.mxu0 %v55
    %v1044 = vpop.f32.mrf.mxu0
    %v1045 = vadd.f32 0.0, %v1044
    %v1046 = vpop.f32.mrf.mxu0
    %v1047 = vadd.f32 0.0, %v1046
    %1048 = vmatprep.mubr.f32.mxu0 %v59
    %1049 = vmatmul.mubr.f32.gmra.mxu0 %v58
    %v1050 = vpop.f32.mrf.mxu0
    %v1051 = vadd.f32 0.0, %v1050
    %v1052 = vpop.f32.mrf.mxu0
    %v1053 = vadd.f32 0.0, %v1052
    %1054 = vmatprep.mubr.f32.mxu0 %v62
    %1055 = vmatmul.mubr.f32.gmra.mxu0 %v61
    %v1056 = vpop.f32.mrf.mxu0
    %v1057 = vadd.f32 0.0, %v1056
    %v1058 = vpop.f32.mrf.mxu0
    %v1059 = vadd.f32 0.0, %v1058
    %1060 = vdwg.mxu0
    %1061 = vmatprep.subr.mxu0 %v492
    %1062 = vmatpush1.msra.mxu0 %v491
    %1063 = vmatprep.subr.mxu0 %v483
    %1064 = vmatpush1.msra.mxu0 %v482
    %1065 = vmatprep.subr.mxu0 %v474
    %1066 = vmatpush1.msra.mxu0 %v473
    %1067 = vmatprep.subr.mxu0 %v465
    %1068 = vmatpush1.msra.mxu0 %v464
    %1069 = vmatprep.subr.mxu0 %v456
    %1070 = vmatpush1.msra.mxu0 %v455
    %1071 = vmatprep.subr.mxu0 %v447
    %1072 = vmatpush1.msra.mxu0 %v446
    %1073 = vmatprep.subr.mxu0 %v438
    %1074 = vmatpush1.msra.mxu0 %v437
    %1075 = vmatprep.subr.mxu0 %v429
    %1076 = vmatpush1.msra.mxu0 %v428
    %1077 = vmatprep.subr.mxu0 %v420
    %1078 = vmatpush1.msra.mxu0 %v419
    %1079 = vmatprep.subr.mxu0 %v411
    %1080 = vmatpush1.msra.mxu0 %v410
    %1081 = vmatprep.subr.mxu0 %v402
    %1082 = vmatpush1.msra.mxu0 %v401
    %1083 = vmatprep.subr.mxu0 %v393
    %1084 = vmatpush1.msra.mxu0 %v392
    %1085 = vmatprep.subr.mxu0 %v384
    %1086 = vmatpush1.msra.mxu0 %v383
    %1087 = vmatprep.subr.mxu0 %v375
    %1088 = vmatpush1.msra.mxu0 %v374
    %1089 = vmatprep.subr.mxu0 %v366
    %1090 = vmatpush1.msra.mxu0 %v365
    %1091 = vmatprep.subr.mxu0 %v357
    %1092 = vmatpush1.msra.mxu0 %v356
    %1093 = vmatprep.subr.mxu0 0.0
    %1094 = vmatpush2.msra.mxu0 0.0
    %1095 = vmatprep.subr.mxu0 0.0
    %1096 = vmatpush2.msra.mxu0 0.0
    %1097 = vmatprep.subr.mxu0 0.0
    %1098 = vmatpush2.msra.mxu0 0.0
    %1099 = vmatprep.subr.mxu0 0.0
    %1100 = vmatpush2.msra.mxu0 0.0
    %1101 = vmatprep.subr.mxu0 0.0
    %1102 = vmatpush2.msra.mxu0 0.0
    %1103 = vmatprep.subr.mxu0 0.0
    %1104 = vmatpush2.msra.mxu0 0.0
    %1105 = vmatprep.subr.mxu0 0.0
    %1106 = vmatpush2.msra.mxu0 0.0
    %1107 = vmatprep.subr.mxu0 0.0
    %1108 = vmatpush2.msra.mxu0 0.0
    %1109 = vmatprep.subr.mxu0 0.0
    %1110 = vmatpush2.msra.mxu0 0.0
    %1111 = vmatprep.subr.mxu0 0.0
    %1112 = vmatpush2.msra.mxu0 0.0
    %1113 = vmatprep.subr.mxu0 0.0
    %1114 = vmatpush2.msra.mxu0 0.0
    %1115 = vmatprep.subr.mxu0 0.0
    %1116 = vmatpush2.msra.mxu0 0.0
    %1117 = vmatprep.subr.mxu0 0.0
    %1118 = vmatpush2.msra.mxu0 0.0
    %1119 = vmatprep.subr.mxu0 0.0
    %1120 = vmatpush2.msra.mxu0 0.0
    %1121 = vmatprep.subr.mxu0 0.0
    %1122 = vmatpush2.msra.mxu0 0.0
    %1123 = vmatprep.subr.mxu0 0.0
    %1124 = vmatpush2.msra.mxu0 0.0
    %1125 = vmatprep.mubr.f32.mxu0 0.0
    %1126 = vmatmul.mubr.f32.gmra.mxu0 %v42
    %v1127 = vpop.f32.mrf.mxu0
    %v1128 = vadd.f32 %v1015, %v1127
    %v1129 = vpop.f32.mrf.mxu0
    %v1130 = vadd.f32 %v1017, %v1129
    %1131 = vmatprep.mubr.f32.mxu0 0.0
    %1132 = vmatmul.mubr.f32.gmra.mxu0 %v45
    %v1133 = vpop.f32.mrf.mxu0
    %v1134 = vadd.f32 %v1021, %v1133
    %v1135 = vpop.f32.mrf.mxu0
    %v1136 = vadd.f32 %v1023, %v1135
    %1137 = vmatprep.mubr.f32.mxu0 0.0
    %1138 = vmatmul.mubr.f32.gmra.mxu0 %v48
    %v1139 = vpop.f32.mrf.mxu0
    %v1140 = vadd.f32 %v1027, %v1139
    %v1141 = vpop.f32.mrf.mxu0
    %v1142 = vadd.f32 %v1029, %v1141
    %1143 = vmatprep.mubr.f32.mxu0 0.0
    %1144 = vmatmul.mubr.f32.gmra.mxu0 %v51
    %v1145 = vpop.f32.mrf.mxu0
    %v1146 = vadd.f32 %v1033, %v1145
    %v1147 = vpop.f32.mrf.mxu0
    %v1148 = vadd.f32 %v1035, %v1147
    %1149 = vmatprep.mubr.f32.mxu0 0.0
    %1150 = vmatmul.mubr.f32.gmra.mxu0 %v54
    %v1151 = vpop.f32.mrf.mxu0
    %v1152 = vadd.f32 %v1039, %v1151
    %v1153 = vpop.f32.mrf.mxu0
    %v1154 = vadd.f32 %v1041, %v1153
    %1155 = vmatprep.mubr.f32.mxu0 0.0
    %1156 = vmatmul.mubr.f32.gmra.mxu0 %v57
    %v1157 = vpop.f32.mrf.mxu0
    %v1158 = vadd.f32 %v1045, %v1157
    %v1159 = vpop.f32.mrf.mxu0
    %v1160 = vadd.f32 %v1047, %v1159
    %1161 = vmatprep.mubr.f32.mxu0 0.0
    %1162 = vmatmul.mubr.f32.gmra.mxu0 %v60
    %v1163 = vpop.f32.mrf.mxu0
    %v1164 = vadd.f32 %v1051, %v1163
    %v1165 = vpop.f32.mrf.mxu0
    %v1166 = vadd.f32 %v1053, %v1165
    %1167 = vmatprep.mubr.f32.mxu0 0.0
    %1168 = vmatmul.mubr.f32.gmra.mxu0 %v63
    %v1169 = vpop.f32.mrf.mxu0
    %v1170 = vadd.f32 %v1057, %v1169
    %v1171 = vpop.f32.mrf.mxu0
    %v1172 = vadd.f32 %v1059, %v1171
    %1173 = vdwg.mxu0
    %1174 = vmatprep.subr.mxu0 %v206
    %1175 = vmatpush1.msra.mxu0 %v205
    %1176 = vmatprep.subr.mxu0 %v197
    %1177 = vmatpush1.msra.mxu0 %v196
    %1178 = vmatprep.subr.mxu0 %v188
    %1179 = vmatpush1.msra.mxu0 %v187
    %1180 = vmatprep.subr.mxu0 %v179
    %1181 = vmatpush1.msra.mxu0 %v178
    %1182 = vmatprep.subr.mxu0 %v170
    %1183 = vmatpush1.msra.mxu0 %v169
    %1184 = vmatprep.subr.mxu0 %v161
    %1185 = vmatpush1.msra.mxu0 %v160
    %1186 = vmatprep.subr.mxu0 %v152
    %1187 = vmatpush1.msra.mxu0 %v151
    %1188 = vmatprep.subr.mxu0 %v143
    %1189 = vmatpush1.msra.mxu0 %v142
    %1190 = vmatprep.subr.mxu0 %v134
    %1191 = vmatpush1.msra.mxu0 %v133
    %1192 = vmatprep.subr.mxu0 %v125
    %1193 = vmatpush1.msra.mxu0 %v124
    %1194 = vmatprep.subr.mxu0 %v116
    %1195 = vmatpush1.msra.mxu0 %v115
    %1196 = vmatprep.subr.mxu0 %v107
    %1197 = vmatpush1.msra.mxu0 %v106
    %1198 = vmatprep.subr.mxu0 %v98
    %1199 = vmatpush1.msra.mxu0 %v97
    %1200 = vmatprep.subr.mxu0 %v89
    %1201 = vmatpush1.msra.mxu0 %v88
    %1202 = vmatprep.subr.mxu0 %v80
    %1203 = vmatpush1.msra.mxu0 %v79
    %1204 = vmatprep.subr.mxu0 %v71
    %1205 = vmatpush1.msra.mxu0 %v70
    %1206 = vmatprep.subr.mxu0 %v350
    %1207 = vmatpush2.msra.mxu0 %v349
    %1208 = vmatprep.subr.mxu0 %v341
    %1209 = vmatpush2.msra.mxu0 %v340
    %1210 = vmatprep.subr.mxu0 %v332
    %1211 = vmatpush2.msra.mxu0 %v331
    %1212 = vmatprep.subr.mxu0 %v323
    %1213 = vmatpush2.msra.mxu0 %v322
    %1214 = vmatprep.subr.mxu0 %v314
    %1215 = vmatpush2.msra.mxu0 %v313
    %1216 = vmatprep.subr.mxu0 %v305
    %1217 = vmatpush2.msra.mxu0 %v304
    %1218 = vmatprep.subr.mxu0 %v296
    %1219 = vmatpush2.msra.mxu0 %v295
    %1220 = vmatprep.subr.mxu0 %v287
    %1221 = vmatpush2.msra.mxu0 %v286
    %1222 = vmatprep.subr.mxu0 %v278
    %1223 = vmatpush2.msra.mxu0 %v277
    %1224 = vmatprep.subr.mxu0 %v269
    %1225 = vmatpush2.msra.mxu0 %v268
    %1226 = vmatprep.subr.mxu0 %v260
    %1227 = vmatpush2.msra.mxu0 %v259
    %1228 = vmatprep.subr.mxu0 %v251
    %1229 = vmatpush2.msra.mxu0 %v250
    %1230 = vmatprep.subr.mxu0 %v242
    %1231 = vmatpush2.msra.mxu0 %v241
    %1232 = vmatprep.subr.mxu0 %v233
    %1233 = vmatpush2.msra.mxu0 %v232
    %1234 = vmatprep.subr.mxu0 %v224
    %1235 = vmatpush2.msra.mxu0 %v223
    %1236 = vmatprep.subr.mxu0 %v215
    %1237 = vmatpush2.msra.mxu0 %v214
    %1238 = vmatprep.mubr.f32.mxu0 %v41
    %1239 = vmatmul.mubr.f32.gmra.mxu0 %v40
    %v1240 = vpop.f32.mrf.mxu0
    %v1241 = vadd.f32 0.0, %v1240
    %v1242 = vpop.f32.mrf.mxu0
    %v1243 = vadd.f32 0.0, %v1242
    %1244 = vmatprep.mubr.f32.mxu0 %v44
    %1245 = vmatmul.mubr.f32.gmra.mxu0 %v43
    %v1246 = vpop.f32.mrf.mxu0
    %v1247 = vadd.f32 0.0, %v1246
    %v1248 = vpop.f32.mrf.mxu0
    %v1249 = vadd.f32 0.0, %v1248
    %1250 = vmatprep.mubr.f32.mxu0 %v47
    %1251 = vmatmul.mubr.f32.gmra.mxu0 %v46
    %v1252 = vpop.f32.mrf.mxu0
    %v1253 = vadd.f32 0.0, %v1252
    %v1254 = vpop.f32.mrf.mxu0
    %v1255 = vadd.f32 0.0, %v1254
    %1256 = vmatprep.mubr.f32.mxu0 %v50
    %1257 = vmatmul.mubr.f32.gmra.mxu0 %v49
    %v1258 = vpop.f32.mrf.mxu0
    %v1259 = vadd.f32 0.0, %v1258
    %v1260 = vpop.f32.mrf.mxu0
    %v1261 = vadd.f32 0.0, %v1260
    %1262 = vmatprep.mubr.f32.mxu0 %v53
    %1263 = vmatmul.mubr.f32.gmra.mxu0 %v52
    %v1264 = vpop.f32.mrf.mxu0
    %v1265 = vadd.f32 0.0, %v1264
    %v1266 = vpop.f32.mrf.mxu0
    %v1267 = vadd.f32 0.0, %v1266
    %1268 = vmatprep.mubr.f32.mxu0 %v56
    %1269 = vmatmul.mubr.f32.gmra.mxu0 %v55
    %v1270 = vpop.f32.mrf.mxu0
    %v1271 = vadd.f32 0.0, %v1270
    %v1272 = vpop.f32.mrf.mxu0
    %v1273 = vadd.f32 0.0, %v1272
    %1274 = vmatprep.mubr.f32.mxu0 %v59
    %1275 = vmatmul.mubr.f32.gmra.mxu0 %v58
    %v1276 = vpop.f32.mrf.mxu0
    %v1277 = vadd.f32 0.0, %v1276
    %v1278 = vpop.f32.mrf.mxu0
    %v1279 = vadd.f32 0.0, %v1278
    %1280 = vmatprep.mubr.f32.mxu0 %v62
    %1281 = vmatmul.mubr.f32.gmra.mxu0 %v61
    %v1282 = vpop.f32.mrf.mxu0
    %v1283 = vadd.f32 0.0, %v1282
    %v1284 = vpop.f32.mrf.mxu0
    %v1285 = vadd.f32 0.0, %v1284
    %1286 = vdwg.mxu0
    %1287 = vmatprep.subr.mxu0 %v494
    %1288 = vmatpush1.msra.mxu0 %v493
    %1289 = vmatprep.subr.mxu0 %v485
    %1290 = vmatpush1.msra.mxu0 %v484
    %1291 = vmatprep.subr.mxu0 %v476
    %1292 = vmatpush1.msra.mxu0 %v475
    %1293 = vmatprep.subr.mxu0 %v467
    %1294 = vmatpush1.msra.mxu0 %v466
    %1295 = vmatprep.subr.mxu0 %v458
    %1296 = vmatpush1.msra.mxu0 %v457
    %1297 = vmatprep.subr.mxu0 %v449
    %1298 = vmatpush1.msra.mxu0 %v448
    %1299 = vmatprep.subr.mxu0 %v440
    %1300 = vmatpush1.msra.mxu0 %v439
    %1301 = vmatprep.subr.mxu0 %v431
    %1302 = vmatpush1.msra.mxu0 %v430
    %1303 = vmatprep.subr.mxu0 %v422
    %1304 = vmatpush1.msra.mxu0 %v421
    %1305 = vmatprep.subr.mxu0 %v413
    %1306 = vmatpush1.msra.mxu0 %v412
    %1307 = vmatprep.subr.mxu0 %v404
    %1308 = vmatpush1.msra.mxu0 %v403
    %1309 = vmatprep.subr.mxu0 %v395
    %1310 = vmatpush1.msra.mxu0 %v394
    %1311 = vmatprep.subr.mxu0 %v386
    %1312 = vmatpush1.msra.mxu0 %v385
    %1313 = vmatprep.subr.mxu0 %v377
    %1314 = vmatpush1.msra.mxu0 %v376
    %1315 = vmatprep.subr.mxu0 %v368
    %1316 = vmatpush1.msra.mxu0 %v367
    %1317 = vmatprep.subr.mxu0 %v359
    %1318 = vmatpush1.msra.mxu0 %v358
    %1319 = vmatprep.subr.mxu0 0.0
    %1320 = vmatpush2.msra.mxu0 0.0
    %1321 = vmatprep.subr.mxu0 0.0
    %1322 = vmatpush2.msra.mxu0 0.0
    %1323 = vmatprep.subr.mxu0 0.0
    %1324 = vmatpush2.msra.mxu0 0.0
    %1325 = vmatprep.subr.mxu0 0.0
    %1326 = vmatpush2.msra.mxu0 0.0
    %1327 = vmatprep.subr.mxu0 0.0
    %1328 = vmatpush2.msra.mxu0 0.0
    %1329 = vmatprep.subr.mxu0 0.0
    %1330 = vmatpush2.msra.mxu0 0.0
    %1331 = vmatprep.subr.mxu0 0.0
    %1332 = vmatpush2.msra.mxu0 0.0
    %1333 = vmatprep.subr.mxu0 0.0
    %1334 = vmatpush2.msra.mxu0 0.0
    %1335 = vmatprep.subr.mxu0 0.0
    %1336 = vmatpush2.msra.mxu0 0.0
    %1337 = vmatprep.subr.mxu0 0.0
    %1338 = vmatpush2.msra.mxu0 0.0
    %1339 = vmatprep.subr.mxu0 0.0
    %1340 = vmatpush2.msra.mxu0 0.0
    %1341 = vmatprep.subr.mxu0 0.0
    %1342 = vmatpush2.msra.mxu0 0.0
    %1343 = vmatprep.subr.mxu0 0.0
    %1344 = vmatpush2.msra.mxu0 0.0
    %1345 = vmatprep.subr.mxu0 0.0
    %1346 = vmatpush2.msra.mxu0 0.0
    %1347 = vmatprep.subr.mxu0 0.0
    %1348 = vmatpush2.msra.mxu0 0.0
    %1349 = vmatprep.subr.mxu0 0.0
    %1350 = vmatpush2.msra.mxu0 0.0
    %1351 = vmatprep.mubr.f32.mxu0 0.0
    %1352 = vmatmul.mubr.f32.gmra.mxu0 %v42
    %v1353 = vpop.f32.mrf.mxu0
    %v1354 = vadd.f32 %v1241, %v1353
    %v1355 = vpop.f32.mrf.mxu0
    %v1356 = vadd.f32 %v1243, %v1355
    %1357 = vmatprep.mubr.f32.mxu0 0.0
    %1358 = vmatmul.mubr.f32.gmra.mxu0 %v45
    %v1359 = vpop.f32.mrf.mxu0
    %v1360 = vadd.f32 %v1247, %v1359
    %v1361 = vpop.f32.mrf.mxu0
    %v1362 = vadd.f32 %v1249, %v1361
    %1363 = vmatprep.mubr.f32.mxu0 0.0
    %1364 = vmatmul.mubr.f32.gmra.mxu0 %v48
    %v1365 = vpop.f32.mrf.mxu0
    %v1366 = vadd.f32 %v1253, %v1365
    %v1367 = vpop.f32.mrf.mxu0
    %v1368 = vadd.f32 %v1255, %v1367
    %1369 = vmatprep.mubr.f32.mxu0 0.0
    %1370 = vmatmul.mubr.f32.gmra.mxu0 %v51
    %v1371 = vpop.f32.mrf.mxu0
    %v1372 = vadd.f32 %v1259, %v1371
    %v1373 = vpop.f32.mrf.mxu0
    %v1374 = vadd.f32 %v1261, %v1373
    %1375 = vmatprep.mubr.f32.mxu0 0.0
    %1376 = vmatmul.mubr.f32.gmra.mxu0 %v54
    %v1377 = vpop.f32.mrf.mxu0
    %v1378 = vadd.f32 %v1265, %v1377
    %v1379 = vpop.f32.mrf.mxu0
    %v1380 = vadd.f32 %v1267, %v1379
    %1381 = vmatprep.mubr.f32.mxu0 0.0
    %1382 = vmatmul.mubr.f32.gmra.mxu0 %v57
    %v1383 = vpop.f32.mrf.mxu0
    %v1384 = vadd.f32 %v1271, %v1383
    %v1385 = vpop.f32.mrf.mxu0
    %v1386 = vadd.f32 %v1273, %v1385
    %1387 = vmatprep.mubr.f32.mxu0 0.0
    %1388 = vmatmul.mubr.f32.gmra.mxu0 %v60
    %v1389 = vpop.f32.mrf.mxu0
    %v1390 = vadd.f32 %v1277, %v1389
    %v1391 = vpop.f32.mrf.mxu0
    %v1392 = vadd.f32 %v1279, %v1391
    %1393 = vmatprep.mubr.f32.mxu0 0.0
    %1394 = vmatmul.mubr.f32.gmra.mxu0 %v63
    %v1395 = vpop.f32.mrf.mxu0
    %v1396 = vadd.f32 %v1283, %v1395
    %v1397 = vpop.f32.mrf.mxu0
    %v1398 = vadd.f32 %v1285, %v1397
    %1399 = vdwg.mxu0
    %1400 = vmatprep.subr.mxu0 0.0
    %1401 = vmatpush1.msra.mxu0 %v207
    %1402 = vmatprep.subr.mxu0 0.0
    %1403 = vmatpush1.msra.mxu0 %v198
    %1404 = vmatprep.subr.mxu0 0.0
    %1405 = vmatpush1.msra.mxu0 %v189
    %1406 = vmatprep.subr.mxu0 0.0
    %1407 = vmatpush1.msra.mxu0 %v180
    %1408 = vmatprep.subr.mxu0 0.0
    %1409 = vmatpush1.msra.mxu0 %v171
    %1410 = vmatprep.subr.mxu0 0.0
    %1411 = vmatpush1.msra.mxu0 %v162
    %1412 = vmatprep.subr.mxu0 0.0
    %1413 = vmatpush1.msra.mxu0 %v153
    %1414 = vmatprep.subr.mxu0 0.0
    %1415 = vmatpush1.msra.mxu0 %v144
    %1416 = vmatprep.subr.mxu0 0.0
    %1417 = vmatpush1.msra.mxu0 %v135
    %1418 = vmatprep.subr.mxu0 0.0
    %1419 = vmatpush1.msra.mxu0 %v126
    %1420 = vmatprep.subr.mxu0 0.0
    %1421 = vmatpush1.msra.mxu0 %v117
    %1422 = vmatprep.subr.mxu0 0.0
    %1423 = vmatpush1.msra.mxu0 %v108
    %1424 = vmatprep.subr.mxu0 0.0
    %1425 = vmatpush1.msra.mxu0 %v99
    %1426 = vmatprep.subr.mxu0 0.0
    %1427 = vmatpush1.msra.mxu0 %v90
    %1428 = vmatprep.subr.mxu0 0.0
    %1429 = vmatpush1.msra.mxu0 %v81
    %1430 = vmatprep.subr.mxu0 0.0
    %1431 = vmatpush1.msra.mxu0 %v72
    %1432 = vmatprep.subr.mxu0 0.0
    %1433 = vmatpush2.msra.mxu0 %v351
    %1434 = vmatprep.subr.mxu0 0.0
    %1435 = vmatpush2.msra.mxu0 %v342
    %1436 = vmatprep.subr.mxu0 0.0
    %1437 = vmatpush2.msra.mxu0 %v333
    %1438 = vmatprep.subr.mxu0 0.0
    %1439 = vmatpush2.msra.mxu0 %v324
    %1440 = vmatprep.subr.mxu0 0.0
    %1441 = vmatpush2.msra.mxu0 %v315
    %1442 = vmatprep.subr.mxu0 0.0
    %1443 = vmatpush2.msra.mxu0 %v306
    %1444 = vmatprep.subr.mxu0 0.0
    %1445 = vmatpush2.msra.mxu0 %v297
    %1446 = vmatprep.subr.mxu0 0.0
    %1447 = vmatpush2.msra.mxu0 %v288
    %1448 = vmatprep.subr.mxu0 0.0
    %1449 = vmatpush2.msra.mxu0 %v279
    %1450 = vmatprep.subr.mxu0 0.0
    %1451 = vmatpush2.msra.mxu0 %v270
    %1452 = vmatprep.subr.mxu0 0.0
    %1453 = vmatpush2.msra.mxu0 %v261
    %1454 = vmatprep.subr.mxu0 0.0
    %1455 = vmatpush2.msra.mxu0 %v252
    %1456 = vmatprep.subr.mxu0 0.0
    %1457 = vmatpush2.msra.mxu0 %v243
    %1458 = vmatprep.subr.mxu0 0.0
    %1459 = vmatpush2.msra.mxu0 %v234
    %1460 = vmatprep.subr.mxu0 0.0
    %1461 = vmatpush2.msra.mxu0 %v225
    %1462 = vmatprep.subr.mxu0 0.0
    %1463 = vmatpush2.msra.mxu0 %v216
    %1464 = vmatprep.mubr.f32.mxu0 %v41
    %1465 = vmatmul.mubr.f32.gmra.mxu0 %v40
    %v1466 = vpop.f32.mrf.mxu0
    %v1467 = vadd.f32 0.0, %v1466
    %v1468 = vpop.f32.mrf.mxu0
    %1469 = vmatprep.mubr.f32.mxu0 %v44
    %1470 = vmatmul.mubr.f32.gmra.mxu0 %v43
    %v1471 = vpop.f32.mrf.mxu0
    %v1472 = vadd.f32 0.0, %v1471
    %v1473 = vpop.f32.mrf.mxu0
    %1474 = vmatprep.mubr.f32.mxu0 %v47
    %1475 = vmatmul.mubr.f32.gmra.mxu0 %v46
    %v1476 = vpop.f32.mrf.mxu0
    %v1477 = vadd.f32 0.0, %v1476
    %v1478 = vpop.f32.mrf.mxu0
    %1479 = vmatprep.mubr.f32.mxu0 %v50
    %1480 = vmatmul.mubr.f32.gmra.mxu0 %v49
    %v1481 = vpop.f32.mrf.mxu0
    %v1482 = vadd.f32 0.0, %v1481
    %v1483 = vpop.f32.mrf.mxu0
    %1484 = vmatprep.mubr.f32.mxu0 %v53
    %1485 = vmatmul.mubr.f32.gmra.mxu0 %v52
    %v1486 = vpop.f32.mrf.mxu0
    %v1487 = vadd.f32 0.0, %v1486
    %v1488 = vpop.f32.mrf.mxu0
    %1489 = vmatprep.mubr.f32.mxu0 %v56
    %1490 = vmatmul.mubr.f32.gmra.mxu0 %v55
    %v1491 = vpop.f32.mrf.mxu0
    %v1492 = vadd.f32 0.0, %v1491
    %v1493 = vpop.f32.mrf.mxu0
    %1494 = vmatprep.mubr.f32.mxu0 %v59
    %1495 = vmatmul.mubr.f32.gmra.mxu0 %v58
    %v1496 = vpop.f32.mrf.mxu0
    %v1497 = vadd.f32 0.0, %v1496
    %v1498 = vpop.f32.mrf.mxu0
    %1499 = vmatprep.mubr.f32.mxu0 %v62
    %1500 = vmatmul.mubr.f32.gmra.mxu0 %v61
    %v1501 = vpop.f32.mrf.mxu0
    %v1502 = vadd.f32 0.0, %v1501
    %v1503 = vpop.f32.mrf.mxu0
    %1504 = vdwg.mxu0
    %1505 = vmatprep.subr.mxu0 0.0
    %1506 = vmatpush1.msra.mxu0 %v495
    %1507 = vmatprep.subr.mxu0 0.0
    %1508 = vmatpush1.msra.mxu0 %v486
    %1509 = vmatprep.subr.mxu0 0.0
    %1510 = vmatpush1.msra.mxu0 %v477
    %1511 = vmatprep.subr.mxu0 0.0
    %1512 = vmatpush1.msra.mxu0 %v468
    %1513 = vmatprep.subr.mxu0 0.0
    %1514 = vmatpush1.msra.mxu0 %v459
    %1515 = vmatprep.subr.mxu0 0.0
    %1516 = vmatpush1.msra.mxu0 %v450
    %1517 = vmatprep.subr.mxu0 0.0
    %1518 = vmatpush1.msra.mxu0 %v441
    %1519 = vmatprep.subr.mxu0 0.0
    %1520 = vmatpush1.msra.mxu0 %v432
    %1521 = vmatprep.subr.mxu0 0.0
    %1522 = vmatpush1.msra.mxu0 %v423
    %1523 = vmatprep.subr.mxu0 0.0
    %1524 = vmatpush1.msra.mxu0 %v414
    %1525 = vmatprep.subr.mxu0 0.0
    %1526 = vmatpush1.msra.mxu0 %v405
    %1527 = vmatprep.subr.mxu0 0.0
    %1528 = vmatpush1.msra.mxu0 %v396
    %1529 = vmatprep.subr.mxu0 0.0
    %1530 = vmatpush1.msra.mxu0 %v387
    %1531 = vmatprep.subr.mxu0 0.0
    %1532 = vmatpush1.msra.mxu0 %v378
    %1533 = vmatprep.subr.mxu0 0.0
    %1534 = vmatpush1.msra.mxu0 %v369
    %1535 = vmatprep.subr.mxu0 0.0
    %1536 = vmatpush1.msra.mxu0 %v360
    %1537 = vmatprep.subr.mxu0 0.0
    %1538 = vmatpush2.msra.mxu0 0.0
    %1539 = vmatprep.subr.mxu0 0.0
    %1540 = vmatpush2.msra.mxu0 0.0
    %1541 = vmatprep.subr.mxu0 0.0
    %1542 = vmatpush2.msra.mxu0 0.0
    %1543 = vmatprep.subr.mxu0 0.0
    %1544 = vmatpush2.msra.mxu0 0.0
    %1545 = vmatprep.subr.mxu0 0.0
    %1546 = vmatpush2.msra.mxu0 0.0
    %1547 = vmatprep.subr.mxu0 0.0
    %1548 = vmatpush2.msra.mxu0 0.0
    %1549 = vmatprep.subr.mxu0 0.0
    %1550 = vmatpush2.msra.mxu0 0.0
    %1551 = vmatprep.subr.mxu0 0.0
    %1552 = vmatpush2.msra.mxu0 0.0
    %1553 = vmatprep.subr.mxu0 0.0
    %1554 = vmatpush2.msra.mxu0 0.0
    %1555 = vmatprep.subr.mxu0 0.0
    %1556 = vmatpush2.msra.mxu0 0.0
    %1557 = vmatprep.subr.mxu0 0.0
    %1558 = vmatpush2.msra.mxu0 0.0
    %1559 = vmatprep.subr.mxu0 0.0
    %1560 = vmatpush2.msra.mxu0 0.0
    %1561 = vmatprep.subr.mxu0 0.0
    %1562 = vmatpush2.msra.mxu0 0.0
    %1563 = vmatprep.subr.mxu0 0.0
    %1564 = vmatpush2.msra.mxu0 0.0
    %1565 = vmatprep.subr.mxu0 0.0
    %1566 = vmatpush2.msra.mxu0 0.0
    %1567 = vmatprep.subr.mxu0 0.0
    %1568 = vmatpush2.msra.mxu0 0.0
    %1569 = vmatprep.mubr.f32.mxu0 0.0
    %1570 = vmatmul.mubr.f32.gmra.mxu0 %v42
    %v1571 = vpop.f32.mrf.mxu0
    %v1572 = vadd.f32 %v1467, %v1571
    %v1573 = vpop.f32.mrf.mxu0
    %1574 = vmatprep.mubr.f32.mxu0 0.0
    %1575 = vmatmul.mubr.f32.gmra.mxu0 %v45
    %v1576 = vpop.f32.mrf.mxu0
    %v1577 = vadd.f32 %v1472, %v1576
    %v1578 = vpop.f32.mrf.mxu0
    %1579 = vmatprep.mubr.f32.mxu0 0.0
    %1580 = vmatmul.mubr.f32.gmra.mxu0 %v48
    %v1581 = vpop.f32.mrf.mxu0
    %v1582 = vadd.f32 %v1477, %v1581
    %v1583 = vpop.f32.mrf.mxu0
    %1584 = vmatprep.mubr.f32.mxu0 0.0
    %1585 = vmatmul.mubr.f32.gmra.mxu0 %v51
    %v1586 = vpop.f32.mrf.mxu0
    %v1587 = vadd.f32 %v1482, %v1586
    %v1588 = vpop.f32.mrf.mxu0
    %1589 = vmatprep.mubr.f32.mxu0 0.0
    %1590 = vmatmul.mubr.f32.gmra.mxu0 %v54
    %v1591 = vpop.f32.mrf.mxu0
    %v1592 = vadd.f32 %v1487, %v1591
    %v1593 = vpop.f32.mrf.mxu0
    %1594 = vmatprep.mubr.f32.mxu0 0.0
    %1595 = vmatmul.mubr.f32.gmra.mxu0 %v57
    %v1596 = vpop.f32.mrf.mxu0
    %v1597 = vadd.f32 %v1492, %v1596
    %v1598 = vpop.f32.mrf.mxu0
    %1599 = vmatprep.mubr.f32.mxu0 0.0
    %1600 = vmatmul.mubr.f32.gmra.mxu0 %v60
    %v1601 = vpop.f32.mrf.mxu0
    %v1602 = vadd.f32 %v1497, %v1601
    %v1603 = vpop.f32.mrf.mxu0
    %1604 = vmatprep.mubr.f32.mxu0 0.0
    %1605 = vmatmul.mubr.f32.gmra.mxu0 %v63
    %v1606 = vpop.f32.mrf.mxu0
    %v1607 = vadd.f32 %v1502, %v1606
    %v1608 = vpop.f32.mrf.mxu0
    %1609 = vdwg.mxu0
    %v1610 = vlaneseq
    %v1611 = vshrl.u32 %v1610, 7
    %v1612 = vadd.s32 %v1611, 8
    %v1613 = vadd.s32 %v1611, 16
    %v1614 = vadd.s32 %v1611, 24
    %v1615 = vlaneseq
    %v1616 = vand.u32 %v1615, 127
    %vm1617 = vcmp.le.s32.totalorder %v1616, %v1611
    %vm1618 = vcmp.le.s32.totalorder %v1616, %v1612
    %vm1619 = vcmp.le.s32.totalorder %v1616, %v1613
    %vm1620 = vcmp.le.s32.totalorder %v1616, %v1614
    %1621 = vmatprep.subr.mxu0 0.0
    %1622 = vmatpush1.xpose.msra.mxu0 0.0
    %1623 = vmatprep.subr.mxu0 0.0
    %1624 = vmatpush1.xpose.msra.mxu0 0.0
    %1625 = vmatprep.subr.mxu0 0.0
    %1626 = vmatpush1.xpose.msra.mxu0 0.0
    %1627 = vmatprep.subr.mxu0 0.0
    %1628 = vmatpush1.xpose.msra.mxu0 0.0
    %1629 = vmatprep.subr.mxu0 0.0
    %1630 = vmatpush1.xpose.msra.mxu0 0.0
    %1631 = vmatprep.subr.mxu0 0.0
    %1632 = vmatpush1.xpose.msra.mxu0 0.0
    %1633 = vmatprep.subr.mxu0 0.0
    %1634 = vmatpush1.xpose.msra.mxu0 0.0
    %1635 = vmatprep.subr.mxu0 0.0
    %1636 = vmatpush1.xpose.msra.mxu0 0.0
    %1637 = vmatprep.subr.mxu0 0.0
    %1638 = vmatpush1.xpose.msra.mxu0 0.0
    %1639 = vmatprep.subr.mxu0 0.0
    %1640 = vmatpush1.xpose.msra.mxu0 0.0
    %1641 = vmatprep.subr.mxu0 0.0
    %1642 = vmatpush1.xpose.msra.mxu0 0.0
    %1643 = vmatprep.subr.mxu0 0.0
    %1644 = vmatpush1.xpose.msra.mxu0 0.0
    %1645 = vmatprep.subr.mxu0 0.0
    %1646 = vmatpush1.xpose.msra.mxu0 %v922
    %1647 = vmatprep.subr.mxu0 0.0
    %1648 = vmatpush1.xpose.msra.mxu0 %v916
    %1649 = vmatprep.subr.mxu0 0.0
    %1650 = vmatpush1.xpose.msra.mxu0 %v910
    %1651 = vmatprep.subr.mxu0 0.0
    %1652 = vmatpush1.xpose.msra.mxu0 %v904
    %1653 = vmatprep.subr.mxu0 0.0
    %1654 = vmatpush2.xpose.msra.mxu0 0.0
    %1655 = vmatprep.subr.mxu0 0.0
    %1656 = vmatpush2.xpose.msra.mxu0 0.0
    %1657 = vmatprep.subr.mxu0 0.0
    %1658 = vmatpush2.xpose.msra.mxu0 0.0
    %1659 = vmatprep.subr.mxu0 0.0
    %1660 = vmatpush2.xpose.msra.mxu0 0.0
    %1661 = vmatprep.subr.mxu0 0.0
    %1662 = vmatpush2.xpose.msra.mxu0 0.0
    %1663 = vmatprep.subr.mxu0 0.0
    %1664 = vmatpush2.xpose.msra.mxu0 0.0
    %1665 = vmatprep.subr.mxu0 0.0
    %1666 = vmatpush2.xpose.msra.mxu0 0.0
    %1667 = vmatprep.subr.mxu0 0.0
    %1668 = vmatpush2.xpose.msra.mxu0 0.0
    %1669 = vmatprep.subr.mxu0 0.0
    %1670 = vmatpush2.xpose.msra.mxu0 0.0
    %1671 = vmatprep.subr.mxu0 0.0
    %1672 = vmatpush2.xpose.msra.mxu0 0.0
    %1673 = vmatprep.subr.mxu0 0.0
    %1674 = vmatpush2.xpose.msra.mxu0 0.0
    %1675 = vmatprep.subr.mxu0 0.0
    %1676 = vmatpush2.xpose.msra.mxu0 0.0
    %1677 = vmatprep.subr.mxu0 0.0
    %1678 = vmatpush2.xpose.msra.mxu0 0.0
    %1679 = vmatprep.subr.mxu0 0.0
    %1680 = vmatpush2.xpose.msra.mxu0 0.0
    %1681 = vmatprep.subr.mxu0 0.0
    %1682 = vmatpush2.xpose.msra.mxu0 0.0
    %1683 = vmatprep.subr.mxu0 0.0
    %1684 = vmatpush2.xpose.msra.mxu0 0.0
    %1685 = vmatprep.mubr.f32.mxu0 0.0
    %1686 = vmatmul.mubr.f32.gmra.mxu0 %v676
    %v1687 = vpop.f32.mrf.mxu0
    %v1688 = vadd.f32 0.0, %v1687
    %v1689 = vpop.f32.mrf.mxu0
    %1690 = vmatprep.mubr.f32.mxu0 0.0
    %1691 = vmatmul.mubr.f32.gmra.mxu0 %v682
    %v1692 = vpop.f32.mrf.mxu0
    %v1693 = vadd.f32 0.0, %v1692
    %v1694 = vpop.f32.mrf.mxu0
    %1695 = vmatprep.mubr.f32.mxu0 0.0
    %1696 = vmatmul.mubr.f32.gmra.mxu0 %v688
    %v1697 = vpop.f32.mrf.mxu0
    %v1698 = vadd.f32 0.0, %v1697
    %v1699 = vpop.f32.mrf.mxu0
    %1700 = vmatprep.mubr.f32.mxu0 0.0
    %1701 = vmatmul.mubr.f32.gmra.mxu0 %v694
    %v1702 = vpop.f32.mrf.mxu0
    %v1703 = vadd.f32 0.0, %v1702
    %v1704 = vpop.f32.mrf.mxu0
    %1705 = vdwg.mxu0
    %1706 = vmatprep.subr.mxu0 0.0
    %1707 = vmatpush1.xpose.msra.mxu0 0.0
    %1708 = vmatprep.subr.mxu0 0.0
    %1709 = vmatpush1.xpose.msra.mxu0 0.0
    %1710 = vmatprep.subr.mxu0 0.0
    %1711 = vmatpush1.xpose.msra.mxu0 0.0
    %1712 = vmatprep.subr.mxu0 0.0
    %1713 = vmatpush1.xpose.msra.mxu0 0.0
    %1714 = vmatprep.subr.mxu0 0.0
    %1715 = vmatpush1.xpose.msra.mxu0 0.0
    %1716 = vmatprep.subr.mxu0 0.0
    %1717 = vmatpush1.xpose.msra.mxu0 0.0
    %1718 = vmatprep.subr.mxu0 0.0
    %1719 = vmatpush1.xpose.msra.mxu0 0.0
    %1720 = vmatprep.subr.mxu0 0.0
    %1721 = vmatpush1.xpose.msra.mxu0 0.0
    %1722 = vmatprep.subr.mxu0 0.0
    %1723 = vmatpush1.xpose.msra.mxu0 0.0
    %1724 = vmatprep.subr.mxu0 0.0
    %1725 = vmatpush1.xpose.msra.mxu0 0.0
    %1726 = vmatprep.subr.mxu0 0.0
    %1727 = vmatpush1.xpose.msra.mxu0 0.0
    %1728 = vmatprep.subr.mxu0 0.0
    %1729 = vmatpush1.xpose.msra.mxu0 0.0
    %1730 = vmatprep.subr.mxu0 0.0
    %1731 = vmatpush1.xpose.msra.mxu0 %v946
    %1732 = vmatprep.subr.mxu0 0.0
    %1733 = vmatpush1.xpose.msra.mxu0 %v940
    %1734 = vmatprep.subr.mxu0 0.0
    %1735 = vmatpush1.xpose.msra.mxu0 %v934
    %1736 = vmatprep.subr.mxu0 0.0
    %1737 = vmatpush1.xpose.msra.mxu0 %v928
    %1738 = vmatprep.subr.mxu0 0.0
    %1739 = vmatpush2.xpose.msra.mxu0 0.0
    %1740 = vmatprep.subr.mxu0 0.0
    %1741 = vmatpush2.xpose.msra.mxu0 0.0
    %1742 = vmatprep.subr.mxu0 0.0
    %1743 = vmatpush2.xpose.msra.mxu0 0.0
    %1744 = vmatprep.subr.mxu0 0.0
    %1745 = vmatpush2.xpose.msra.mxu0 0.0
    %1746 = vmatprep.subr.mxu0 0.0
    %1747 = vmatpush2.xpose.msra.mxu0 0.0
    %1748 = vmatprep.subr.mxu0 0.0
    %1749 = vmatpush2.xpose.msra.mxu0 0.0
    %1750 = vmatprep.subr.mxu0 0.0
    %1751 = vmatpush2.xpose.msra.mxu0 0.0
    %1752 = vmatprep.subr.mxu0 0.0
    %1753 = vmatpush2.xpose.msra.mxu0 0.0
    %1754 = vmatprep.subr.mxu0 0.0
    %1755 = vmatpush2.xpose.msra.mxu0 0.0
    %1756 = vmatprep.subr.mxu0 0.0
    %1757 = vmatpush2.xpose.msra.mxu0 0.0
    %1758 = vmatprep.subr.mxu0 0.0
    %1759 = vmatpush2.xpose.msra.mxu0 0.0
    %1760 = vmatprep.subr.mxu0 0.0
    %1761 = vmatpush2.xpose.msra.mxu0 0.0
    %1762 = vmatprep.subr.mxu0 0.0
    %1763 = vmatpush2.xpose.msra.mxu0 0.0
    %1764 = vmatprep.subr.mxu0 0.0
    %1765 = vmatpush2.xpose.msra.mxu0 0.0
    %1766 = vmatprep.subr.mxu0 0.0
    %1767 = vmatpush2.xpose.msra.mxu0 0.0
    %1768 = vmatprep.subr.mxu0 0.0
    %1769 = vmatpush2.xpose.msra.mxu0 0.0
    %1770 = vmatprep.mubr.f32.mxu0 0.0
    %1771 = vmatmul.mubr.f32.gmra.mxu0 %v700
    %v1772 = vpop.f32.mrf.mxu0
    %v1773 = vadd.f32 0.0, %v1772
    %v1774 = vpop.f32.mrf.mxu0
    %1775 = vmatprep.mubr.f32.mxu0 0.0
    %1776 = vmatmul.mubr.f32.gmra.mxu0 %v706
    %v1777 = vpop.f32.mrf.mxu0
    %v1778 = vadd.f32 0.0, %v1777
    %v1779 = vpop.f32.mrf.mxu0
    %1780 = vmatprep.mubr.f32.mxu0 0.0
    %1781 = vmatmul.mubr.f32.gmra.mxu0 %v712
    %v1782 = vpop.f32.mrf.mxu0
    %v1783 = vadd.f32 0.0, %v1782
    %v1784 = vpop.f32.mrf.mxu0
    %1785 = vmatprep.mubr.f32.mxu0 0.0
    %1786 = vmatmul.mubr.f32.gmra.mxu0 %v718
    %v1787 = vpop.f32.mrf.mxu0
    %v1788 = vadd.f32 0.0, %v1787
    %v1789 = vpop.f32.mrf.mxu0
    %1790 = vdwg.mxu0
    %v1791 = vsel %vm1617, 1, 0
    %v1792 = vsel %vm1618, 1, 0
    %v1793 = vsel %vm1619, 1, 0
    %v1794 = vsel %vm1620, 1, 0
    %vm1795 = vcmp.eq.s32.totalorder %v1791, 1
    %vm1796 = vcmp.eq.s32.totalorder %v1792, 1
    %vm1797 = vcmp.eq.s32.totalorder %v1793, 1
    %vm1798 = vcmp.eq.s32.totalorder %v1794, 1
    %v1799 = vsel %vm1795, %v1688, -1e+30
    %v1800 = vsel %vm1796, %v1693, -1e+30
    %v1801 = vsel %vm1797, %v1698, -1e+30
    %v1802 = vsel %vm1798, %v1703, -1e+30
    %v1803 = vsel %vm1795, %v1773, -1e+30
    %v1804 = vsel %vm1796, %v1778, -1e+30
    %v1805 = vsel %vm1797, %v1783, -1e+30
    %v1806 = vsel %vm1798, %v1788, -1e+30
    %vm1807 = vcmask 261120
    %v1808 = vsel %vm1807, %v1799, -inf
    %1809 = vmax.xlane.f32.xlu0 %v1808
    %v1810 = vpop.xlane.xlu0 %1809
    %v1811 = vsel %vm1807, %v1800, -inf
    %1812 = vmax.xlane.f32.xlu0 %v1811
    %v1813 = vpop.xlane.xlu0 %1812
    %v1814 = vsel %vm1807, %v1801, -inf
    %1815 = vmax.xlane.f32.xlu0 %v1814
    %v1816 = vpop.xlane.xlu0 %1815
    %v1817 = vsel %vm1807, %v1802, -inf
    %1818 = vmax.xlane.f32.xlu0 %v1817
    %v1819 = vpop.xlane.xlu0 %1818
    %v1820 = vsel %vm1807, %v1803, -inf
    %1821 = vmax.xlane.f32.xlu0 %v1820
    %v1822 = vpop.xlane.xlu0 %1821
    %v1823 = vsel %vm1807, %v1804, -inf
    %1824 = vmax.xlane.f32.xlu0 %v1823
    %v1825 = vpop.xlane.xlu0 %1824
    %v1826 = vsel %vm1807, %v1805, -inf
    %1827 = vmax.xlane.f32.xlu0 %v1826
    %v1828 = vpop.xlane.xlu0 %1827
    %v1829 = vsel %vm1807, %v1806, -inf
    %1830 = vmax.xlane.f32.xlu0 %v1829
    %v1831 = vpop.xlane.xlu0 %1830
    %v1832 = vsub.f32 %v1799, %v1810
    %v1833 = vsub.f32 %v1800, %v1813
    %v1834 = vsub.f32 %v1801, %v1816
    %v1835 = vsub.f32 %v1802, %v1819
    %v1836 = vsub.f32 %v1803, %v1822
    %v1837 = vsub.f32 %v1804, %v1825
    %v1838 = vsub.f32 %v1805, %v1828
    %v1839 = vsub.f32 %v1806, %v1831
    %v1840 = vmul.f32 %v1832, 1.442695
    %v1841 = vpow.pop %v1840
    %v1842 = vmul.f32 %v1833, 1.442695
    %v1843 = vpow.pop %v1842
    %v1844 = vmul.f32 %v1834, 1.442695
    %v1845 = vpow.pop %v1844
    %v1846 = vmul.f32 %v1835, 1.442695
    %v1847 = vpow.pop %v1846
    %v1848 = vmul.f32 %v1836, 1.442695
    %v1849 = vpow.pop %v1848
    %v1850 = vmul.f32 %v1837, 1.442695
    %v1851 = vpow.pop %v1850
    %v1852 = vmul.f32 %v1838, 1.442695
    %v1853 = vpow.pop %v1852
    %v1854 = vmul.f32 %v1839, 1.442695
    %v1855 = vpow.pop %v1854
    %v1856 = vsel %vm1807, %v1841, 0.0
    %1857 = vadd.xlane.f32.xlu0 %v1856
    %v1858 = vpop.xlane.xlu0 %1857
    %v1859 = vsel %vm1807, %v1843, 0.0
    %1860 = vadd.xlane.f32.xlu0 %v1859
    %v1861 = vpop.xlane.xlu0 %1860
    %v1862 = vsel %vm1807, %v1845, 0.0
    %1863 = vadd.xlane.f32.xlu0 %v1862
    %v1864 = vpop.xlane.xlu0 %1863
    %v1865 = vsel %vm1807, %v1847, 0.0
    %1866 = vadd.xlane.f32.xlu0 %v1865
    %v1867 = vpop.xlane.xlu0 %1866
    %v1868 = vsel %vm1807, %v1849, 0.0
    %1869 = vadd.xlane.f32.xlu0 %v1868
    %v1870 = vpop.xlane.xlu0 %1869
    %v1871 = vsel %vm1807, %v1851, 0.0
    %1872 = vadd.xlane.f32.xlu0 %v1871
    %v1873 = vpop.xlane.xlu0 %1872
    %v1874 = vsel %vm1807, %v1853, 0.0
    %1875 = vadd.xlane.f32.xlu0 %v1874
    %v1876 = vpop.xlane.xlu0 %1875
    %v1877 = vsel %vm1807, %v1855, 0.0
    %1878 = vadd.xlane.f32.xlu0 %v1877
    %v1879 = vpop.xlane.xlu0 %1878
    %v1880 = vrcp.pop %v1858
    %v1881 = vmul.f32 %v1841, %v1880
    %v1882 = vrcp.pop %v1861
    %v1883 = vmul.f32 %v1843, %v1882
    %v1884 = vrcp.pop %v1864
    %v1885 = vmul.f32 %v1845, %v1884
    %v1886 = vrcp.pop %v1867
    %v1887 = vmul.f32 %v1847, %v1886
    %v1888 = vrcp.pop %v1870
    %v1889 = vmul.f32 %v1849, %v1888
    %v1890 = vrcp.pop %v1873
    %v1891 = vmul.f32 %v1851, %v1890
    %v1892 = vrcp.pop %v1876
    %v1893 = vmul.f32 %v1853, %v1892
    %v1894 = vrcp.pop %v1879
    %v1895 = vmul.f32 %v1855, %v1894
    %v1897 = vsel %vm1807, %v1881, 0
    %v1900 = vsel %vm1807, %v1883, 0
    %v1903 = vsel %vm1807, %v1885, 0
    %v1906 = vsel %vm1807, %v1887, 0
    %1908 = vmatprep.subr.mxu0 0.0
    %1909 = vmatpush1.msra.mxu0 0.0
    %1910 = vmatprep.subr.mxu0 0.0
    %1911 = vmatpush1.msra.mxu0 0.0
    %1912 = vmatprep.subr.mxu0 0.0
    %1913 = vmatpush1.msra.mxu0 0.0
    %1914 = vmatprep.subr.mxu0 0.0
    %1915 = vmatpush1.msra.mxu0 0.0
    %1916 = vmatprep.subr.mxu0 0.0
    %1917 = vmatpush1.msra.mxu0 0.0
    %1918 = vmatprep.subr.mxu0 0.0
    %1919 = vmatpush1.msra.mxu0 0.0
    %1920 = vmatprep.subr.mxu0 0.0
    %1921 = vmatpush1.msra.mxu0 0.0
    %1922 = vmatprep.subr.mxu0 0.0
    %1923 = vmatpush1.msra.mxu0 0.0
    %1924 = vmatprep.subr.mxu0 0.0
    %1925 = vmatpush1.msra.mxu0 0.0
    %1926 = vmatprep.subr.mxu0 0.0
    %1927 = vmatpush1.msra.mxu0 0.0
    %1928 = vmatprep.subr.mxu0 0.0
    %1929 = vmatpush1.msra.mxu0 0.0
    %1930 = vmatprep.subr.mxu0 0.0
    %1931 = vmatpush1.msra.mxu0 0.0
    %1932 = vmatprep.subr.mxu0 0.0
    %1933 = vmatpush1.msra.mxu0 %v1372
    %1934 = vmatprep.subr.mxu0 0.0
    %1935 = vmatpush1.msra.mxu0 %v1366
    %1936 = vmatprep.subr.mxu0 0.0
    %1937 = vmatpush1.msra.mxu0 %v1360
    %1938 = vmatprep.subr.mxu0 0.0
    %1939 = vmatpush1.msra.mxu0 %v1354
    %1940 = vmatprep.subr.mxu0 0.0
    %1941 = vmatpush2.msra.mxu0 0.0
    %1942 = vmatprep.subr.mxu0 0.0
    %1943 = vmatpush2.msra.mxu0 0.0
    %1944 = vmatprep.subr.mxu0 0.0
    %1945 = vmatpush2.msra.mxu0 0.0
    %1946 = vmatprep.subr.mxu0 0.0
    %1947 = vmatpush2.msra.mxu0 0.0
    %1948 = vmatprep.subr.mxu0 0.0
    %1949 = vmatpush2.msra.mxu0 0.0
    %1950 = vmatprep.subr.mxu0 0.0
    %1951 = vmatpush2.msra.mxu0 0.0
    %1952 = vmatprep.subr.mxu0 0.0
    %1953 = vmatpush2.msra.mxu0 0.0
    %1954 = vmatprep.subr.mxu0 0.0
    %1955 = vmatpush2.msra.mxu0 0.0
    %1956 = vmatprep.subr.mxu0 0.0
    %1957 = vmatpush2.msra.mxu0 0.0
    %1958 = vmatprep.subr.mxu0 0.0
    %1959 = vmatpush2.msra.mxu0 0.0
    %1960 = vmatprep.subr.mxu0 0.0
    %1961 = vmatpush2.msra.mxu0 0.0
    %1962 = vmatprep.subr.mxu0 0.0
    %1963 = vmatpush2.msra.mxu0 0.0
    %1964 = vmatprep.subr.mxu0 0.0
    %1965 = vmatpush2.msra.mxu0 0.0
    %1966 = vmatprep.subr.mxu0 0.0
    %1967 = vmatpush2.msra.mxu0 0.0
    %1968 = vmatprep.subr.mxu0 0.0
    %1969 = vmatpush2.msra.mxu0 0.0
    %1970 = vmatprep.subr.mxu0 0.0
    %1971 = vmatpush2.msra.mxu0 0.0
    %1972 = vmatprep.mubr.f32.mxu0 0.0
    %1973 = vmatmul.mubr.f32.gmra.mxu0 %v1897
    %v1974 = vpop.f32.mrf.mxu0
    %v1975 = vadd.f32 0.0, %v1974
    %v1976 = vpop.f32.mrf.mxu0
    %1977 = vmatprep.mubr.f32.mxu0 0.0
    %1978 = vmatmul.mubr.f32.gmra.mxu0 %v1900
    %v1979 = vpop.f32.mrf.mxu0
    %v1980 = vadd.f32 0.0, %v1979
    %v1981 = vpop.f32.mrf.mxu0
    %1982 = vmatprep.mubr.f32.mxu0 0.0
    %1983 = vmatmul.mubr.f32.gmra.mxu0 %v1903
    %v1984 = vpop.f32.mrf.mxu0
    %v1985 = vadd.f32 0.0, %v1984
    %v1986 = vpop.f32.mrf.mxu0
    %1987 = vmatprep.mubr.f32.mxu0 0.0
    %1988 = vmatmul.mubr.f32.gmra.mxu0 %v1906
    %v1989 = vpop.f32.mrf.mxu0
    %v1990 = vadd.f32 0.0, %v1989
    %v1991 = vpop.f32.mrf.mxu0
    %1992 = vdwg.mxu0
    %v1994 = vsel %vm1807, %v1889, 0
    %v1997 = vsel %vm1807, %v1891, 0
    %v2000 = vsel %vm1807, %v1893, 0
    %v2003 = vsel %vm1807, %v1895, 0
    %2005 = vmatprep.subr.mxu0 0.0
    %2006 = vmatpush1.msra.mxu0 0.0
    %2007 = vmatprep.subr.mxu0 0.0
    %2008 = vmatpush1.msra.mxu0 0.0
    %2009 = vmatprep.subr.mxu0 0.0
    %2010 = vmatpush1.msra.mxu0 0.0
    %2011 = vmatprep.subr.mxu0 0.0
    %2012 = vmatpush1.msra.mxu0 0.0
    %2013 = vmatprep.subr.mxu0 0.0
    %2014 = vmatpush1.msra.mxu0 0.0
    %2015 = vmatprep.subr.mxu0 0.0
    %2016 = vmatpush1.msra.mxu0 0.0
    %2017 = vmatprep.subr.mxu0 0.0
    %2018 = vmatpush1.msra.mxu0 0.0
    %2019 = vmatprep.subr.mxu0 0.0
    %2020 = vmatpush1.msra.mxu0 0.0
    %2021 = vmatprep.subr.mxu0 0.0
    %2022 = vmatpush1.msra.mxu0 0.0
    %2023 = vmatprep.subr.mxu0 0.0
    %2024 = vmatpush1.msra.mxu0 0.0
    %2025 = vmatprep.subr.mxu0 0.0
    %2026 = vmatpush1.msra.mxu0 0.0
    %2027 = vmatprep.subr.mxu0 0.0
    %2028 = vmatpush1.msra.mxu0 0.0
    %2029 = vmatprep.subr.mxu0 0.0
    %2030 = vmatpush1.msra.mxu0 %v1396
    %2031 = vmatprep.subr.mxu0 0.0
    %2032 = vmatpush1.msra.mxu0 %v1390
    %2033 = vmatprep.subr.mxu0 0.0
    %2034 = vmatpush1.msra.mxu0 %v1384
    %2035 = vmatprep.subr.mxu0 0.0
    %2036 = vmatpush1.msra.mxu0 %v1378
    %2037 = vmatprep.subr.mxu0 0.0
    %2038 = vmatpush2.msra.mxu0 0.0
    %2039 = vmatprep.subr.mxu0 0.0
    %2040 = vmatpush2.msra.mxu0 0.0
    %2041 = vmatprep.subr.mxu0 0.0
    %2042 = vmatpush2.msra.mxu0 0.0
    %2043 = vmatprep.subr.mxu0 0.0
    %2044 = vmatpush2.msra.mxu0 0.0
    %2045 = vmatprep.subr.mxu0 0.0
    %2046 = vmatpush2.msra.mxu0 0.0
    %2047 = vmatprep.subr.mxu0 0.0
    %2048 = vmatpush2.msra.mxu0 0.0
    %2049 = vmatprep.subr.mxu0 0.0
    %2050 = vmatpush2.msra.mxu0 0.0
    %2051 = vmatprep.subr.mxu0 0.0
    %2052 = vmatpush2.msra.mxu0 0.0
    %2053 = vmatprep.subr.mxu0 0.0
    %2054 = vmatpush2.msra.mxu0 0.0
    %2055 = vmatprep.subr.mxu0 0.0
    %2056 = vmatpush2.msra.mxu0 0.0
    %2057 = vmatprep.subr.mxu0 0.0
    %2058 = vmatpush2.msra.mxu0 0.0
    %2059 = vmatprep.subr.mxu0 0.0
    %2060 = vmatpush2.msra.mxu0 0.0
    %2061 = vmatprep.subr.mxu0 0.0
    %2062 = vmatpush2.msra.mxu0 0.0
    %2063 = vmatprep.subr.mxu0 0.0
    %2064 = vmatpush2.msra.mxu0 0.0
    %2065 = vmatprep.subr.mxu0 0.0
    %2066 = vmatpush2.msra.mxu0 0.0
    %2067 = vmatprep.subr.mxu0 0.0
    %2068 = vmatpush2.msra.mxu0 0.0
    %2069 = vmatprep.mubr.f32.mxu0 0.0
    %2070 = vmatmul.mubr.f32.gmra.mxu0 %v1994
    %v2071 = vpop.f32.mrf.mxu0
    %v2072 = vadd.f32 0.0, %v2071
    %v2073 = vpop.f32.mrf.mxu0
    %2074 = vmatprep.mubr.f32.mxu0 0.0
    %2075 = vmatmul.mubr.f32.gmra.mxu0 %v1997
    %v2076 = vpop.f32.mrf.mxu0
    %v2077 = vadd.f32 0.0, %v2076
    %v2078 = vpop.f32.mrf.mxu0
    %2079 = vmatprep.mubr.f32.mxu0 0.0
    %2080 = vmatmul.mubr.f32.gmra.mxu0 %v2000
    %v2081 = vpop.f32.mrf.mxu0
    %v2082 = vadd.f32 0.0, %v2081
    %v2083 = vpop.f32.mrf.mxu0
    %2084 = vmatprep.mubr.f32.mxu0 0.0
    %2085 = vmatmul.mubr.f32.gmra.mxu0 %v2003
    %v2086 = vpop.f32.mrf.mxu0
    %v2087 = vadd.f32 0.0, %v2086
    %v2088 = vpop.f32.mrf.mxu0
    %2089 = vdwg.mxu0
    %2090 = vst [vmem:[#allocation7] sm:$0xff] %v1975
    %2091 = vst [vmem:[#allocation7 + $0x18] sm:$0xff] %v1980
    %2092 = vst [vmem:[#allocation7 + $0x30] sm:$0xff] %v1985
    %2093 = vst [vmem:[#allocation7 + $0x48] sm:$0xff] %v1990
    %2094 = vst [vmem:[#allocation7 + $0x60] sm:$0xff] %v2072
    %2095 = vst [vmem:[#allocation7 + $0x78] sm:$0xff] %v2077
    %2096 = vst [vmem:[#allocation7 + $0x90] sm:$0xff] %v2082
    %2097 = vst [vmem:[#allocation7 + $0xa8] sm:$0xff] %v2087
    %2098 = vmatprep.subr.mxu0 0.0
    %2099 = vmatpush1.xpose.msra.mxu0 0.0
    %2100 = vmatprep.subr.mxu0 0.0
    %2101 = vmatpush1.xpose.msra.mxu0 0.0
    %2102 = vmatprep.subr.mxu0 0.0
    %2103 = vmatpush1.xpose.msra.mxu0 0.0
    %2104 = vmatprep.subr.mxu0 0.0
    %2105 = vmatpush1.xpose.msra.mxu0 0.0
    %2106 = vmatprep.subr.mxu0 0.0
    %2107 = vmatpush1.xpose.msra.mxu0 0.0
    %2108 = vmatprep.subr.mxu0 0.0
    %2109 = vmatpush1.xpose.msra.mxu0 0.0
    %2110 = vmatprep.subr.mxu0 0.0
    %2111 = vmatpush1.xpose.msra.mxu0 0.0
    %2112 = vmatprep.subr.mxu0 0.0
    %2113 = vmatpush1.xpose.msra.mxu0 0.0
    %2114 = vmatprep.subr.mxu0 0.0
    %2115 = vmatpush1.xpose.msra.mxu0 0.0
    %2116 = vmatprep.subr.mxu0 0.0
    %2117 = vmatpush1.xpose.msra.mxu0 0.0
    %2118 = vmatprep.subr.mxu0 0.0
    %2119 = vmatpush1.xpose.msra.mxu0 0.0
    %2120 = vmatprep.subr.mxu0 0.0
    %2121 = vmatpush1.xpose.msra.mxu0 0.0
    %2122 = vmatprep.subr.mxu0 0.0
    %2123 = vmatpush1.xpose.msra.mxu0 %v1146
    %2124 = vmatprep.subr.mxu0 0.0
    %2125 = vmatpush1.xpose.msra.mxu0 %v1140
    %2126 = vmatprep.subr.mxu0 0.0
    %2127 = vmatpush1.xpose.msra.mxu0 %v1134
    %2128 = vmatprep.subr.mxu0 0.0
    %2129 = vmatpush1.xpose.msra.mxu0 %v1128
    %2130 = vmatprep.subr.mxu0 0.0
    %2131 = vmatpush2.xpose.msra.mxu0 0.0
    %2132 = vmatprep.subr.mxu0 0.0
    %2133 = vmatpush2.xpose.msra.mxu0 0.0
    %2134 = vmatprep.subr.mxu0 0.0
    %2135 = vmatpush2.xpose.msra.mxu0 0.0
    %2136 = vmatprep.subr.mxu0 0.0
    %2137 = vmatpush2.xpose.msra.mxu0 0.0
    %2138 = vmatprep.subr.mxu0 0.0
    %2139 = vmatpush2.xpose.msra.mxu0 0.0
    %2140 = vmatprep.subr.mxu0 0.0
    %2141 = vmatpush2.xpose.msra.mxu0 0.0
    %2142 = vmatprep.subr.mxu0 0.0
    %2143 = vmatpush2.xpose.msra.mxu0 0.0
    %2144 = vmatprep.subr.mxu0 0.0
    %2145 = vmatpush2.xpose.msra.mxu0 0.0
    %2146 = vmatprep.subr.mxu0 0.0
    %2147 = vmatpush2.xpose.msra.mxu0 0.0
    %2148 = vmatprep.subr.mxu0 0.0
    %2149 = vmatpush2.xpose.msra.mxu0 0.0
    %2150 = vmatprep.subr.mxu0 0.0
    %2151 = vmatpush2.xpose.msra.mxu0 0.0
    %2152 = vmatprep.subr.mxu0 0.0
    %2153 = vmatpush2.xpose.msra.mxu0 0.0
    %2154 = vmatprep.subr.mxu0 0.0
    %2155 = vmatpush2.xpose.msra.mxu0 0.0
    %2156 = vmatprep.subr.mxu0 0.0
    %2157 = vmatpush2.xpose.msra.mxu0 0.0
    %2158 = vmatprep.subr.mxu0 0.0
    %2159 = vmatpush2.xpose.msra.mxu0 0.0
    %2160 = vmatprep.subr.mxu0 0.0
    %2161 = vmatpush2.xpose.msra.mxu0 0.0
    %2162 = vmatprep.mubr.f32.mxu0 0.0
    %2163 = vmatmul.mubr.f32.gmra.mxu0 %v678
    %v2164 = vpop.f32.mrf.mxu0
    %v2165 = vadd.f32 0.0, %v2164
    %v2166 = vpop.f32.mrf.mxu0
    %2167 = vmatprep.mubr.f32.mxu0 0.0
    %2168 = vmatmul.mubr.f32.gmra.mxu0 %v684
    %v2169 = vpop.f32.mrf.mxu0
    %v2170 = vadd.f32 0.0, %v2169
    %v2171 = vpop.f32.mrf.mxu0
    %2172 = vmatprep.mubr.f32.mxu0 0.0
    %2173 = vmatmul.mubr.f32.gmra.mxu0 %v690
    %v2174 = vpop.f32.mrf.mxu0
    %v2175 = vadd.f32 0.0, %v2174
    %v2176 = vpop.f32.mrf.mxu0
    %2177 = vmatprep.mubr.f32.mxu0 0.0
    %2178 = vmatmul.mubr.f32.gmra.mxu0 %v696
    %v2179 = vpop.f32.mrf.mxu0
    %v2180 = vadd.f32 0.0, %v2179
    %v2181 = vpop.f32.mrf.mxu0
    %2182 = vdwg.mxu0
    %2183 = vmatprep.subr.mxu0 0.0
    %2184 = vmatpush1.xpose.msra.mxu0 0.0
    %2185 = vmatprep.subr.mxu0 0.0
    %2186 = vmatpush1.xpose.msra.mxu0 0.0
    %2187 = vmatprep.subr.mxu0 0.0
    %2188 = vmatpush1.xpose.msra.mxu0 0.0
    %2189 = vmatprep.subr.mxu0 0.0
    %2190 = vmatpush1.xpose.msra.mxu0 0.0
    %2191 = vmatprep.subr.mxu0 0.0
    %2192 = vmatpush1.xpose.msra.mxu0 0.0
    %2193 = vmatprep.subr.mxu0 0.0
    %2194 = vmatpush1.xpose.msra.mxu0 0.0
    %2195 = vmatprep.subr.mxu0 0.0
    %2196 = vmatpush1.xpose.msra.mxu0 0.0
    %2197 = vmatprep.subr.mxu0 0.0
    %2198 = vmatpush1.xpose.msra.mxu0 0.0
    %2199 = vmatprep.subr.mxu0 0.0
    %2200 = vmatpush1.xpose.msra.mxu0 0.0
    %2201 = vmatprep.subr.mxu0 0.0
    %2202 = vmatpush1.xpose.msra.mxu0 0.0
    %2203 = vmatprep.subr.mxu0 0.0
    %2204 = vmatpush1.xpose.msra.mxu0 0.0
    %2205 = vmatprep.subr.mxu0 0.0
    %2206 = vmatpush1.xpose.msra.mxu0 0.0
    %2207 = vmatprep.subr.mxu0 0.0
    %2208 = vmatpush1.xpose.msra.mxu0 %v1170
    %2209 = vmatprep.subr.mxu0 0.0
    %2210 = vmatpush1.xpose.msra.mxu0 %v1164
    %2211 = vmatprep.subr.mxu0 0.0
    %2212 = vmatpush1.xpose.msra.mxu0 %v1158
    %2213 = vmatprep.subr.mxu0 0.0
    %2214 = vmatpush1.xpose.msra.mxu0 %v1152
    %2215 = vmatprep.subr.mxu0 0.0
    %2216 = vmatpush2.xpose.msra.mxu0 0.0
    %2217 = vmatprep.subr.mxu0 0.0
    %2218 = vmatpush2.xpose.msra.mxu0 0.0
    %2219 = vmatprep.subr.mxu0 0.0
    %2220 = vmatpush2.xpose.msra.mxu0 0.0
    %2221 = vmatprep.subr.mxu0 0.0
    %2222 = vmatpush2.xpose.msra.mxu0 0.0
    %2223 = vmatprep.subr.mxu0 0.0
    %2224 = vmatpush2.xpose.msra.mxu0 0.0
    %2225 = vmatprep.subr.mxu0 0.0
    %2226 = vmatpush2.xpose.msra.mxu0 0.0
    %2227 = vmatprep.subr.mxu0 0.0
    %2228 = vmatpush2.xpose.msra.mxu0 0.0
    %2229 = vmatprep.subr.mxu0 0.0
    %2230 = vmatpush2.xpose.msra.mxu0 0.0
    %2231 = vmatprep.subr.mxu0 0.0
    %2232 = vmatpush2.xpose.msra.mxu0 0.0
    %2233 = vmatprep.subr.mxu0 0.0
    %2234 = vmatpush2.xpose.msra.mxu0 0.0
    %2235 = vmatprep.subr.mxu0 0.0
    %2236 = vmatpush2.xpose.msra.mxu0 0.0
    %2237 = vmatprep.subr.mxu0 0.0
    %2238 = vmatpush2.xpose.msra.mxu0 0.0
    %2239 = vmatprep.subr.mxu0 0.0
    %2240 = vmatpush2.xpose.msra.mxu0 0.0
    %2241 = vmatprep.subr.mxu0 0.0
    %2242 = vmatpush2.xpose.msra.mxu0 0.0
    %2243 = vmatprep.subr.mxu0 0.0
    %2244 = vmatpush2.xpose.msra.mxu0 0.0
    %2245 = vmatprep.subr.mxu0 0.0
    %2246 = vmatpush2.xpose.msra.mxu0 0.0
    %2247 = vmatprep.mubr.f32.mxu0 0.0
    %2248 = vmatmul.mubr.f32.gmra.mxu0 %v702
    %v2249 = vpop.f32.mrf.mxu0
    %v2250 = vadd.f32 0.0, %v2249
    %v2251 = vpop.f32.mrf.mxu0
    %2252 = vmatprep.mubr.f32.mxu0 0.0
    %2253 = vmatmul.mubr.f32.gmra.mxu0 %v708
    %v2254 = vpop.f32.mrf.mxu0
    %v2255 = vadd.f32 0.0, %v2254
    %v2256 = vpop.f32.mrf.mxu0
    %2257 = vmatprep.mubr.f32.mxu0 0.0
    %2258 = vmatmul.mubr.f32.gmra.mxu0 %v714
    %v2259 = vpop.f32.mrf.mxu0
    %v2260 = vadd.f32 0.0, %v2259
    %v2261 = vpop.f32.mrf.mxu0
    %2262 = vmatprep.mubr.f32.mxu0 0.0
    %2263 = vmatmul.mubr.f32.gmra.mxu0 %v720
    %v2264 = vpop.f32.mrf.mxu0
    %v2265 = vadd.f32 0.0, %v2264
    %v2266 = vpop.f32.mrf.mxu0
    %2267 = vdwg.mxu0
    %v2268 = vsel %vm1795, %v2165, -1e+30
    %v2269 = vsel %vm1796, %v2170, -1e+30
    %v2270 = vsel %vm1797, %v2175, -1e+30
    %v2271 = vsel %vm1798, %v2180, -1e+30
    %v2272 = vsel %vm1795, %v2250, -1e+30
    %v2273 = vsel %vm1796, %v2255, -1e+30
    %v2274 = vsel %vm1797, %v2260, -1e+30
    %v2275 = vsel %vm1798, %v2265, -1e+30
    %v2276 = vsel %vm1807, %v2268, -inf
    %2277 = vmax.xlane.f32.xlu0 %v2276
    %v2278 = vpop.xlane.xlu0 %2277
    %v2279 = vsel %vm1807, %v2269, -inf
    %2280 = vmax.xlane.f32.xlu0 %v2279
    %v2281 = vpop.xlane.xlu0 %2280
    %v2282 = vsel %vm1807, %v2270, -inf
    %2283 = vmax.xlane.f32.xlu0 %v2282
    %v2284 = vpop.xlane.xlu0 %2283
    %v2285 = vsel %vm1807, %v2271, -inf
    %2286 = vmax.xlane.f32.xlu0 %v2285
    %v2287 = vpop.xlane.xlu0 %2286
    %v2288 = vsel %vm1807, %v2272, -inf
    %2289 = vmax.xlane.f32.xlu0 %v2288
    %v2290 = vpop.xlane.xlu0 %2289
    %v2291 = vsel %vm1807, %v2273, -inf
    %2292 = vmax.xlane.f32.xlu0 %v2291
    %v2293 = vpop.xlane.xlu0 %2292
    %v2294 = vsel %vm1807, %v2274, -inf
    %2295 = vmax.xlane.f32.xlu0 %v2294
    %v2296 = vpop.xlane.xlu0 %2295
    %v2297 = vsel %vm1807, %v2275, -inf
    %2298 = vmax.xlane.f32.xlu0 %v2297
    %v2299 = vpop.xlane.xlu0 %2298
    %v2300 = vsub.f32 %v2268, %v2278
    %v2301 = vsub.f32 %v2269, %v2281
    %v2302 = vsub.f32 %v2270, %v2284
    %v2303 = vsub.f32 %v2271, %v2287
    %v2304 = vsub.f32 %v2272, %v2290
    %v2305 = vsub.f32 %v2273, %v2293
    %v2306 = vsub.f32 %v2274, %v2296
    %v2307 = vsub.f32 %v2275, %v2299
    %v2308 = vmul.f32 %v2300, 1.442695
    %v2309 = vpow.pop %v2308
    %v2310 = vmul.f32 %v2301, 1.442695
    %v2311 = vpow.pop %v2310
    %v2312 = vmul.f32 %v2302, 1.442695
    %v2313 = vpow.pop %v2312
    %v2314 = vmul.f32 %v2303, 1.442695
    %v2315 = vpow.pop %v2314
    %v2316 = vmul.f32 %v2304, 1.442695
    %v2317 = vpow.pop %v2316
    %v2318 = vmul.f32 %v2305, 1.442695
    %v2319 = vpow.pop %v2318
    %v2320 = vmul.f32 %v2306, 1.442695
    %v2321 = vpow.pop %v2320
    %v2322 = vmul.f32 %v2307, 1.442695
    %v2323 = vpow.pop %v2322
    %v2324 = vsel %vm1807, %v2309, 0.0
    %2325 = vadd.xlane.f32.xlu0 %v2324
    %v2326 = vpop.xlane.xlu0 %2325
    %v2327 = vsel %vm1807, %v2311, 0.0
    %2328 = vadd.xlane.f32.xlu0 %v2327
    %v2329 = vpop.xlane.xlu0 %2328
    %v2330 = vsel %vm1807, %v2313, 0.0
    %2331 = vadd.xlane.f32.xlu0 %v2330
    %v2332 = vpop.xlane.xlu0 %2331
    %v2333 = vsel %vm1807, %v2315, 0.0
    %2334 = vadd.xlane.f32.xlu0 %v2333
    %v2335 = vpop.xlane.xlu0 %2334
    %v2336 = vsel %vm1807, %v2317, 0.0
    %2337 = vadd.xlane.f32.xlu0 %v2336
    %v2338 = vpop.xlane.xlu0 %2337
    %v2339 = vsel %vm1807, %v2319, 0.0
    %2340 = vadd.xlane.f32.xlu0 %v2339
    %v2341 = vpop.xlane.xlu0 %2340
    %v2342 = vsel %vm1807, %v2321, 0.0
    %2343 = vadd.xlane.f32.xlu0 %v2342
    %v2344 = vpop.xlane.xlu0 %2343
    %v2345 = vsel %vm1807, %v2323, 0.0
    %2346 = vadd.xlane.f32.xlu0 %v2345
    %v2347 = vpop.xlane.xlu0 %2346
    %v2348 = vrcp.pop %v2326
    %v2349 = vmul.f32 %v2309, %v2348
    %v2350 = vrcp.pop %v2329
    %v2351 = vmul.f32 %v2311, %v2350
    %v2352 = vrcp.pop %v2332
    %v2353 = vmul.f32 %v2313, %v2352
    %v2354 = vrcp.pop %v2335
    %v2355 = vmul.f32 %v2315, %v2354
    %v2356 = vrcp.pop %v2338
    %v2357 = vmul.f32 %v2317, %v2356
    %v2358 = vrcp.pop %v2341
    %v2359 = vmul.f32 %v2319, %v2358
    %v2360 = vrcp.pop %v2344
    %v2361 = vmul.f32 %v2321, %v2360
    %v2362 = vrcp.pop %v2347
    %v2363 = vmul.f32 %v2323, %v2362
    %v2365 = vsel %vm1807, %v2349, 0
    %v2368 = vsel %vm1807, %v2351, 0
    %v2371 = vsel %vm1807, %v2353, 0
    %v2374 = vsel %vm1807, %v2355, 0
    %2376 = vmatprep.subr.mxu0 0.0
    %2377 = vmatpush1.msra.mxu0 0.0
    %2378 = vmatprep.subr.mxu0 0.0
    %2379 = vmatpush1.msra.mxu0 0.0
    %2380 = vmatprep.subr.mxu0 0.0
    %2381 = vmatpush1.msra.mxu0 0.0
    %2382 = vmatprep.subr.mxu0 0.0
    %2383 = vmatpush1.msra.mxu0 0.0
    %2384 = vmatprep.subr.mxu0 0.0
    %2385 = vmatpush1.msra.mxu0 0.0
    %2386 = vmatprep.subr.mxu0 0.0
    %2387 = vmatpush1.msra.mxu0 0.0
    %2388 = vmatprep.subr.mxu0 0.0
    %2389 = vmatpush1.msra.mxu0 0.0
    %2390 = vmatprep.subr.mxu0 0.0
    %2391 = vmatpush1.msra.mxu0 0.0
    %2392 = vmatprep.subr.mxu0 0.0
    %2393 = vmatpush1.msra.mxu0 0.0
    %2394 = vmatprep.subr.mxu0 0.0
    %2395 = vmatpush1.msra.mxu0 0.0
    %2396 = vmatprep.subr.mxu0 0.0
    %2397 = vmatpush1.msra.mxu0 0.0
    %2398 = vmatprep.subr.mxu0 0.0
    %2399 = vmatpush1.msra.mxu0 0.0
    %2400 = vmatprep.subr.mxu0 0.0
    %2401 = vmatpush1.msra.mxu0 %v1374
    %2402 = vmatprep.subr.mxu0 0.0
    %2403 = vmatpush1.msra.mxu0 %v1368
    %2404 = vmatprep.subr.mxu0 0.0
    %2405 = vmatpush1.msra.mxu0 %v1362
    %2406 = vmatprep.subr.mxu0 0.0
    %2407 = vmatpush1.msra.mxu0 %v1356
    %2408 = vmatprep.subr.mxu0 0.0
    %2409 = vmatpush2.msra.mxu0 0.0
    %2410 = vmatprep.subr.mxu0 0.0
    %2411 = vmatpush2.msra.mxu0 0.0
    %2412 = vmatprep.subr.mxu0 0.0
    %2413 = vmatpush2.msra.mxu0 0.0
    %2414 = vmatprep.subr.mxu0 0.0
    %2415 = vmatpush2.msra.mxu0 0.0
    %2416 = vmatprep.subr.mxu0 0.0
    %2417 = vmatpush2.msra.mxu0 0.0
    %2418 = vmatprep.subr.mxu0 0.0
    %2419 = vmatpush2.msra.mxu0 0.0
    %2420 = vmatprep.subr.mxu0 0.0
    %2421 = vmatpush2.msra.mxu0 0.0
    %2422 = vmatprep.subr.mxu0 0.0
    %2423 = vmatpush2.msra.mxu0 0.0
    %2424 = vmatprep.subr.mxu0 0.0
    %2425 = vmatpush2.msra.mxu0 0.0
    %2426 = vmatprep.subr.mxu0 0.0
    %2427 = vmatpush2.msra.mxu0 0.0
    %2428 = vmatprep.subr.mxu0 0.0
    %2429 = vmatpush2.msra.mxu0 0.0
    %2430 = vmatprep.subr.mxu0 0.0
    %2431 = vmatpush2.msra.mxu0 0.0
    %2432 = vmatprep.subr.mxu0 0.0
    %2433 = vmatpush2.msra.mxu0 0.0
    %2434 = vmatprep.subr.mxu0 0.0
    %2435 = vmatpush2.msra.mxu0 0.0
    %2436 = vmatprep.subr.mxu0 0.0
    %2437 = vmatpush2.msra.mxu0 0.0
    %2438 = vmatprep.subr.mxu0 0.0
    %2439 = vmatpush2.msra.mxu0 0.0
    %2440 = vmatprep.mubr.f32.mxu0 0.0
    %2441 = vmatmul.mubr.f32.gmra.mxu0 %v2365
    %v2442 = vpop.f32.mrf.mxu0
    %v2443 = vadd.f32 0.0, %v2442
    %v2444 = vpop.f32.mrf.mxu0
    %2445 = vmatprep.mubr.f32.mxu0 0.0
    %2446 = vmatmul.mubr.f32.gmra.mxu0 %v2368
    %v2447 = vpop.f32.mrf.mxu0
    %v2448 = vadd.f32 0.0, %v2447
    %v2449 = vpop.f32.mrf.mxu0
    %2450 = vmatprep.mubr.f32.mxu0 0.0
    %2451 = vmatmul.mubr.f32.gmra.mxu0 %v2371
    %v2452 = vpop.f32.mrf.mxu0
    %v2453 = vadd.f32 0.0, %v2452
    %v2454 = vpop.f32.mrf.mxu0
    %2455 = vmatprep.mubr.f32.mxu0 0.0
    %2456 = vmatmul.mubr.f32.gmra.mxu0 %v2374
    %v2457 = vpop.f32.mrf.mxu0
    %v2458 = vadd.f32 0.0, %v2457
    %v2459 = vpop.f32.mrf.mxu0
    %2460 = vdwg.mxu0
    %v2462 = vsel %vm1807, %v2357, 0
    %v2465 = vsel %vm1807, %v2359, 0
    %v2468 = vsel %vm1807, %v2361, 0
    %v2471 = vsel %vm1807, %v2363, 0
    %2473 = vmatprep.subr.mxu0 0.0
    %2474 = vmatpush1.msra.mxu0 0.0
    %2475 = vmatprep.subr.mxu0 0.0
    %2476 = vmatpush1.msra.mxu0 0.0
    %2477 = vmatprep.subr.mxu0 0.0
    %2478 = vmatpush1.msra.mxu0 0.0
    %2479 = vmatprep.subr.mxu0 0.0
    %2480 = vmatpush1.msra.mxu0 0.0
    %2481 = vmatprep.subr.mxu0 0.0
    %2482 = vmatpush1.msra.mxu0 0.0
    %2483 = vmatprep.subr.mxu0 0.0
    %2484 = vmatpush1.msra.mxu0 0.0
    %2485 = vmatprep.subr.mxu0 0.0
    %2486 = vmatpush1.msra.mxu0 0.0
    %2487 = vmatprep.subr.mxu0 0.0
    %2488 = vmatpush1.msra.mxu0 0.0
    %2489 = vmatprep.subr.mxu0 0.0
    %2490 = vmatpush1.msra.mxu0 0.0
    %2491 = vmatprep.subr.mxu0 0.0
    %2492 = vmatpush1.msra.mxu0 0.0
    %2493 = vmatprep.subr.mxu0 0.0
    %2494 = vmatpush1.msra.mxu0 0.0
    %2495 = vmatprep.subr.mxu0 0.0
    %2496 = vmatpush1.msra.mxu0 0.0
    %2497 = vmatprep.subr.mxu0 0.0
    %2498 = vmatpush1.msra.mxu0 %v1398
    %2499 = vmatprep.subr.mxu0 0.0
    %2500 = vmatpush1.msra.mxu0 %v1392
    %2501 = vmatprep.subr.mxu0 0.0
    %2502 = vmatpush1.msra.mxu0 %v1386
    %2503 = vmatprep.subr.mxu0 0.0
    %2504 = vmatpush1.msra.mxu0 %v1380
    %2505 = vmatprep.subr.mxu0 0.0
    %2506 = vmatpush2.msra.mxu0 0.0
    %2507 = vmatprep.subr.mxu0 0.0
    %2508 = vmatpush2.msra.mxu0 0.0
    %2509 = vmatprep.subr.mxu0 0.0
    %2510 = vmatpush2.msra.mxu0 0.0
    %2511 = vmatprep.subr.mxu0 0.0
    %2512 = vmatpush2.msra.mxu0 0.0
    %2513 = vmatprep.subr.mxu0 0.0
    %2514 = vmatpush2.msra.mxu0 0.0
    %2515 = vmatprep.subr.mxu0 0.0
    %2516 = vmatpush2.msra.mxu0 0.0
    %2517 = vmatprep.subr.mxu0 0.0
    %2518 = vmatpush2.msra.mxu0 0.0
    %2519 = vmatprep.subr.mxu0 0.0
    %2520 = vmatpush2.msra.mxu0 0.0
    %2521 = vmatprep.subr.mxu0 0.0
    %2522 = vmatpush2.msra.mxu0 0.0
    %2523 = vmatprep.subr.mxu0 0.0
    %2524 = vmatpush2.msra.mxu0 0.0
    %2525 = vmatprep.subr.mxu0 0.0
    %2526 = vmatpush2.msra.mxu0 0.0
    %2527 = vmatprep.subr.mxu0 0.0
    %2528 = vmatpush2.msra.mxu0 0.0
    %2529 = vmatprep.subr.mxu0 0.0
    %2530 = vmatpush2.msra.mxu0 0.0
    %2531 = vmatprep.subr.mxu0 0.0
    %2532 = vmatpush2.msra.mxu0 0.0
    %2533 = vmatprep.subr.mxu0 0.0
    %2534 = vmatpush2.msra.mxu0 0.0
    %2535 = vmatprep.subr.mxu0 0.0
    %2536 = vmatpush2.msra.mxu0 0.0
    %2537 = vmatprep.mubr.f32.mxu0 0.0
    %2538 = vmatmul.mubr.f32.gmra.mxu0 %v2462
    %v2539 = vpop.f32.mrf.mxu0
    %v2540 = vadd.f32 0.0, %v2539
    %v2541 = vpop.f32.mrf.mxu0
    %2542 = vmatprep.mubr.f32.mxu0 0.0
    %2543 = vmatmul.mubr.f32.gmra.mxu0 %v2465
    %v2544 = vpop.f32.mrf.mxu0
    %v2545 = vadd.f32 0.0, %v2544
    %v2546 = vpop.f32.mrf.mxu0
    %2547 = vmatprep.mubr.f32.mxu0 0.0
    %2548 = vmatmul.mubr.f32.gmra.mxu0 %v2468
    %v2549 = vpop.f32.mrf.mxu0
    %v2550 = vadd.f32 0.0, %v2549
    %v2551 = vpop.f32.mrf.mxu0
    %2552 = vmatprep.mubr.f32.mxu0 0.0
    %2553 = vmatmul.mubr.f32.gmra.mxu0 %v2471
    %v2554 = vpop.f32.mrf.mxu0
    %v2555 = vadd.f32 0.0, %v2554
    %v2556 = vpop.f32.mrf.mxu0
    %2557 = vdwg.mxu0
    %2558 = vst [vmem:[#allocation7 + $0x8] sm:$0xff] %v2443
    %2559 = vst [vmem:[#allocation7 + $0x20] sm:$0xff] %v2448
    %2560 = vst [vmem:[#allocation7 + $0x38] sm:$0xff] %v2453
    %2561 = vst [vmem:[#allocation7 + $0x50] sm:$0xff] %v2458
    %2562 = vst [vmem:[#allocation7 + $0x68] sm:$0xff] %v2540
    %2563 = vst [vmem:[#allocation7 + $0x80] sm:$0xff] %v2545
    %2564 = vst [vmem:[#allocation7 + $0x98] sm:$0xff] %v2550
    %2565 = vst [vmem:[#allocation7 + $0xb0] sm:$0xff] %v2555
    %2566 = vmatprep.subr.mxu0 0.0
    %2567 = vmatpush1.xpose.msra.mxu0 0.0
    %2568 = vmatprep.subr.mxu0 0.0
    %2569 = vmatpush1.xpose.msra.mxu0 0.0
    %2570 = vmatprep.subr.mxu0 0.0
    %2571 = vmatpush1.xpose.msra.mxu0 0.0
    %2572 = vmatprep.subr.mxu0 0.0
    %2573 = vmatpush1.xpose.msra.mxu0 0.0
    %2574 = vmatprep.subr.mxu0 0.0
    %2575 = vmatpush1.xpose.msra.mxu0 0.0
    %2576 = vmatprep.subr.mxu0 0.0
    %2577 = vmatpush1.xpose.msra.mxu0 0.0
    %2578 = vmatprep.subr.mxu0 0.0
    %2579 = vmatpush1.xpose.msra.mxu0 0.0
    %2580 = vmatprep.subr.mxu0 0.0
    %2581 = vmatpush1.xpose.msra.mxu0 0.0
    %2582 = vmatprep.subr.mxu0 0.0
    %2583 = vmatpush1.xpose.msra.mxu0 0.0
    %2584 = vmatprep.subr.mxu0 0.0
    %2585 = vmatpush1.xpose.msra.mxu0 0.0
    %2586 = vmatprep.subr.mxu0 0.0
    %2587 = vmatpush1.xpose.msra.mxu0 0.0
    %2588 = vmatprep.subr.mxu0 0.0
    %2589 = vmatpush1.xpose.msra.mxu0 0.0
    %2590 = vmatprep.subr.mxu0 0.0
    %2591 = vmatpush1.xpose.msra.mxu0 %v1148
    %2592 = vmatprep.subr.mxu0 0.0
    %2593 = vmatpush1.xpose.msra.mxu0 %v1142
    %2594 = vmatprep.subr.mxu0 0.0
    %2595 = vmatpush1.xpose.msra.mxu0 %v1136
    %2596 = vmatprep.subr.mxu0 0.0
    %2597 = vmatpush1.xpose.msra.mxu0 %v1130
    %2598 = vmatprep.subr.mxu0 0.0
    %2599 = vmatpush2.xpose.msra.mxu0 0.0
    %2600 = vmatprep.subr.mxu0 0.0
    %2601 = vmatpush2.xpose.msra.mxu0 0.0
    %2602 = vmatprep.subr.mxu0 0.0
    %2603 = vmatpush2.xpose.msra.mxu0 0.0
    %2604 = vmatprep.subr.mxu0 0.0
    %2605 = vmatpush2.xpose.msra.mxu0 0.0
    %2606 = vmatprep.subr.mxu0 0.0
    %2607 = vmatpush2.xpose.msra.mxu0 0.0
    %2608 = vmatprep.subr.mxu0 0.0
    %2609 = vmatpush2.xpose.msra.mxu0 0.0
    %2610 = vmatprep.subr.mxu0 0.0
    %2611 = vmatpush2.xpose.msra.mxu0 0.0
    %2612 = vmatprep.subr.mxu0 0.0
    %2613 = vmatpush2.xpose.msra.mxu0 0.0
    %2614 = vmatprep.subr.mxu0 0.0
    %2615 = vmatpush2.xpose.msra.mxu0 0.0
    %2616 = vmatprep.subr.mxu0 0.0
    %2617 = vmatpush2.xpose.msra.mxu0 0.0
    %2618 = vmatprep.subr.mxu0 0.0
    %2619 = vmatpush2.xpose.msra.mxu0 0.0
    %2620 = vmatprep.subr.mxu0 0.0
    %2621 = vmatpush2.xpose.msra.mxu0 0.0
    %2622 = vmatprep.subr.mxu0 0.0
    %2623 = vmatpush2.xpose.msra.mxu0 0.0
    %2624 = vmatprep.subr.mxu0 0.0
    %2625 = vmatpush2.xpose.msra.mxu0 0.0
    %2626 = vmatprep.subr.mxu0 0.0
    %2627 = vmatpush2.xpose.msra.mxu0 0.0
    %2628 = vmatprep.subr.mxu0 0.0
    %2629 = vmatpush2.xpose.msra.mxu0 0.0
    %2630 = vmatprep.mubr.f32.mxu0 0.0
    %2631 = vmatmul.mubr.f32.gmra.mxu0 %v902
    %v2632 = vpop.f32.mrf.mxu0
    %v2633 = vadd.f32 0.0, %v2632
    %v2634 = vpop.f32.mrf.mxu0
    %2635 = vmatprep.mubr.f32.mxu0 0.0
    %2636 = vmatmul.mubr.f32.gmra.mxu0 %v908
    %v2637 = vpop.f32.mrf.mxu0
    %v2638 = vadd.f32 0.0, %v2637
    %v2639 = vpop.f32.mrf.mxu0
    %2640 = vmatprep.mubr.f32.mxu0 0.0
    %2641 = vmatmul.mubr.f32.gmra.mxu0 %v914
    %v2642 = vpop.f32.mrf.mxu0
    %v2643 = vadd.f32 0.0, %v2642
    %v2644 = vpop.f32.mrf.mxu0
    %2645 = vmatprep.mubr.f32.mxu0 0.0
    %2646 = vmatmul.mubr.f32.gmra.mxu0 %v920
    %v2647 = vpop.f32.mrf.mxu0
    %v2648 = vadd.f32 0.0, %v2647
    %v2649 = vpop.f32.mrf.mxu0
    %2650 = vdwg.mxu0
    %2651 = vmatprep.subr.mxu0 0.0
    %2652 = vmatpush1.xpose.msra.mxu0 0.0
    %2653 = vmatprep.subr.mxu0 0.0
    %2654 = vmatpush1.xpose.msra.mxu0 0.0
    %2655 = vmatprep.subr.mxu0 0.0
    %2656 = vmatpush1.xpose.msra.mxu0 0.0
    %2657 = vmatprep.subr.mxu0 0.0
    %2658 = vmatpush1.xpose.msra.mxu0 0.0
    %2659 = vmatprep.subr.mxu0 0.0
    %2660 = vmatpush1.xpose.msra.mxu0 0.0
    %2661 = vmatprep.subr.mxu0 0.0
    %2662 = vmatpush1.xpose.msra.mxu0 0.0
    %2663 = vmatprep.subr.mxu0 0.0
    %2664 = vmatpush1.xpose.msra.mxu0 0.0
    %2665 = vmatprep.subr.mxu0 0.0
    %2666 = vmatpush1.xpose.msra.mxu0 0.0
    %2667 = vmatprep.subr.mxu0 0.0
    %2668 = vmatpush1.xpose.msra.mxu0 0.0
    %2669 = vmatprep.subr.mxu0 0.0
    %2670 = vmatpush1.xpose.msra.mxu0 0.0
    %2671 = vmatprep.subr.mxu0 0.0
    %2672 = vmatpush1.xpose.msra.mxu0 0.0
    %2673 = vmatprep.subr.mxu0 0.0
    %2674 = vmatpush1.xpose.msra.mxu0 0.0
    %2675 = vmatprep.subr.mxu0 0.0
    %2676 = vmatpush1.xpose.msra.mxu0 %v1172
    %2677 = vmatprep.subr.mxu0 0.0
    %2678 = vmatpush1.xpose.msra.mxu0 %v1166
    %2679 = vmatprep.subr.mxu0 0.0
    %2680 = vmatpush1.xpose.msra.mxu0 %v1160
    %2681 = vmatprep.subr.mxu0 0.0
    %2682 = vmatpush1.xpose.msra.mxu0 %v1154
    %2683 = vmatprep.subr.mxu0 0.0
    %2684 = vmatpush2.xpose.msra.mxu0 0.0
    %2685 = vmatprep.subr.mxu0 0.0
    %2686 = vmatpush2.xpose.msra.mxu0 0.0
    %2687 = vmatprep.subr.mxu0 0.0
    %2688 = vmatpush2.xpose.msra.mxu0 0.0
    %2689 = vmatprep.subr.mxu0 0.0
    %2690 = vmatpush2.xpose.msra.mxu0 0.0
    %2691 = vmatprep.subr.mxu0 0.0
    %2692 = vmatpush2.xpose.msra.mxu0 0.0
    %2693 = vmatprep.subr.mxu0 0.0
    %2694 = vmatpush2.xpose.msra.mxu0 0.0
    %2695 = vmatprep.subr.mxu0 0.0
    %2696 = vmatpush2.xpose.msra.mxu0 0.0
    %2697 = vmatprep.subr.mxu0 0.0
    %2698 = vmatpush2.xpose.msra.mxu0 0.0
    %2699 = vmatprep.subr.mxu0 0.0
    %2700 = vmatpush2.xpose.msra.mxu0 0.0
    %2701 = vmatprep.subr.mxu0 0.0
    %2702 = vmatpush2.xpose.msra.mxu0 0.0
    %2703 = vmatprep.subr.mxu0 0.0
    %2704 = vmatpush2.xpose.msra.mxu0 0.0
    %2705 = vmatprep.subr.mxu0 0.0
    %2706 = vmatpush2.xpose.msra.mxu0 0.0
    %2707 = vmatprep.subr.mxu0 0.0
    %2708 = vmatpush2.xpose.msra.mxu0 0.0
    %2709 = vmatprep.subr.mxu0 0.0
    %2710 = vmatpush2.xpose.msra.mxu0 0.0
    %2711 = vmatprep.subr.mxu0 0.0
    %2712 = vmatpush2.xpose.msra.mxu0 0.0
    %2713 = vmatprep.subr.mxu0 0.0
    %2714 = vmatpush2.xpose.msra.mxu0 0.0
    %2715 = vmatprep.mubr.f32.mxu0 0.0
    %2716 = vmatmul.mubr.f32.gmra.mxu0 %v926
    %v2717 = vpop.f32.mrf.mxu0
    %v2718 = vadd.f32 0.0, %v2717
    %v2719 = vpop.f32.mrf.mxu0
    %2720 = vmatprep.mubr.f32.mxu0 0.0
    %2721 = vmatmul.mubr.f32.gmra.mxu0 %v932
    %v2722 = vpop.f32.mrf.mxu0
    %v2723 = vadd.f32 0.0, %v2722
    %v2724 = vpop.f32.mrf.mxu0
    %2725 = vmatprep.mubr.f32.mxu0 0.0
    %2726 = vmatmul.mubr.f32.gmra.mxu0 %v938
    %v2727 = vpop.f32.mrf.mxu0
    %v2728 = vadd.f32 0.0, %v2727
    %v2729 = vpop.f32.mrf.mxu0
    %2730 = vmatprep.mubr.f32.mxu0 0.0
    %2731 = vmatmul.mubr.f32.gmra.mxu0 %v944
    %v2732 = vpop.f32.mrf.mxu0
    %v2733 = vadd.f32 0.0, %v2732
    %v2734 = vpop.f32.mrf.mxu0
    %2735 = vdwg.mxu0
    %v2736 = vsel %vm1795, %v2633, -1e+30
    %v2737 = vsel %vm1796, %v2638, -1e+30
    %v2738 = vsel %vm1797, %v2643, -1e+30
    %v2739 = vsel %vm1798, %v2648, -1e+30
    %v2740 = vsel %vm1795, %v2718, -1e+30
    %v2741 = vsel %vm1796, %v2723, -1e+30
    %v2742 = vsel %vm1797, %v2728, -1e+30
    %v2743 = vsel %vm1798, %v2733, -1e+30
    %v2744 = vsel %vm1807, %v2736, -inf
    %2745 = vmax.xlane.f32.xlu0 %v2744
    %v2746 = vpop.xlane.xlu0 %2745
    %v2747 = vsel %vm1807, %v2737, -inf
    %2748 = vmax.xlane.f32.xlu0 %v2747
    %v2749 = vpop.xlane.xlu0 %2748
    %v2750 = vsel %vm1807, %v2738, -inf
    %2751 = vmax.xlane.f32.xlu0 %v2750
    %v2752 = vpop.xlane.xlu0 %2751
    %v2753 = vsel %vm1807, %v2739, -inf
    %2754 = vmax.xlane.f32.xlu0 %v2753
    %v2755 = vpop.xlane.xlu0 %2754
    %v2756 = vsel %vm1807, %v2740, -inf
    %2757 = vmax.xlane.f32.xlu0 %v2756
    %v2758 = vpop.xlane.xlu0 %2757
    %v2759 = vsel %vm1807, %v2741, -inf
    %2760 = vmax.xlane.f32.xlu0 %v2759
    %v2761 = vpop.xlane.xlu0 %2760
    %v2762 = vsel %vm1807, %v2742, -inf
    %2763 = vmax.xlane.f32.xlu0 %v2762
    %v2764 = vpop.xlane.xlu0 %2763
    %v2765 = vsel %vm1807, %v2743, -inf
    %2766 = vmax.xlane.f32.xlu0 %v2765
    %v2767 = vpop.xlane.xlu0 %2766
    %v2768 = vsub.f32 %v2736, %v2746
    %v2769 = vsub.f32 %v2737, %v2749
    %v2770 = vsub.f32 %v2738, %v2752
    %v2771 = vsub.f32 %v2739, %v2755
    %v2772 = vsub.f32 %v2740, %v2758
    %v2773 = vsub.f32 %v2741, %v2761
    %v2774 = vsub.f32 %v2742, %v2764
    %v2775 = vsub.f32 %v2743, %v2767
    %v2776 = vmul.f32 %v2768, 1.442695
    %v2777 = vpow.pop %v2776
    %v2778 = vmul.f32 %v2769, 1.442695
    %v2779 = vpow.pop %v2778
    %v2780 = vmul.f32 %v2770, 1.442695
    %v2781 = vpow.pop %v2780
    %v2782 = vmul.f32 %v2771, 1.442695
    %v2783 = vpow.pop %v2782
    %v2784 = vmul.f32 %v2772, 1.442695
    %v2785 = vpow.pop %v2784
    %v2786 = vmul.f32 %v2773, 1.442695
    %v2787 = vpow.pop %v2786
    %v2788 = vmul.f32 %v2774, 1.442695
    %v2789 = vpow.pop %v2788
    %v2790 = vmul.f32 %v2775, 1.442695
    %v2791 = vpow.pop %v2790
    %v2792 = vsel %vm1807, %v2777, 0.0
    %2793 = vadd.xlane.f32.xlu0 %v2792
    %v2794 = vpop.xlane.xlu0 %2793
    %v2795 = vsel %vm1807, %v2779, 0.0
    %2796 = vadd.xlane.f32.xlu0 %v2795
    %v2797 = vpop.xlane.xlu0 %2796
    %v2798 = vsel %vm1807, %v2781, 0.0
    %2799 = vadd.xlane.f32.xlu0 %v2798
    %v2800 = vpop.xlane.xlu0 %2799
    %v2801 = vsel %vm1807, %v2783, 0.0
    %2802 = vadd.xlane.f32.xlu0 %v2801
    %v2803 = vpop.xlane.xlu0 %2802
    %v2804 = vsel %vm1807, %v2785, 0.0
    %2805 = vadd.xlane.f32.xlu0 %v2804
    %v2806 = vpop.xlane.xlu0 %2805
    %v2807 = vsel %vm1807, %v2787, 0.0
    %2808 = vadd.xlane.f32.xlu0 %v2807
    %v2809 = vpop.xlane.xlu0 %2808
    %v2810 = vsel %vm1807, %v2789, 0.0
    %2811 = vadd.xlane.f32.xlu0 %v2810
    %v2812 = vpop.xlane.xlu0 %2811
    %v2813 = vsel %vm1807, %v2791, 0.0
    %2814 = vadd.xlane.f32.xlu0 %v2813
    %v2815 = vpop.xlane.xlu0 %2814
    %v2816 = vrcp.pop %v2794
    %v2817 = vmul.f32 %v2777, %v2816
    %v2818 = vrcp.pop %v2797
    %v2819 = vmul.f32 %v2779, %v2818
    %v2820 = vrcp.pop %v2800
    %v2821 = vmul.f32 %v2781, %v2820
    %v2822 = vrcp.pop %v2803
    %v2823 = vmul.f32 %v2783, %v2822
    %v2824 = vrcp.pop %v2806
    %v2825 = vmul.f32 %v2785, %v2824
    %v2826 = vrcp.pop %v2809
    %v2827 = vmul.f32 %v2787, %v2826
    %v2828 = vrcp.pop %v2812
    %v2829 = vmul.f32 %v2789, %v2828
    %v2830 = vrcp.pop %v2815
    %v2831 = vmul.f32 %v2791, %v2830
    %v2833 = vsel %vm1807, %v2817, 0
    %v2836 = vsel %vm1807, %v2819, 0
    %v2839 = vsel %vm1807, %v2821, 0
    %v2842 = vsel %vm1807, %v2823, 0
    %2844 = vmatprep.subr.mxu0 0.0
    %2845 = vmatpush1.msra.mxu0 0.0
    %2846 = vmatprep.subr.mxu0 0.0
    %2847 = vmatpush1.msra.mxu0 0.0
    %2848 = vmatprep.subr.mxu0 0.0
    %2849 = vmatpush1.msra.mxu0 0.0
    %2850 = vmatprep.subr.mxu0 0.0
    %2851 = vmatpush1.msra.mxu0 0.0
    %2852 = vmatprep.subr.mxu0 0.0
    %2853 = vmatpush1.msra.mxu0 0.0
    %2854 = vmatprep.subr.mxu0 0.0
    %2855 = vmatpush1.msra.mxu0 0.0
    %2856 = vmatprep.subr.mxu0 0.0
    %2857 = vmatpush1.msra.mxu0 0.0
    %2858 = vmatprep.subr.mxu0 0.0
    %2859 = vmatpush1.msra.mxu0 0.0
    %2860 = vmatprep.subr.mxu0 0.0
    %2861 = vmatpush1.msra.mxu0 0.0
    %2862 = vmatprep.subr.mxu0 0.0
    %2863 = vmatpush1.msra.mxu0 0.0
    %2864 = vmatprep.subr.mxu0 0.0
    %2865 = vmatpush1.msra.mxu0 0.0
    %2866 = vmatprep.subr.mxu0 0.0
    %2867 = vmatpush1.msra.mxu0 0.0
    %2868 = vmatprep.subr.mxu0 0.0
    %2869 = vmatpush1.msra.mxu0 %v1587
    %2870 = vmatprep.subr.mxu0 0.0
    %2871 = vmatpush1.msra.mxu0 %v1582
    %2872 = vmatprep.subr.mxu0 0.0
    %2873 = vmatpush1.msra.mxu0 %v1577
    %2874 = vmatprep.subr.mxu0 0.0
    %2875 = vmatpush1.msra.mxu0 %v1572
    %2876 = vmatprep.subr.mxu0 0.0
    %2877 = vmatpush2.msra.mxu0 0.0
    %2878 = vmatprep.subr.mxu0 0.0
    %2879 = vmatpush2.msra.mxu0 0.0
    %2880 = vmatprep.subr.mxu0 0.0
    %2881 = vmatpush2.msra.mxu0 0.0
    %2882 = vmatprep.subr.mxu0 0.0
    %2883 = vmatpush2.msra.mxu0 0.0
    %2884 = vmatprep.subr.mxu0 0.0
    %2885 = vmatpush2.msra.mxu0 0.0
    %2886 = vmatprep.subr.mxu0 0.0
    %2887 = vmatpush2.msra.mxu0 0.0
    %2888 = vmatprep.subr.mxu0 0.0
    %2889 = vmatpush2.msra.mxu0 0.0
    %2890 = vmatprep.subr.mxu0 0.0
    %2891 = vmatpush2.msra.mxu0 0.0
    %2892 = vmatprep.subr.mxu0 0.0
    %2893 = vmatpush2.msra.mxu0 0.0
    %2894 = vmatprep.subr.mxu0 0.0
    %2895 = vmatpush2.msra.mxu0 0.0
    %2896 = vmatprep.subr.mxu0 0.0
    %2897 = vmatpush2.msra.mxu0 0.0
    %2898 = vmatprep.subr.mxu0 0.0
    %2899 = vmatpush2.msra.mxu0 0.0
    %2900 = vmatprep.subr.mxu0 0.0
    %2901 = vmatpush2.msra.mxu0 0.0
    %2902 = vmatprep.subr.mxu0 0.0
    %2903 = vmatpush2.msra.mxu0 0.0
    %2904 = vmatprep.subr.mxu0 0.0
    %2905 = vmatpush2.msra.mxu0 0.0
    %2906 = vmatprep.subr.mxu0 0.0
    %2907 = vmatpush2.msra.mxu0 0.0
    %2908 = vmatprep.mubr.f32.mxu0 0.0
    %2909 = vmatmul.mubr.f32.gmra.mxu0 %v2833
    %v2910 = vpop.f32.mrf.mxu0
    %v2911 = vadd.f32 0.0, %v2910
    %v2912 = vpop.f32.mrf.mxu0
    %2913 = vmatprep.mubr.f32.mxu0 0.0
    %2914 = vmatmul.mubr.f32.gmra.mxu0 %v2836
    %v2915 = vpop.f32.mrf.mxu0
    %v2916 = vadd.f32 0.0, %v2915
    %v2917 = vpop.f32.mrf.mxu0
    %2918 = vmatprep.mubr.f32.mxu0 0.0
    %2919 = vmatmul.mubr.f32.gmra.mxu0 %v2839
    %v2920 = vpop.f32.mrf.mxu0
    %v2921 = vadd.f32 0.0, %v2920
    %v2922 = vpop.f32.mrf.mxu0
    %2923 = vmatprep.mubr.f32.mxu0 0.0
    %2924 = vmatmul.mubr.f32.gmra.mxu0 %v2842
    %v2925 = vpop.f32.mrf.mxu0
    %v2926 = vadd.f32 0.0, %v2925
    %v2927 = vpop.f32.mrf.mxu0
    %2928 = vdwg.mxu0
    %v2930 = vsel %vm1807, %v2825, 0
    %v2933 = vsel %vm1807, %v2827, 0
    %v2936 = vsel %vm1807, %v2829, 0
    %v2939 = vsel %vm1807, %v2831, 0
    %2941 = vmatprep.subr.mxu0 0.0
    %2942 = vmatpush1.msra.mxu0 0.0
    %2943 = vmatprep.subr.mxu0 0.0
    %2944 = vmatpush1.msra.mxu0 0.0
    %2945 = vmatprep.subr.mxu0 0.0
    %2946 = vmatpush1.msra.mxu0 0.0
    %2947 = vmatprep.subr.mxu0 0.0
    %2948 = vmatpush1.msra.mxu0 0.0
    %2949 = vmatprep.subr.mxu0 0.0
    %2950 = vmatpush1.msra.mxu0 0.0
    %2951 = vmatprep.subr.mxu0 0.0
    %2952 = vmatpush1.msra.mxu0 0.0
    %2953 = vmatprep.subr.mxu0 0.0
    %2954 = vmatpush1.msra.mxu0 0.0
    %2955 = vmatprep.subr.mxu0 0.0
    %2956 = vmatpush1.msra.mxu0 0.0
    %2957 = vmatprep.subr.mxu0 0.0
    %2958 = vmatpush1.msra.mxu0 0.0
    %2959 = vmatprep.subr.mxu0 0.0
    %2960 = vmatpush1.msra.mxu0 0.0
    %2961 = vmatprep.subr.mxu0 0.0
    %2962 = vmatpush1.msra.mxu0 0.0
    %2963 = vmatprep.subr.mxu0 0.0
    %2964 = vmatpush1.msra.mxu0 0.0
    %2965 = vmatprep.subr.mxu0 0.0
    %2966 = vmatpush1.msra.mxu0 %v1607
    %2967 = vmatprep.subr.mxu0 0.0
    %2968 = vmatpush1.msra.mxu0 %v1602
    %2969 = vmatprep.subr.mxu0 0.0
    %2970 = vmatpush1.msra.mxu0 %v1597
    %2971 = vmatprep.subr.mxu0 0.0
    %2972 = vmatpush1.msra.mxu0 %v1592
    %2973 = vmatprep.subr.mxu0 0.0
    %2974 = vmatpush2.msra.mxu0 0.0
    %2975 = vmatprep.subr.mxu0 0.0
    %2976 = vmatpush2.msra.mxu0 0.0
    %2977 = vmatprep.subr.mxu0 0.0
    %2978 = vmatpush2.msra.mxu0 0.0
    %2979 = vmatprep.subr.mxu0 0.0
    %2980 = vmatpush2.msra.mxu0 0.0
    %2981 = vmatprep.subr.mxu0 0.0
    %2982 = vmatpush2.msra.mxu0 0.0
    %2983 = vmatprep.subr.mxu0 0.0
    %2984 = vmatpush2.msra.mxu0 0.0
    %2985 = vmatprep.subr.mxu0 0.0
    %2986 = vmatpush2.msra.mxu0 0.0
    %2987 = vmatprep.subr.mxu0 0.0
    %2988 = vmatpush2.msra.mxu0 0.0
    %2989 = vmatprep.subr.mxu0 0.0
    %2990 = vmatpush2.msra.mxu0 0.0
    %2991 = vmatprep.subr.mxu0 0.0
    %2992 = vmatpush2.msra.mxu0 0.0
    %2993 = vmatprep.subr.mxu0 0.0
    %2994 = vmatpush2.msra.mxu0 0.0
    %2995 = vmatprep.subr.mxu0 0.0
    %2996 = vmatpush2.msra.mxu0 0.0
    %2997 = vmatprep.subr.mxu0 0.0
    %2998 = vmatpush2.msra.mxu0 0.0
    %2999 = vmatprep.subr.mxu0 0.0
    %3000 = vmatpush2.msra.mxu0 0.0
    %3001 = vmatprep.subr.mxu0 0.0
    %3002 = vmatpush2.msra.mxu0 0.0
    %3003 = vmatprep.subr.mxu0 0.0
    %3004 = vmatpush2.msra.mxu0 0.0
    %3005 = vmatprep.mubr.f32.mxu0 0.0
    %3006 = vmatmul.mubr.f32.gmra.mxu0 %v2930
    %v3007 = vpop.f32.mrf.mxu0
    %v3008 = vadd.f32 0.0, %v3007
    %v3009 = vpop.f32.mrf.mxu0
    %3010 = vmatprep.mubr.f32.mxu0 0.0
    %3011 = vmatmul.mubr.f32.gmra.mxu0 %v2933
    %v3012 = vpop.f32.mrf.mxu0
    %v3013 = vadd.f32 0.0, %v3012
    %v3014 = vpop.f32.mrf.mxu0
    %3015 = vmatprep.mubr.f32.mxu0 0.0
    %3016 = vmatmul.mubr.f32.gmra.mxu0 %v2936
    %v3017 = vpop.f32.mrf.mxu0
    %v3018 = vadd.f32 0.0, %v3017
    %v3019 = vpop.f32.mrf.mxu0
    %3020 = vmatprep.mubr.f32.mxu0 0.0
    %3021 = vmatmul.mubr.f32.gmra.mxu0 %v2939
    %v3022 = vpop.f32.mrf.mxu0
    %v3023 = vadd.f32 0.0, %v3022
    %v3024 = vpop.f32.mrf.mxu0
    %3025 = vdwg.mxu0
    %3026 = vst [vmem:[#allocation7 + $0x10] sm:$0xff] %v2911
    %3027 = vst [vmem:[#allocation7 + $0x28] sm:$0xff] %v2916
    %3028 = vst [vmem:[#allocation7 + $0x40] sm:$0xff] %v2921
    %3029 = vst [vmem:[#allocation7 + $0x58] sm:$0xff] %v2926
    %3030 = vst [vmem:[#allocation7 + $0x70] sm:$0xff] %v3008
    %3031 = vst [vmem:[#allocation7 + $0x88] sm:$0xff] %v3013
    %3032 = vst [vmem:[#allocation7 + $0xa0] sm:$0xff] %v3018
    %3033 = vst [vmem:[#allocation7 + $0xb8] sm:$0xff] %v3023
    // Predicated region
    $region18: #{tpu_custom_call.1} parent=1 // pred_check
      _
    $region19: #{tpu_custom_call.1} parent=1 // pred_check_branch
      %3035 = sbr.rel (0) target = $region21
    $region20: #{tpu_custom_call.1} parent=1 // pred_region
      %s3037 = ssub.s32 3072, 3072
      %3038 = vsyncadd [#allocation4], %s3037
      %s3039 = sshll.u32 [#allocation7], 4
      %s3040 = int_to_ptr.vmem [resolvable:$true] %s3039
      %3045 = dma.vmem_to_hbm [thread:$0]  %s3040, 3072, %s2, [#allocation4], 384, 384, 24
    $region21: #{tpu_custom_call.1} parent=1 // pred_fallthru
      _
    // Predicated region
    $region22: #{tpu_custom_call.1} parent=1 // pred_check
      _
    $region23: #{tpu_custom_call.1} parent=1 // pred_check_branch
      %3047 = sbr.rel (0) target = $region25
    $region24: #{tpu_custom_call.1} parent=1 // pred_region
      %3048 = dma.done [#allocation4], 3072
    $region25: #{tpu_custom_call.1} parent=1 // pred_fallthru
      _
    %3049 = vsyncpa [#allocation3], 1
    %3050 = vsyncpa [#allocation6], 1
    %3051 = vsyncpa [#allocation4], 1

</llo_original>
